<compile_context>
chip_gen: v7x
topology: tpu7x:2x2x1
jax: 0.10.0
libtpu: 0.0.40
codegen_flags: <defaults>
</compile_context>

<pallas_src>
import math
import functools

import numpy as np
import jax
import jax.numpy as jnp
from jax.experimental import pallas as pl
from jax.experimental.pallas import tpu as pltpu

# ----------------------------------------------------------------------------
# Module configuration (constructor args of flow_head)
# ----------------------------------------------------------------------------
UNCERT_TYPE = "pose"
NUM_FLOW_LAYERS = 2
MASK_PARAMS_ID = "1-2"
NFLOW_MASK_TYPE = "alternate"
EXCLUDE_UNCERT_IDX = ""          # nothing excluded -> all 24 joints
NUM_NF_RV = 24
COND_NFLOW = True
IN_CONTEXT_DIM = 32
OUT_CONTEXT_DIM = 16
HIDDEN = 64                      # flow_arch = [num_nf_rv + out_ctx, 64, num_nf_rv]
FUSED_HIDDEN = 2 * HIDDEN        # 128 : s-net + t-net hidden fused
FUSED_OUT = 2 * NUM_NF_RV        # 48  : [s | t] fused output

MASK_PARAMS_ID_LIST = [int(x) for x in MASK_PARAMS_ID.split("-") if len(x) > 0]
SEL_UNCERT_PART = [x for x in range(24) if str(x) not in EXCLUDE_UNCERT_IDX]

BATCH = 2
DEFAULT_TILE_M = 2048            # batch tile (lane dim); multiple of 128.
# bf16 is the native MXU input dtype on v5e/v6e/v7x (~2-4x matmul rate, no f32
# multi-pass decomposition on v5e).  Accumulation and all elementwise math stay
# f32.  Set back to jnp.float32 for bit-closer parity with the PyTorch module.
MATMUL_DTYPE = jnp.bfloat16


# ----------------------------------------------------------------------------
# Mask generation (get_<nflow_mask_type>_masks)
# ----------------------------------------------------------------------------
def get_alternate_masks(num_rv, num_layers):
    masks = np.zeros((num_layers, num_rv), dtype=np.float32)
    for i in range(num_layers):
        masks[i, (i % 2)::2] = 1.0
    return masks


# ----------------------------------------------------------------------------
# Deterministic parameter initialization (shapes from flow_head.__init__)
# ----------------------------------------------------------------------------
def _init_linear(key, fan_in, fan_out, scale=0.1):
    kw, kb = jax.random.split(key)
    w = jax.random.normal(kw, (fan_in, fan_out), jnp.float32) * scale
    b = jax.random.normal(kb, (fan_out,), jnp.float32) * scale
    return w, b


def build_flow_head_params(key):
    d_in = NUM_NF_RV + (OUT_CONTEXT_DIM if COND_NFLOW else 0)
    keys = jax.random.split(key, 1 + NUM_FLOW_LAYERS * 6)
    wc, bc = _init_linear(keys[0], IN_CONTEXT_DIM, OUT_CONTEXT_DIM)

    ws1, bs1, ws2, bs2, ws3, bs3 = [], [], [], [], [], []
    wt1, bt1, wt2, bt2, wt3, bt3 = [], [], [], [], [], []
    k = 1
    for _ in range(NUM_FLOW_LAYERS):
        # s-net: Linear(d_in,64) LReLU Linear(64,64) LReLU Linear(64,num_nf_rv) Tanh
        w, b = _init_linear(keys[k], d_in, HIDDEN); ws1.append(w); bs1.append(b); k += 1
        w, b = _init_linear(keys[k], HIDDEN, HIDDEN); ws2.append(w); bs2.append(b); k += 1
        w, b = _init_linear(keys[k], HIDDEN, NUM_NF_RV); ws3.append(w); bs3.append(b); k += 1
        # t-net: same shapes, no final Tanh
        w, b = _init_linear(keys[k], d_in, HIDDEN); wt1.append(w); bt1.append(b); k += 1
        w, b = _init_linear(keys[k], HIDDEN, HIDDEN); wt2.append(w); bt2.append(b); k += 1
        w, b = _init_linear(keys[k], HIDDEN, NUM_NF_RV); wt3.append(w); bt3.append(b); k += 1

    stack = lambda xs: jnp.stack(xs, axis=0)
    ws1 = stack(ws1); ws2 = stack(ws2); ws3 = stack(ws3)
    wt1 = stack(wt1); wt2 = stack(wt2); wt3 = stack(wt3)
    bs1 = stack(bs1); bs2 = stack(bs2); bs3 = stack(bs3)
    bt1 = stack(bt1); bt2 = stack(bt2); bt3 = stack(bt3)

    masks = jnp.asarray(get_alternate_masks(NUM_NF_RV, NUM_FLOW_LAYERS))  # (L,24)

    mask_params = np.ones(24, dtype=np.float32)
    if len(MASK_PARAMS_ID_LIST) > 0 and len(SEL_UNCERT_PART) == 24:
        mask_params[np.array(MASK_PARAMS_ID_LIST)] = 0.0

    # --- unfused parameters, (in, out) convention: used only by the reference
    ref = {
        "masks": masks, "wc": wc, "bc": bc.reshape(1, OUT_CONTEXT_DIM),
        "ws1z": ws1[:, :NUM_NF_RV, :], "ws1c": ws1[:, NUM_NF_RV:, :], "bs1": bs1,
        "ws2": ws2, "bs2": bs2, "ws3": ws3, "bs3": bs3,
        "wt1z": wt1[:, :NUM_NF_RV, :], "wt1c": wt1[:, NUM_NF_RV:, :], "bt1": bt1,
        "wt2": wt2, "bt2": bt2, "wt3": wt3, "bt3": bt3,
    }

    # --- fused s/t weights (exact block structure, no approximation) ----------
    L = NUM_FLOW_LAYERS
    w1z_f = jnp.concatenate([ref["ws1z"], ref["wt1z"]], axis=-1)     # (L, 24, 128)
    w1c_f = jnp.concatenate([ref["ws1c"], ref["wt1c"]], axis=-1)     # (L, 16, 128)
    b1_f = jnp.concatenate([bs1, bt1], axis=-1)                      # (L, 128)
    w2_f = jnp.zeros((L, FUSED_HIDDEN, FUSED_HIDDEN), jnp.float32)
    w2_f = w2_f.at[:, :HIDDEN, :HIDDEN].set(ws2).at[:, HIDDEN:, HIDDEN:].set(wt2)
    b2_f = jnp.concatenate([bs2, bt2], axis=-1)                      # (L, 128)
    w3_f = jnp.zeros((L, FUSED_HIDDEN, FUSED_OUT), jnp.float32)
    w3_f = w3_f.at[:, :HIDDEN, :NUM_NF_RV].set(ws3).at[:, HIDDEN:, NUM_NF_RV:].set(wt3)
    b3_f = jnp.concatenate([bs3, bt3], axis=-1)                      # (L, 48)

    # --- kernel parameters: (out, in) weights, column-vector biases/masks -----
    w1z_t = jnp.swapaxes(w1z_f, 1, 2)                                # (L, 128, 24)
    w1c_t = jnp.swapaxes(w1c_f, 1, 2)                                # (L, 128, 16)
    wc_t = wc.T                                                      # (16, 32)
    bc_col = bc.reshape(OUT_CONTEXT_DIM, 1)                          # (16, 1)

    # fold the coupling mask into the layer-1 z-weights (mask columns == mask z rows)
    w1z_m_t = w1z_t * masks[:, None, :]                              # (L, 128, 24)

    # fold cond_layer into the per-layer context weights (exact linear composition)
    w1c_eff = jnp.einsum("lhi,ij->lhj", w1c_t, wc_t)                 # (L, 128, 32)
    b1_eff = b1_f[:, :, None] + jnp.einsum("lhi,ij->lhj", w1c_t, bc_col)  # (L,128,1)

    # stack both layers' context projections -> one hoisted (256, 32) matmul
    w1c_all_t = w1c_eff.reshape(L * FUSED_HIDDEN, IN_CONTEXT_DIM)    # (256, 32)
    b1_all_col = b1_eff.reshape(L * FUSED_HIDDEN, 1)                 # (256, 1)

    cast = lambda a: a.astype(MATMUL_DTYPE)   # pre-cast resident MXU weights
    params = {
        "mask_params": jnp.asarray(mask_params),
        "masks_col": masks[:, :, None],                              # (L, 24, 1) f32
        "w1z_m_t": cast(w1z_m_t),                                    # (L, 128, 24)
        "w1c_all_t": cast(w1c_all_t),                                # (256, 32)
        "b1_all_col": b1_all_col,                                    # (256, 1) f32
        "w2_t": cast(jnp.swapaxes(w2_f, 1, 2)),                      # (L, 128, 128)
        "b2_col": b2_f[:, :, None],                                  # (L, 128, 1) f32
        "w3_t": cast(jnp.swapaxes(w3_f, 1, 2)),                      # (L, 48, 128)
        "b3_col": b3_f[:, :, None],                                  # (L, 48, 1) f32
        "ref": ref,
    }
    return params


# ----------------------------------------------------------------------------
# Pallas kernel: (folded) cond_layer + RealNVP log_prob (x -> z) + N(0, I) prior
# Activations are transposed: features on sublanes, batch (TILE_M) on lanes.
# ----------------------------------------------------------------------------
def _flow_logprob_kernel(num_layers, num_nf_rv, fused_hidden,
                         xf_ref, masks_ref, w1z_ref, w1c_all_ref, b1_all_ref,
                         w2_ref, b2_ref, w3_ref, b3_ref,
                         out_ref):
    f32 = jnp.float32
    leaky = lambda v: jnp.where(v >= 0, v, 0.01 * v)   # nn.LeakyReLU default slope
    dotf = lambda a, b: jnp.dot(a.astype(MATMUL_DTYPE), b.astype(MATMUL_DTYPE),
                                preferred_element_type=f32)

    xf = xf_ref[...]                        # (24+32, T) f32 combined input
    x = xf[:num_nf_rv, :]                   # (24, T) bar_pose^T (stays f32)
    feat = xf[num_nf_rv:, :]                # (32, T) uncert_feat^T

    # Hoisted, layer-stacked context projection.  cond_layer is folded into the
    # weights/biases on the host, so this single (256,32)x(32,T) matmul replaces
    # the cond_layer matmul plus both per-layer context matmuls and sits off the
    # critical dependent-matmul chain of the coupling loop.
    ctxp = dotf(w1c_all_ref[...], feat) + b1_all_ref[...]            # (L*128, T)

    z = x
    logdet = jnp.zeros((1, x.shape[1]), f32)
    for i in reversed(range(num_layers)):              # RealNVP f(x): reversed order
        m = masks_ref[i]                               # (24, 1)
        one_m = 1.0 - m
        z_m = z * m                                    # only needed for "+ z_m"

        ctx_i = ctxp[i * fused_hidden:(i + 1) * fused_hidden, :]     # (128, T)
        # coupling mask is pre-folded into w1z, so the matmul consumes z directly
        h = leaky(dotf(w1z_ref[i], z) + ctx_i)                       # (128, T)
        h = leaky(dotf(w2_ref[i], h) + b2_ref[i])                    # (128, T)
        st = dotf(w3_ref[i], h) + b3_ref[i]                          # (48, T)

        s = jnp.tanh(st[:num_nf_rv, :]) * one_m        # s-net (Tanh); mask kept (logdet)
        t = st[num_nf_rv:, :]                          # t-net; one_m*(z-t) suffices

        z = one_m * (z - t) * jnp.exp(-s) + z_m
        logdet = logdet - jnp.sum(s, axis=0, keepdims=True)          # (1, T)

    # MultivariateNormal(0, I).log_prob(z)
    prior_lp = (-0.5 * jnp.sum(z * z, axis=0, keepdims=True)
                - 0.5 * num_nf_rv * math.log(2.0 * math.pi))
    out_ref[...] = prior_lp + logdet                   # (1, T) lane-dense store


def _round_up(x, m):
    return ((x + m - 1) // m) * m


def _choose_tiling(n, tile_m):
    """Pick (n_pad, tile_m): lane-aligned, and >= 2 grid steps when possible."""
    n_pad = _round_up(max(n, 1), 128)
    tile_m = max(128, min(_round_up(tile_m, 128), n_pad))
    # v7x has 2 TensorCores; the "parallel" axis only shards if the grid has at
    # least 2 steps, so never collapse padded batches >= 256 to a single tile.
    if n_pad >= 2 * 128 and n_pad // tile_m < 2:
        tile_m = _round_up(-(-n_pad // 2), 128)
    n_pad = _round_up(n_pad, tile_m)
    return n_pad, tile_m


def flow_log_prob_pallas(bar_pose, uncert_feat, params, tile_m=DEFAULT_TILE_M):
    n = bar_pose.shape[0]
    n_pad, tile_m = _choose_tiling(n, tile_m)
    grid = (n_pad // tile_m,)

    # One combined, transposed, zero-padded input (x rows 0..23, feat rows 24..55):
    # a single lane-dense DMA per grid step instead of two (layout plumbing in XLA).
    xf = jnp.zeros((NUM_NF_RV + IN_CONTEXT_DIM, n_pad), jnp.float32)
    xf = xf.at[:NUM_NF_RV, :n].set(bar_pose.astype(jnp.float32).T)
    xf = xf.at[NUM_NF_RV:, :n].set(uncert_feat.astype(jnp.float32).T)

    weight_args = (params["masks_col"],
                   params["w1z_m_t"], params["w1c_all_t"], params["b1_all_col"],
                   params["w2_t"], params["b2_col"],
                   params["w3_t"], params["b3_col"])

    def full_spec(arr):
        nd = arr.ndim
        return pl.BlockSpec(arr.shape, lambda i, _nd=nd: (0,) * _nd)

    in_specs = [
        pl.BlockSpec((NUM_NF_RV + IN_CONTEXT_DIM, tile_m), lambda i: (0, i)),
    ] + [full_spec(w) for w in weight_args]            # VMEM-resident weights (<1 MiB)

    kernel = functools.partial(_flow_logprob_kernel,
                               NUM_FLOW_LAYERS, NUM_NF_RV, FUSED_HIDDEN)
    out = pl.pallas_call(
        kernel,
        grid=grid,
        in_specs=in_specs,
        out_specs=pl.BlockSpec((1, tile_m), lambda i: (0, i)),
        out_shape=jax.ShapeDtypeStruct((1, n_pad), jnp.float32),
        compiler_params=pltpu.CompilerParams(
            dimension_semantics=("parallel",)),        # megacore sharding on v7x
        # Per-tile footprint at T=2048 is only a few MiB, well inside even v5e's
        # 16 MiB default scoped VMEM, so no vmem_limit_bytes override is needed.
    )(xf, *weight_args)
    return out[0, :n]


# Pure-JAX f32 reference of the same flow (unfused weights) -- used only by the
# self-test in __main__, never on the forward hot path.
def flow_log_prob_ref(bar_pose, uncert_feat, p):
    leaky = lambda v: jnp.where(v >= 0, v, 0.01 * v)
    ctx = uncert_feat @ p["wc"] + p["bc"]
    z = bar_pose
    logdet = jnp.zeros((bar_pose.shape[0],), jnp.float32)
    for i in reversed(range(NUM_FLOW_LAYERS)):
        m = p["masks"][i]
        z_m = z * m
        h = leaky(z_m @ p["ws1z"][i] + ctx @ p["ws1c"][i] + p["bs1"][i])
        h = leaky(h @ p["ws2"][i] + p["bs2"][i])
        s = jnp.tanh(h @ p["ws3"][i] + p["bs3"][i]) * (1.0 - m)
        g = leaky(z_m @ p["wt1z"][i] + ctx @ p["wt1c"][i] + p["bt1"][i])
        g = leaky(g @ p["wt2"][i] + p["bt2"][i])
        t = (g @ p["wt3"][i] + p["bt3"][i]) * (1.0 - m)
        z = (1.0 - m) * (z - t) * jnp.exp(-s) + z_m
        logdet = logdet - s.sum(axis=1)
    return (-0.5 * (z * z).sum(axis=1)
            - 0.5 * NUM_NF_RV * math.log(2.0 * math.pi) + logdet)


# ----------------------------------------------------------------------------
# JAX glue mirroring flow_head.forward
# ----------------------------------------------------------------------------
def quat_to_rotmat(quat):
    norm_quat = quat / jnp.linalg.norm(quat, axis=1, keepdims=True)
    w, x, y, z = norm_quat[:, 0], norm_quat[:, 1], norm_quat[:, 2], norm_quat[:, 3]
    w2, x2, y2, z2 = w * w, x * x, y * y, z * z
    wx, wy, wz = w * x, w * y, w * z
    xy, xz, yz = x * y, x * z, y * z
    rot = jnp.stack([
        w2 + x2 - y2 - z2, 2 * (xy - wz), 2 * (xz + wy),
        2 * (xy + wz), w2 - x2 + y2 - z2, 2 * (yz - wx),
        2 * (xz - wy), 2 * (yz + wx), w2 - x2 - y2 + z2], axis=1)
    return rot.reshape(-1, 3, 3)


def batch_rodrigues(theta):
    # axis-angle (N, 3) -> rotation matrices (N, 3, 3)
    angle = jnp.linalg.norm(theta + 1e-8, axis=1, keepdims=True)
    axis = theta / angle
    half = angle * 0.5
    quat = jnp.concatenate([jnp.cos(half), jnp.sin(half) * axis], axis=1)
    return quat_to_rotmat(quat)


def flow_head_forward(params, head_output, pred, batch):
    _ = pred["smpl_vertices"].shape[0]  # batch_size / device, only shape used
    sel = jnp.asarray(SEL_UNCERT_PART)

    if "is_train" in batch:
        if "pose" in UNCERT_TYPE:
            has_smpl = batch["has_smpl"].astype(bool)
            gt_pose = batch_rodrigues(batch["pose"].reshape(-1, 3)).reshape(-1, 24, 3, 3)
            gt_pose = gt_pose[has_smpl == 1]
            gt_pose = gt_pose[:, sel, :]
            pred_pose = pred["pred_pose"][has_smpl == 1][:, sel, :]
            pred_sigma = pred["var_pose"][has_smpl == 1]
            uncert_feat = head_output["uncert_feat"][has_smpl == 1] if COND_NFLOW else None

            pred_sigma_shape = pred_sigma.shape
            if pred_sigma.ndim == 2:
                pred_sigma = jnp.broadcast_to(pred_sigma[:, :, None, None],
                                              pred_sigma.shape + (3, 3))
            bar_pose = jnp.abs(pred_pose - gt_pose) / (pred_sigma + 1e-9)
            if NUM_NF_RV == 24:
                bar_pose = bar_pose.mean(-1).mean(-1)
            bar_pose = bar_pose.reshape(-1, NUM_NF_RV)
            if COND_NFLOW:
                rp = bar_pose.shape[0] // pred_pose.shape[0]
                uncert_feat = jnp.repeat(uncert_feat, rp, axis=0)

            # hot path: (folded) cond_layer + RealNVP log_prob inside the Pallas kernel
            log_phi = flow_log_prob_pallas(bar_pose, uncert_feat, params)

            log_phi = log_phi.reshape(pred_pose.shape[0], -1)
            expand_dim = len(pred_sigma_shape) - log_phi.ndim
            if (log_phi.shape[1] == 24 and len(MASK_PARAMS_ID_LIST) > 0
                    and len(SEL_UNCERT_PART) == 24):
                log_phi = log_phi * params["mask_params"]
            while expand_dim > 0:
                log_phi = log_phi[..., None]
                expand_dim -= 1
        else:
            raise NotImplementedError(UNCERT_TYPE)
    else:
        log_phi = None

    pred = dict(pred)
    pred["log_phi"] = log_phi
    return pred


# ----------------------------------------------------------------------------
# Demo
# ----------------------------------------------------------------------------
if __name__ == "__main__":
    key = jax.random.PRNGKey(0)
    (k_par, k_feat, k_pose, k_pred, k_var, k_vert,
     k_chk1, k_chk2) = jax.random.split(key, 8)

    params = build_flow_head_params(k_par)

    # --- standalone correctness self-test (exercises the multi-tile grid path).
    # Tolerance is loose because the kernel uses bf16 MXU inputs (f32 accumulate
    # and f32 elementwise); the f32 reference mirrors the PyTorch module exactly.
    bp_chk = jnp.abs(jax.random.normal(k_chk1, (600, NUM_NF_RV), jnp.float32))
    uf_chk = jax.random.normal(k_chk2, (600, IN_CONTEXT_DIM), jnp.float32)
    lp_kernel = flow_log_prob_pallas(bp_chk, uf_chk, params)
    lp_ref = flow_log_prob_ref(bp_chk, uf_chk, params["ref"])
    np.testing.assert_allclose(np.asarray(lp_kernel), np.asarray(lp_ref),
                               rtol=5e-2, atol=1e-1)

    # --- full forward at the module's small demo shapes
    head_output = {
        "uncert_feat": jax.random.normal(k_feat, (BATCH, IN_CONTEXT_DIM), jnp.float32),
    }
    pred = {
        "smpl_vertices": jax.random.normal(k_vert, (BATCH, 16, 3), jnp.float32),
        "pred_pose": batch_rodrigues(
            jax.random.normal(k_pred, (BATCH * 24, 3), jnp.float32) * 0.2
        ).reshape(BATCH, 24, 3, 3),
        "var_pose": jnp.abs(jax.random.normal(k_var, (BATCH, 24), jnp.float32)) * 0.3 + 0.5,
    }
    batch = {
        "is_train": True,
        "has_smpl": jnp.ones((BATCH,), jnp.int32),
        "pose": jax.random.normal(k_pose, (BATCH, 72), jnp.float32) * 0.2,
    }

    out = flow_head_forward(params, head_output, pred, batch)
    jax.block_until_ready(out["log_phi"])
    assert out["log_phi"].shape == (BATCH, 1)
    print("KERNEL_OK")
</pallas_src>

<mosaic_0001>
module attributes {stable_mosaic.version = 11 : i64} {
  func.func @_flow_logprob_kernel(%arg0: i32, %arg1: memref<56x384xf32, #tpu.memory_space<vmem>>, %arg2: memref<2x24x1xf32, #tpu.memory_space<vmem>>, %arg3: memref<2x128x24xbf16, #tpu.memory_space<vmem>>, %arg4: memref<256x32xbf16, #tpu.memory_space<vmem>>, %arg5: memref<256x1xf32, #tpu.memory_space<vmem>>, %arg6: memref<2x128x128xbf16, #tpu.memory_space<vmem>>, %arg7: memref<2x128x1xf32, #tpu.memory_space<vmem>>, %arg8: memref<2x48x128xbf16, #tpu.memory_space<vmem>>, %arg9: memref<2x48x1xf32, #tpu.memory_space<vmem>>, %arg10: memref<1x384xf32, #tpu.memory_space<vmem>>) attributes {dimension_semantics = [#tpu.dimension_semantics<parallel>], iteration_bounds = array<i64: 2>, scalar_prefetch = 0 : i64, scratch_operands = 0 : i64, tpu.core_type = #tpu.core_type<tc>, window_params = [{transform_indices = @transform_0, window_bounds = array<i64: 56, 384>}, {pipeline_mode = #tpu.pipeline_mode<synchronous>, transform_indices = @transform_1, window_bounds = array<i64: 2, 24, 1>}, {pipeline_mode = #tpu.pipeline_mode<synchronous>, transform_indices = @transform_2, window_bounds = array<i64: 2, 128, 24>}, {pipeline_mode = #tpu.pipeline_mode<synchronous>, transform_indices = @transform_3, window_bounds = array<i64: 256, 32>}, {pipeline_mode = #tpu.pipeline_mode<synchronous>, transform_indices = @transform_4, window_bounds = array<i64: 256, 1>}, {pipeline_mode = #tpu.pipeline_mode<synchronous>, transform_indices = @transform_5, window_bounds = array<i64: 2, 128, 128>}, {pipeline_mode = #tpu.pipeline_mode<synchronous>, transform_indices = @transform_6, window_bounds = array<i64: 2, 128, 1>}, {pipeline_mode = #tpu.pipeline_mode<synchronous>, transform_indices = @transform_7, window_bounds = array<i64: 2, 48, 128>}, {pipeline_mode = #tpu.pipeline_mode<synchronous>, transform_indices = @transform_8, window_bounds = array<i64: 2, 48, 1>}, {transform_indices = @transform_9, window_bounds = array<i64: 1, 384>}]} {
    %c0 = arith.constant 0 : index
    %c0_0 = arith.constant 0 : index
    %0 = vector.load %arg1[%c0, %c0_0] : memref<56x384xf32, #tpu.memory_space<vmem>>, vector<56x384xf32>
    %1 = vector.extract_strided_slice %0 {offsets = [0, 0], sizes = [24, 384], strides = [1, 1]} : vector<56x384xf32> to vector<24x384xf32>
    %2 = vector.extract_strided_slice %0 {offsets = [24, 0], sizes = [32, 384], strides = [1, 1]} : vector<56x384xf32> to vector<32x384xf32>
    %c0_1 = arith.constant 0 : index
    %c0_2 = arith.constant 0 : index
    %3 = vector.load %arg4[%c0_1, %c0_2] : memref<256x32xbf16, #tpu.memory_space<vmem>>, vector<256x32xbf16>
    %4 = arith.truncf %2 : vector<32x384xf32> to vector<32x384xbf16>
    %cst = arith.constant dense<0.000000e+00> : vector<256x384xf32>
    %5 = tpu.matmul %3, %4, %cst {dimension_numbers = #tpu.dot_dimension_numbers<[1], [0], [0], [1], [0, 0, 1, 1], [], []>} : vector<256x32xbf16>, vector<32x384xbf16>, vector<256x384xf32> -> vector<256x384xf32>
    %c0_3 = arith.constant 0 : index
    %c0_4 = arith.constant 0 : index
    %6 = vector.load %arg5[%c0_3, %c0_4] : memref<256x1xf32, #tpu.memory_space<vmem>>, vector<256x1xf32>
    %7 = vector.broadcast %6 : vector<256x1xf32> to vector<256x384xf32>
    %8 = arith.addf %5, %7 : vector<256x384xf32>
    %cst_5 = arith.constant 0.000000e+00 : f32
    %9 = vector.broadcast %cst_5 : f32 to vector<1x384xf32>
    %c1 = arith.constant 1 : index
    %c0_6 = arith.constant 0 : index
    %c0_7 = arith.constant 0 : index
    %10 = vector.load %arg2[%c1, %c0_6, %c0_7] : memref<2x24x1xf32, #tpu.memory_space<vmem>>, vector<1x24x1xf32>
    %11 = vector.shape_cast %10 : vector<1x24x1xf32> to vector<24x1xf32>
    %cst_8 = arith.constant 1.000000e+00 : f32
    %12 = vector.broadcast %cst_8 : f32 to vector<24x1xf32>
    %13 = arith.subf %12, %11 : vector<24x1xf32>
    %14 = vector.broadcast %11 : vector<24x1xf32> to vector<24x384xf32>
    %15 = arith.mulf %1, %14 : vector<24x384xf32>
    %16 = vector.extract_strided_slice %8 {offsets = [128, 0], sizes = [128, 384], strides = [1, 1]} : vector<256x384xf32> to vector<128x384xf32>
    %c1_9 = arith.constant 1 : index
    %c0_10 = arith.constant 0 : index
    %c0_11 = arith.constant 0 : index
    %17 = vector.load %arg3[%c1_9, %c0_10, %c0_11] : memref<2x128x24xbf16, #tpu.memory_space<vmem>>, vector<1x128x24xbf16>
    %18 = vector.shape_cast %17 : vector<1x128x24xbf16> to vector<128x24xbf16>
    %19 = arith.truncf %1 : vector<24x384xf32> to vector<24x384xbf16>
    %cst_12 = arith.constant dense<0.000000e+00> : vector<128x384xf32>
    %20 = tpu.matmul %18, %19, %cst_12 {dimension_numbers = #tpu.dot_dimension_numbers<[1], [0], [0], [1], [0, 0, 1, 1], [], []>} : vector<128x24xbf16>, vector<24x384xbf16>, vector<128x384xf32> -> vector<128x384xf32>
    %21 = arith.addf %20, %16 : vector<128x384xf32>
    %cst_13 = arith.constant 0.000000e+00 : f32
    %22 = vector.broadcast %cst_13 : f32 to vector<128x384xf32>
    %23 = arith.cmpf oge, %21, %22 : vector<128x384xf32>
    %cst_14 = arith.constant 0.00999999977 : f32
    %24 = vector.broadcast %cst_14 : f32 to vector<128x384xf32>
    %25 = arith.mulf %24, %21 : vector<128x384xf32>
    %26 = arith.select %23, %21, %25 : vector<128x384xi1>, vector<128x384xf32>
    %c1_15 = arith.constant 1 : index
    %c0_16 = arith.constant 0 : index
    %c0_17 = arith.constant 0 : index
    %27 = vector.load %arg6[%c1_15, %c0_16, %c0_17] : memref<2x128x128xbf16, #tpu.memory_space<vmem>>, vector<1x128x128xbf16>
    %28 = vector.shape_cast %27 : vector<1x128x128xbf16> to vector<128x128xbf16>
    %29 = arith.truncf %26 : vector<128x384xf32> to vector<128x384xbf16>
    %cst_18 = arith.constant dense<0.000000e+00> : vector<128x384xf32>
    %30 = tpu.matmul %28, %29, %cst_18 {dimension_numbers = #tpu.dot_dimension_numbers<[1], [0], [0], [1], [0, 0, 1, 1], [], []>} : vector<128x128xbf16>, vector<128x384xbf16>, vector<128x384xf32> -> vector<128x384xf32>
    %c1_19 = arith.constant 1 : index
    %c0_20 = arith.constant 0 : index
    %c0_21 = arith.constant 0 : index
    %31 = vector.load %arg7[%c1_19, %c0_20, %c0_21] : memref<2x128x1xf32, #tpu.memory_space<vmem>>, vector<1x128x1xf32>
    %32 = vector.shape_cast %31 : vector<1x128x1xf32> to vector<128x1xf32>
    %33 = vector.broadcast %32 : vector<128x1xf32> to vector<128x384xf32>
    %34 = arith.addf %30, %33 : vector<128x384xf32>
    %cst_22 = arith.constant 0.000000e+00 : f32
    %35 = vector.broadcast %cst_22 : f32 to vector<128x384xf32>
    %36 = arith.cmpf oge, %34, %35 : vector<128x384xf32>
    %cst_23 = arith.constant 0.00999999977 : f32
    %37 = vector.broadcast %cst_23 : f32 to vector<128x384xf32>
    %38 = arith.mulf %37, %34 : vector<128x384xf32>
    %39 = arith.select %36, %34, %38 : vector<128x384xi1>, vector<128x384xf32>
    %c1_24 = arith.constant 1 : index
    %c0_25 = arith.constant 0 : index
    %c0_26 = arith.constant 0 : index
    %40 = vector.load %arg8[%c1_24, %c0_25, %c0_26] : memref<2x48x128xbf16, #tpu.memory_space<vmem>>, vector<1x48x128xbf16>
    %41 = vector.shape_cast %40 : vector<1x48x128xbf16> to vector<48x128xbf16>
    %42 = arith.truncf %39 : vector<128x384xf32> to vector<128x384xbf16>
    %cst_27 = arith.constant dense<0.000000e+00> : vector<48x384xf32>
    %43 = tpu.matmul %41, %42, %cst_27 {dimension_numbers = #tpu.dot_dimension_numbers<[1], [0], [0], [1], [0, 0, 1, 1], [], []>} : vector<48x128xbf16>, vector<128x384xbf16>, vector<48x384xf32> -> vector<48x384xf32>
    %c1_28 = arith.constant 1 : index
    %c0_29 = arith.constant 0 : index
    %c0_30 = arith.constant 0 : index
    %44 = vector.load %arg9[%c1_28, %c0_29, %c0_30] : memref<2x48x1xf32, #tpu.memory_space<vmem>>, vector<1x48x1xf32>
    %45 = vector.shape_cast %44 : vector<1x48x1xf32> to vector<48x1xf32>
    %46 = vector.broadcast %45 : vector<48x1xf32> to vector<48x384xf32>
    %47 = arith.addf %43, %46 : vector<48x384xf32>
    %48 = vector.extract_strided_slice %47 {offsets = [0, 0], sizes = [24, 384], strides = [1, 1]} : vector<48x384xf32> to vector<24x384xf32>
    %49 = math.tanh %48 : vector<24x384xf32>
    %50 = vector.broadcast %13 : vector<24x1xf32> to vector<24x384xf32>
    %51 = arith.mulf %49, %50 : vector<24x384xf32>
    %52 = vector.extract_strided_slice %47 {offsets = [24, 0], sizes = [24, 384], strides = [1, 1]} : vector<48x384xf32> to vector<24x384xf32>
    %53 = arith.subf %1, %52 : vector<24x384xf32>
    %54 = vector.broadcast %13 : vector<24x1xf32> to vector<24x384xf32>
    %55 = arith.mulf %54, %53 : vector<24x384xf32>
    %cst_31 = arith.constant 0.000000e+00 : f32
    %56 = vector.broadcast %cst_31 : f32 to vector<24x384xf32>
    %57 = arith.subf %56, %51 : vector<24x384xf32>
    %58 = math.exp %57 : vector<24x384xf32>
    %59 = arith.mulf %55, %58 : vector<24x384xf32>
    %60 = arith.addf %59, %15 : vector<24x384xf32>
    %cst_32 = arith.constant dense<0.000000e+00> : vector<384xf32>
    %61 = vector.multi_reduction <add>, %51, %cst_32 [0] : vector<24x384xf32> to vector<384xf32>
    %62 = vector.shape_cast %61 : vector<384xf32> to vector<1x384xf32>
    %63 = arith.subf %9, %62 : vector<1x384xf32>
    %c0_33 = arith.constant 0 : index
    %c0_34 = arith.constant 0 : index
    %c0_35 = arith.constant 0 : index
    %64 = vector.load %arg2[%c0_33, %c0_34, %c0_35] : memref<2x24x1xf32, #tpu.memory_space<vmem>>, vector<1x24x1xf32>
    %65 = vector.shape_cast %64 : vector<1x24x1xf32> to vector<24x1xf32>
    %cst_36 = arith.constant 1.000000e+00 : f32
    %66 = vector.broadcast %cst_36 : f32 to vector<24x1xf32>
    %67 = arith.subf %66, %65 : vector<24x1xf32>
    %68 = vector.broadcast %65 : vector<24x1xf32> to vector<24x384xf32>
    %69 = arith.mulf %60, %68 : vector<24x384xf32>
    %70 = vector.extract_strided_slice %8 {offsets = [0, 0], sizes = [128, 384], strides = [1, 1]} : vector<256x384xf32> to vector<128x384xf32>
    %c0_37 = arith.constant 0 : index
    %c0_38 = arith.constant 0 : index
    %c0_39 = arith.constant 0 : index
    %71 = vector.load %arg3[%c0_37, %c0_38, %c0_39] : memref<2x128x24xbf16, #tpu.memory_space<vmem>>, vector<1x128x24xbf16>
    %72 = vector.shape_cast %71 : vector<1x128x24xbf16> to vector<128x24xbf16>
    %73 = arith.truncf %60 : vector<24x384xf32> to vector<24x384xbf16>
    %cst_40 = arith.constant dense<0.000000e+00> : vector<128x384xf32>
    %74 = tpu.matmul %72, %73, %cst_40 {dimension_numbers = #tpu.dot_dimension_numbers<[1], [0], [0], [1], [0, 0, 1, 1], [], []>} : vector<128x24xbf16>, vector<24x384xbf16>, vector<128x384xf32> -> vector<128x384xf32>
    %75 = arith.addf %74, %70 : vector<128x384xf32>
    %cst_41 = arith.constant 0.000000e+00 : f32
    %76 = vector.broadcast %cst_41 : f32 to vector<128x384xf32>
    %77 = arith.cmpf oge, %75, %76 : vector<128x384xf32>
    %cst_42 = arith.constant 0.00999999977 : f32
    %78 = vector.broadcast %cst_42 : f32 to vector<128x384xf32>
    %79 = arith.mulf %78, %75 : vector<128x384xf32>
    %80 = arith.select %77, %75, %79 : vector<128x384xi1>, vector<128x384xf32>
    %c0_43 = arith.constant 0 : index
    %c0_44 = arith.constant 0 : index
    %c0_45 = arith.constant 0 : index
    %81 = vector.load %arg6[%c0_43, %c0_44, %c0_45] : memref<2x128x128xbf16, #tpu.memory_space<vmem>>, vector<1x128x128xbf16>
    %82 = vector.shape_cast %81 : vector<1x128x128xbf16> to vector<128x128xbf16>
    %83 = arith.truncf %80 : vector<128x384xf32> to vector<128x384xbf16>
    %cst_46 = arith.constant dense<0.000000e+00> : vector<128x384xf32>
    %84 = tpu.matmul %82, %83, %cst_46 {dimension_numbers = #tpu.dot_dimension_numbers<[1], [0], [0], [1], [0, 0, 1, 1], [], []>} : vector<128x128xbf16>, vector<128x384xbf16>, vector<128x384xf32> -> vector<128x384xf32>
    %c0_47 = arith.constant 0 : index
    %c0_48 = arith.constant 0 : index
    %c0_49 = arith.constant 0 : index
    %85 = vector.load %arg7[%c0_47, %c0_48, %c0_49] : memref<2x128x1xf32, #tpu.memory_space<vmem>>, vector<1x128x1xf32>
    %86 = vector.shape_cast %85 : vector<1x128x1xf32> to vector<128x1xf32>
    %87 = vector.broadcast %86 : vector<128x1xf32> to vector<128x384xf32>
    %88 = arith.addf %84, %87 : vector<128x384xf32>
    %cst_50 = arith.constant 0.000000e+00 : f32
    %89 = vector.broadcast %cst_50 : f32 to vector<128x384xf32>
    %90 = arith.cmpf oge, %88, %89 : vector<128x384xf32>
    %cst_51 = arith.constant 0.00999999977 : f32
    %91 = vector.broadcast %cst_51 : f32 to vector<128x384xf32>
    %92 = arith.mulf %91, %88 : vector<128x384xf32>
    %93 = arith.select %90, %88, %92 : vector<128x384xi1>, vector<128x384xf32>
    %c0_52 = arith.constant 0 : index
    %c0_53 = arith.constant 0 : index
    %c0_54 = arith.constant 0 : index
    %94 = vector.load %arg8[%c0_52, %c0_53, %c0_54] : memref<2x48x128xbf16, #tpu.memory_space<vmem>>, vector<1x48x128xbf16>
    %95 = vector.shape_cast %94 : vector<1x48x128xbf16> to vector<48x128xbf16>
    %96 = arith.truncf %93 : vector<128x384xf32> to vector<128x384xbf16>
    %cst_55 = arith.constant dense<0.000000e+00> : vector<48x384xf32>
    %97 = tpu.matmul %95, %96, %cst_55 {dimension_numbers = #tpu.dot_dimension_numbers<[1], [0], [0], [1], [0, 0, 1, 1], [], []>} : vector<48x128xbf16>, vector<128x384xbf16>, vector<48x384xf32> -> vector<48x384xf32>
    %c0_56 = arith.constant 0 : index
    %c0_57 = arith.constant 0 : index
    %c0_58 = arith.constant 0 : index
    %98 = vector.load %arg9[%c0_56, %c0_57, %c0_58] : memref<2x48x1xf32, #tpu.memory_space<vmem>>, vector<1x48x1xf32>
    %99 = vector.shape_cast %98 : vector<1x48x1xf32> to vector<48x1xf32>
    %100 = vector.broadcast %99 : vector<48x1xf32> to vector<48x384xf32>
    %101 = arith.addf %97, %100 : vector<48x384xf32>
    %102 = vector.extract_strided_slice %101 {offsets = [0, 0], sizes = [24, 384], strides = [1, 1]} : vector<48x384xf32> to vector<24x384xf32>
    %103 = math.tanh %102 : vector<24x384xf32>
    %104 = vector.broadcast %67 : vector<24x1xf32> to vector<24x384xf32>
    %105 = arith.mulf %103, %104 : vector<24x384xf32>
    %106 = vector.extract_strided_slice %101 {offsets = [24, 0], sizes = [24, 384], strides = [1, 1]} : vector<48x384xf32> to vector<24x384xf32>
    %107 = arith.subf %60, %106 : vector<24x384xf32>
    %108 = vector.broadcast %67 : vector<24x1xf32> to vector<24x384xf32>
    %109 = arith.mulf %108, %107 : vector<24x384xf32>
    %cst_59 = arith.constant 0.000000e+00 : f32
    %110 = vector.broadcast %cst_59 : f32 to vector<24x384xf32>
    %111 = arith.subf %110, %105 : vector<24x384xf32>
    %112 = math.exp %111 : vector<24x384xf32>
    %113 = arith.mulf %109, %112 : vector<24x384xf32>
    %114 = arith.addf %113, %69 : vector<24x384xf32>
    %cst_60 = arith.constant dense<0.000000e+00> : vector<384xf32>
    %115 = vector.multi_reduction <add>, %105, %cst_60 [0] : vector<24x384xf32> to vector<384xf32>
    %116 = vector.shape_cast %115 : vector<384xf32> to vector<1x384xf32>
    %117 = arith.subf %63, %116 : vector<1x384xf32>
    %118 = arith.mulf %114, %114 : vector<24x384xf32>
    %cst_61 = arith.constant dense<0.000000e+00> : vector<384xf32>
    %119 = vector.multi_reduction <add>, %118, %cst_61 [0] : vector<24x384xf32> to vector<384xf32>
    %120 = vector.shape_cast %119 : vector<384xf32> to vector<1x384xf32>
    %cst_62 = arith.constant -5.000000e-01 : f32
    %121 = vector.broadcast %cst_62 : f32 to vector<1x384xf32>
    %122 = arith.mulf %121, %120 : vector<1x384xf32>
    %cst_63 = arith.constant 22.0545254 : f32
    %123 = vector.broadcast %cst_63 : f32 to vector<1x384xf32>
    %124 = arith.subf %122, %123 : vector<1x384xf32>
    %125 = arith.addf %124, %117 : vector<1x384xf32>
    %c0_64 = arith.constant 0 : index
    %c0_65 = arith.constant 0 : index
    %126 = vector.load %arg10[%c0_64, %c0_65] : memref<1x384xf32, #tpu.memory_space<vmem>>, vector<1x384xf32>
    tpu.vector_store %arg10[%c0_64, %c0_65], %125 {strides = array<i32>} : memref<1x384xf32, #tpu.memory_space<vmem>>, vector<1x384xf32>,
    return
  }
  func.func @transform_0(%arg0: i32) -> (i32, i32) {
    %c0_i32 = arith.constant 0 : i32
    %c0_i32_0 = arith.constant 0 : i32
    return %c0_i32, %arg0 : i32, i32
  }
  func.func @transform_1(%arg0: i32) -> (i32, i32, i32) {
    %c0_i32 = arith.constant 0 : i32
    %c0_i32_0 = arith.constant 0 : i32
    %c0_i32_1 = arith.constant 0 : i32
    %c0_i32_2 = arith.constant 0 : i32
    return %c0_i32, %c0_i32_0, %c0_i32_1 : i32, i32, i32
  }
  func.func @transform_2(%arg0: i32) -> (i32, i32, i32) {
    %c0_i32 = arith.constant 0 : i32
    %c0_i32_0 = arith.constant 0 : i32
    %c0_i32_1 = arith.constant 0 : i32
    %c0_i32_2 = arith.constant 0 : i32
    return %c0_i32, %c0_i32_0, %c0_i32_1 : i32, i32, i32
  }
  func.func @transform_3(%arg0: i32) -> (i32, i32) {
    %c0_i32 = arith.constant 0 : i32
    %c0_i32_0 = arith.constant 0 : i32
    %c0_i32_1 = arith.constant 0 : i32
    return %c0_i32, %c0_i32_0 : i32, i32
  }
  func.func @transform_4(%arg0: i32) -> (i32, i32) {
    %c0_i32 = arith.constant 0 : i32
    %c0_i32_0 = arith.constant 0 : i32
    %c0_i32_1 = arith.constant 0 : i32
    return %c0_i32, %c0_i32_0 : i32, i32
  }
  func.func @transform_5(%arg0: i32) -> (i32, i32, i32) {
    %c0_i32 = arith.constant 0 : i32
    %c0_i32_0 = arith.constant 0 : i32
    %c0_i32_1 = arith.constant 0 : i32
    %c0_i32_2 = arith.constant 0 : i32
    return %c0_i32, %c0_i32_0, %c0_i32_1 : i32, i32, i32
  }
  func.func @transform_6(%arg0: i32) -> (i32, i32, i32) {
    %c0_i32 = arith.constant 0 : i32
    %c0_i32_0 = arith.constant 0 : i32
    %c0_i32_1 = arith.constant 0 : i32
    %c0_i32_2 = arith.constant 0 : i32
    return %c0_i32, %c0_i32_0, %c0_i32_1 : i32, i32, i32
  }
  func.func @transform_7(%arg0: i32) -> (i32, i32, i32) {
    %c0_i32 = arith.constant 0 : i32
    %c0_i32_0 = arith.constant 0 : i32
    %c0_i32_1 = arith.constant 0 : i32
    %c0_i32_2 = arith.constant 0 : i32
    return %c0_i32, %c0_i32_0, %c0_i32_1 : i32, i32, i32
  }
  func.func @transform_8(%arg0: i32) -> (i32, i32, i32) {
    %c0_i32 = arith.constant 0 : i32
    %c0_i32_0 = arith.constant 0 : i32
    %c0_i32_1 = arith.constant 0 : i32
    %c0_i32_2 = arith.constant 0 : i32
    return %c0_i32, %c0_i32_0, %c0_i32_1 : i32, i32, i32
  }
  func.func @transform_9(%arg0: i32) -> (i32, i32) {
    %c0_i32 = arith.constant 0 : i32
    %c0_i32_0 = arith.constant 0 : i32
    return %c0_i32, %arg0 : i32, i32
  }
}

</mosaic_0001>

<llo_original>
// kernel: tpu_custom_call.1
$region0: #{tpu_custom_call.1}
  #allocation0 [shape = 'u32[]', space=smem, size = 0x4, offset = 0x4, fixed_abs, tag = 'smem constant byte address 0x4 - core index']
  #allocation1 [shape = 'u32[144,128]{1,0:T(1,128)}', space=vmem, size = 0x12000, scoped, tag = 'internal scratch']
  %s0 = inlined_call_operand.vmem [shape: f32[56,768], index: 0, kind: input, shape index: {}]
  %s1 = inlined_call_operand.vmem [shape: f32[2,24,1], index: 1, kind: input, shape index: {}]
  %s2 = inlined_call_operand.vmem [shape: bf16[2,128,24], index: 2, kind: input, shape index: {}]
  %s3 = inlined_call_operand.vmem [shape: bf16[256,32], index: 3, kind: input, shape index: {}]
  %s4 = inlined_call_operand.vmem [shape: f32[256,1], index: 4, kind: input, shape index: {}]
  %s5 = inlined_call_operand.vmem [shape: bf16[2,128,128], index: 5, kind: input, shape index: {}]
  %s6 = inlined_call_operand.vmem [shape: f32[2,128,1], index: 6, kind: input, shape index: {}]
  %s7 = inlined_call_operand.vmem [shape: bf16[2,48,128], index: 7, kind: input, shape index: {}]
  %s8 = inlined_call_operand.vmem [shape: f32[2,48,1], index: 8, kind: input, shape index: {}]
  %s9 = inlined_call_operand.hbm [shape: f32[1,768], index: 9, kind: output, shape index: {}]
  %s10 = sld [smem:[#allocation0]]
  $region92: #{tpu_custom_call.1} parent=0
    _
  %s12 = ssub.s32 1, %s10
  %s13 = scalar_select 0, %s12, %s10
  $region1: #{tpu_custom_call.1} parent=0
    #allocation2 [shape = 'u8[172032]{0}', space=vmem, size = 0x2a000, scoped, tag = 'input window, operand 0']
    #allocation3 [shape = 'u8[3072]{0}', space=vmem, size = 0xc00, scoped, tag = 'output window, operand 0']
    #allocation4 [shape = 's32[2]{0}', space=sflag, size = 0x8, scoped, tag = 'scoped memory for tpu_custom_call.1']
    %14 = vsyncpa [#allocation4], 0
    %s15 = scalar_lea.sflag [#allocation4], 1
    %16 = vsyncpa %s15, 0
    loop: start=0, step=1, limit=4
    $region2: #{tpu_custom_call.1} parent=1 // loop_pre_header
      _
    $region3: #{tpu_custom_call.1} parent=1 // loop_header
      %s18 = sphi 0, %s22
      %p19 = scmp.ge.s32.totalorder %s18, 4
      %s28 = sphi 0, %s30
      %s31 = sphi 0, %s28
      %s32 = sphi 0, %s31
      %s48 = sphi 0, %s32
      %s52 = sphi 0, %s52
      %s54 = sphi 0, %s52
      %s55 = sphi 0, %s54
      %s69 = sphi 0, %s55
      %s73 = sphi 0, %s73
      %s75 = sphi 0, %s73
      %s76 = sphi 0, %s75
      %s90 = sphi 0, %s76
      %s94 = sphi 0, %s94
      %s96 = sphi 0, %s94
      %s97 = sphi 0, %s96
      %s111 = sphi 0, %s97
      %s115 = sphi 0, %s115
      %s117 = sphi 0, %s115
      %s118 = sphi 0, %s117
      %s132 = sphi 0, %s118
      %s136 = sphi 0, %s136
      %s138 = sphi 0, %s136
      %s139 = sphi 0, %s138
      %s153 = sphi 0, %s139
      %s157 = sphi 0, %s157
      %s159 = sphi 0, %s157
      %s160 = sphi 0, %s159
      %s174 = sphi 0, %s160
      %s178 = sphi 0, %s178
      %s180 = sphi 0, %s178
      %s181 = sphi 0, %s180
      %s195 = sphi 0, %s181
      %s199 = sphi 0, %s199
      %s201 = sphi 0, %s199
      %s202 = sphi 0, %s201
      %s216 = sphi 0, %s202
      %s222 = sphi 0, %s224
      %s225 = sphi 0, %s222
      %s226 = sphi 0, %s225
      %s242 = sphi 0, %s226
    $region4: #{tpu_custom_call.1} parent=1 // loop_header_branch
      %21 = sbr.rel (%p19) target = $region8
    $region5: #{tpu_custom_call.1} parent=1 // loop_body
      %s23 = ssub.s32 %s18, 1
      %s24 = ssub.s32 %s18, 2
      %s25 = sadd.s32 %s18, 1
      %s26 = ssub.s32 %s18, %s25
      %p27 = scmp.eq.s32.totalorder %s26, 0
      %s29 = sadd.s32 %s28, 1
      %s30 = scalar_select %p27, %s28, %s29
      %p33 = pneg %p27
      %p34 = scmp.eq.s32.totalorder %s18, 1
      %p35 = por %p33, %p34
      %p36 = scmp.ne.s32.totalorder %s28, %s31
      %p37 = scmp.eq.s32.totalorder %s18, 0
      %p38 = por %p36, %p37
      %p39 = scmp.ne.s32.totalorder %s28, %s31
      %p40 = scmp.eq.s32.totalorder %s23, 1
      %p41 = por %p39, %p40
      %p42 = scmp.ne.s32.totalorder %s31, %s32
      %p43 = scmp.eq.s32.totalorder %s23, 0
      %p44 = por %p42, %p43
      %p45 = scmp.ne.s32.totalorder %s31, %s32
      %p46 = scmp.eq.s32.totalorder %s24, 1
      %p47 = por %p45, %p46
      %p49 = scmp.ne.s32.totalorder %s32, %s48
      %p50 = scmp.eq.s32.totalorder %s24, 0
      %p51 = por %p49, %p50
      %s53 = sadd.s32 %s52, 1
      %p56 = scmp.eq.s32.totalorder %s18, 1
      %p57 = scmp.ne.s32.totalorder %s52, %s54
      %p58 = scmp.eq.s32.totalorder %s18, 0
      %p59 = por %p57, %p58
      %p60 = scmp.ne.s32.totalorder %s52, %s54
      %p61 = scmp.eq.s32.totalorder %s23, 1
      %p62 = por %p60, %p61
      %p63 = scmp.ne.s32.totalorder %s54, %s55
      %p64 = scmp.eq.s32.totalorder %s23, 0
      %p65 = por %p63, %p64
      %p66 = scmp.ne.s32.totalorder %s54, %s55
      %p67 = scmp.eq.s32.totalorder %s24, 1
      %p68 = por %p66, %p67
      %p70 = scmp.ne.s32.totalorder %s55, %s69
      %p71 = scmp.eq.s32.totalorder %s24, 0
      %p72 = por %p70, %p71
      %s74 = sadd.s32 %s73, 1
      %p77 = scmp.eq.s32.totalorder %s18, 1
      %p78 = scmp.ne.s32.totalorder %s73, %s75
      %p79 = scmp.eq.s32.totalorder %s18, 0
      %p80 = por %p78, %p79
      %p81 = scmp.ne.s32.totalorder %s73, %s75
      %p82 = scmp.eq.s32.totalorder %s23, 1
      %p83 = por %p81, %p82
      %p84 = scmp.ne.s32.totalorder %s75, %s76
      %p85 = scmp.eq.s32.totalorder %s23, 0
      %p86 = por %p84, %p85
      %p87 = scmp.ne.s32.totalorder %s75, %s76
      %p88 = scmp.eq.s32.totalorder %s24, 1
      %p89 = por %p87, %p88
      %p91 = scmp.ne.s32.totalorder %s76, %s90
      %p92 = scmp.eq.s32.totalorder %s24, 0
      %p93 = por %p91, %p92
      %s95 = sadd.s32 %s94, 1
      %p98 = scmp.eq.s32.totalorder %s18, 1
      %p99 = scmp.ne.s32.totalorder %s94, %s96
      %p100 = scmp.eq.s32.totalorder %s18, 0
      %p101 = por %p99, %p100
      %p102 = scmp.ne.s32.totalorder %s94, %s96
      %p103 = scmp.eq.s32.totalorder %s23, 1
      %p104 = por %p102, %p103
      %p105 = scmp.ne.s32.totalorder %s96, %s97
      %p106 = scmp.eq.s32.totalorder %s23, 0
      %p107 = por %p105, %p106
      %p108 = scmp.ne.s32.totalorder %s96, %s97
      %p109 = scmp.eq.s32.totalorder %s24, 1
      %p110 = por %p108, %p109
      %p112 = scmp.ne.s32.totalorder %s97, %s111
      %p113 = scmp.eq.s32.totalorder %s24, 0
      %p114 = por %p112, %p113
      %s116 = sadd.s32 %s115, 1
      %p119 = scmp.eq.s32.totalorder %s18, 1
      %p120 = scmp.ne.s32.totalorder %s115, %s117
      %p121 = scmp.eq.s32.totalorder %s18, 0
      %p122 = por %p120, %p121
      %p123 = scmp.ne.s32.totalorder %s115, %s117
      %p124 = scmp.eq.s32.totalorder %s23, 1
      %p125 = por %p123, %p124
      %p126 = scmp.ne.s32.totalorder %s117, %s118
      %p127 = scmp.eq.s32.totalorder %s23, 0
      %p128 = por %p126, %p127
      %p129 = scmp.ne.s32.totalorder %s117, %s118
      %p130 = scmp.eq.s32.totalorder %s24, 1
      %p131 = por %p129, %p130
      %p133 = scmp.ne.s32.totalorder %s118, %s132
      %p134 = scmp.eq.s32.totalorder %s24, 0
      %p135 = por %p133, %p134
      %s137 = sadd.s32 %s136, 1
      %p140 = scmp.eq.s32.totalorder %s18, 1
      %p141 = scmp.ne.s32.totalorder %s136, %s138
      %p142 = scmp.eq.s32.totalorder %s18, 0
      %p143 = por %p141, %p142
      %p144 = scmp.ne.s32.totalorder %s136, %s138
      %p145 = scmp.eq.s32.totalorder %s23, 1
      %p146 = por %p144, %p145
      %p147 = scmp.ne.s32.totalorder %s138, %s139
      %p148 = scmp.eq.s32.totalorder %s23, 0
      %p149 = por %p147, %p148
      %p150 = scmp.ne.s32.totalorder %s138, %s139
      %p151 = scmp.eq.s32.totalorder %s24, 1
      %p152 = por %p150, %p151
      %p154 = scmp.ne.s32.totalorder %s139, %s153
      %p155 = scmp.eq.s32.totalorder %s24, 0
      %p156 = por %p154, %p155
      %s158 = sadd.s32 %s157, 1
      %p161 = scmp.eq.s32.totalorder %s18, 1
      %p162 = scmp.ne.s32.totalorder %s157, %s159
      %p163 = scmp.eq.s32.totalorder %s18, 0
      %p164 = por %p162, %p163
      %p165 = scmp.ne.s32.totalorder %s157, %s159
      %p166 = scmp.eq.s32.totalorder %s23, 1
      %p167 = por %p165, %p166
      %p168 = scmp.ne.s32.totalorder %s159, %s160
      %p169 = scmp.eq.s32.totalorder %s23, 0
      %p170 = por %p168, %p169
      %p171 = scmp.ne.s32.totalorder %s159, %s160
      %p172 = scmp.eq.s32.totalorder %s24, 1
      %p173 = por %p171, %p172
      %p175 = scmp.ne.s32.totalorder %s160, %s174
      %p176 = scmp.eq.s32.totalorder %s24, 0
      %p177 = por %p175, %p176
      %s179 = sadd.s32 %s178, 1
      %p182 = scmp.eq.s32.totalorder %s18, 1
      %p183 = scmp.ne.s32.totalorder %s178, %s180
      %p184 = scmp.eq.s32.totalorder %s18, 0
      %p185 = por %p183, %p184
      %p186 = scmp.ne.s32.totalorder %s178, %s180
      %p187 = scmp.eq.s32.totalorder %s23, 1
      %p188 = por %p186, %p187
      %p189 = scmp.ne.s32.totalorder %s180, %s181
      %p190 = scmp.eq.s32.totalorder %s23, 0
      %p191 = por %p189, %p190
      %p192 = scmp.ne.s32.totalorder %s180, %s181
      %p193 = scmp.eq.s32.totalorder %s24, 1
      %p194 = por %p192, %p193
      %p196 = scmp.ne.s32.totalorder %s181, %s195
      %p197 = scmp.eq.s32.totalorder %s24, 0
      %p198 = por %p196, %p197
      %s200 = sadd.s32 %s199, 1
      %p203 = scmp.eq.s32.totalorder %s18, 1
      %p204 = scmp.ne.s32.totalorder %s199, %s201
      %p205 = scmp.eq.s32.totalorder %s18, 0
      %p206 = por %p204, %p205
      %p207 = scmp.ne.s32.totalorder %s199, %s201
      %p208 = scmp.eq.s32.totalorder %s23, 1
      %p209 = por %p207, %p208
      %p210 = scmp.ne.s32.totalorder %s201, %s202
      %p211 = scmp.eq.s32.totalorder %s23, 0
      %p212 = por %p210, %p211
      %p213 = scmp.ne.s32.totalorder %s201, %s202
      %p214 = scmp.eq.s32.totalorder %s24, 1
      %p215 = por %p213, %p214
      %p217 = scmp.ne.s32.totalorder %s202, %s216
      %p218 = scmp.eq.s32.totalorder %s24, 0
      %p219 = por %p217, %p218
      %s220 = ssub.s32 %s18, %s25
      %p221 = scmp.eq.s32.totalorder %s220, 0
      %s223 = sadd.s32 %s222, 1
      %s224 = scalar_select %p221, %s222, %s223
      %p227 = pneg %p221
      %p228 = scmp.eq.s32.totalorder %s18, 1
      %p229 = por %p227, %p228
      %p230 = scmp.ne.s32.totalorder %s222, %s225
      %p231 = scmp.eq.s32.totalorder %s18, 0
      %p232 = por %p230, %p231
      %p233 = scmp.ne.s32.totalorder %s222, %s225
      %p234 = scmp.eq.s32.totalorder %s23, 1
      %p235 = por %p233, %p234
      %p236 = scmp.ne.s32.totalorder %s225, %s226
      %p237 = scmp.eq.s32.totalorder %s23, 0
      %p238 = por %p236, %p237
      %p239 = scmp.ne.s32.totalorder %s225, %s226
      %p240 = scmp.eq.s32.totalorder %s24, 1
      %p241 = por %p239, %p240
      %p243 = scmp.ne.s32.totalorder %s226, %s242
      %p244 = scmp.eq.s32.totalorder %s24, 0
      %p245 = por %p243, %p244
      %p246 = scmp.le.s32.totalorder 1, %s18
      %p247 = scmp.lt.s32.totalorder %s18, 3
      %p248 = pnand %p246, %p247
      %p249 = pneg %p248
      // Predicated region
      $region9: #{tpu_custom_call.1} parent=5 // pred_check
        _
      $region10: #{tpu_custom_call.1} parent=5 // pred_check_branch
        %251 = sbr.rel (%p248) target = $region12
      $region11: #{tpu_custom_call.1} parent=5 // pred_region
        %s252 = ssub.s32 %s18, 1
        // Predicated region
        $region13: #{tpu_custom_call.1} parent=11 // pred_check
          %p253 = pneg %p65
        $region14: #{tpu_custom_call.1} parent=11 // pred_check_branch
          %255 = sbr.rel (%p253) target = $region16
        $region15: #{tpu_custom_call.1} parent=11 // pred_region
          _
        $region16: #{tpu_custom_call.1} parent=11 // pred_fallthru
          _
        // Predicated region
        $region17: #{tpu_custom_call.1} parent=11 // pred_check
          %p256 = pneg %p86
        $region18: #{tpu_custom_call.1} parent=11 // pred_check_branch
          %258 = sbr.rel (%p256) target = $region20
        $region19: #{tpu_custom_call.1} parent=11 // pred_region
          _
        $region20: #{tpu_custom_call.1} parent=11 // pred_fallthru
          _
        // Predicated region
        $region21: #{tpu_custom_call.1} parent=11 // pred_check
          %p259 = pneg %p107
        $region22: #{tpu_custom_call.1} parent=11 // pred_check_branch
          %261 = sbr.rel (%p259) target = $region24
        $region23: #{tpu_custom_call.1} parent=11 // pred_region
          _
        $region24: #{tpu_custom_call.1} parent=11 // pred_fallthru
          _
        // Predicated region
        $region25: #{tpu_custom_call.1} parent=11 // pred_check
          %p262 = pneg %p128
        $region26: #{tpu_custom_call.1} parent=11 // pred_check_branch
          %264 = sbr.rel (%p262) target = $region28
        $region27: #{tpu_custom_call.1} parent=11 // pred_region
          _
        $region28: #{tpu_custom_call.1} parent=11 // pred_fallthru
          _
        // Predicated region
        $region29: #{tpu_custom_call.1} parent=11 // pred_check
          %p265 = pneg %p149
        $region30: #{tpu_custom_call.1} parent=11 // pred_check_branch
          %267 = sbr.rel (%p265) target = $region32
        $region31: #{tpu_custom_call.1} parent=11 // pred_region
          _
        $region32: #{tpu_custom_call.1} parent=11 // pred_fallthru
          _
        // Predicated region
        $region33: #{tpu_custom_call.1} parent=11 // pred_check
          %p268 = pneg %p170
        $region34: #{tpu_custom_call.1} parent=11 // pred_check_branch
          %270 = sbr.rel (%p268) target = $region36
        $region35: #{tpu_custom_call.1} parent=11 // pred_region
          _
        $region36: #{tpu_custom_call.1} parent=11 // pred_fallthru
          _
        // Predicated region
        $region37: #{tpu_custom_call.1} parent=11 // pred_check
          %p271 = pneg %p191
        $region38: #{tpu_custom_call.1} parent=11 // pred_check_branch
          %273 = sbr.rel (%p271) target = $region40
        $region39: #{tpu_custom_call.1} parent=11 // pred_region
          _
        $region40: #{tpu_custom_call.1} parent=11 // pred_fallthru
          _
        // Predicated region
        $region41: #{tpu_custom_call.1} parent=11 // pred_check
          %p274 = pneg %p212
        $region42: #{tpu_custom_call.1} parent=11 // pred_check_branch
          %276 = sbr.rel (%p274) target = $region44
        $region43: #{tpu_custom_call.1} parent=11 // pred_region
          _
        $region44: #{tpu_custom_call.1} parent=11 // pred_fallthru
          _
      $region12: #{tpu_custom_call.1} parent=5 // pred_fallthru
        _
      %p277 = scmp.lt.s32.totalorder %s18, 2
      // Predicated region
      $region45: #{tpu_custom_call.1} parent=5 // pred_check
        %p278 = pneg %p277
      $region46: #{tpu_custom_call.1} parent=5 // pred_check_branch
        %280 = sbr.rel (%p278) target = $region48
      $region47: #{tpu_custom_call.1} parent=5 // pred_region
        // Predicated region
        $region49: #{tpu_custom_call.1} parent=47 // pred_check
          %p281 = pneg %p38
        $region50: #{tpu_custom_call.1} parent=47 // pred_check_branch
          %283 = sbr.rel (%p281) target = $region52
        $region51: #{tpu_custom_call.1} parent=47 // pred_region
          %s284 = sand.u32 %s28, 1
          %s285 = sand.u32 %s28, 1
          %s286 = smul.addr %s285, 168
          %s287 = scalar_lea.vmem [#allocation2], %s286
          %s288 = smul.u32 3, %s18
          %s289 = smul.addr %s288, 8
          %s290 = scalar_lea.vmem %s0, %s289
          // Predicated region
          $region53: #{tpu_custom_call.1} parent=51 // pred_check
            _
          $region54: #{tpu_custom_call.1} parent=51 // pred_check_branch
            %292 = sbr.rel (0) target = $region56
          $region55: #{tpu_custom_call.1} parent=51 // pred_region
            // Predicated region
            $region57: #{tpu_custom_call.1} parent=55 // pred_check
              _
            $region58: #{tpu_custom_call.1} parent=55 // pred_check_branch
              %294 = sbr.rel (0) target = $region60
            $region59: #{tpu_custom_call.1} parent=55 // pred_region
              loop: start=0, step=1, limit=1
              $region61: #{tpu_custom_call.1} parent=59 // loop_pre_header
                _
              $region62: #{tpu_custom_call.1} parent=59 // loop_header
                %s296 = sphi 0, %s300
                %p297 = scmp.ge.s32.totalorder %s296, 1
                %s301 = sphi %s290, %s290
                %s302 = sphi %s287, %s287
              $region63: #{tpu_custom_call.1} parent=59 // loop_header_branch
                %299 = sbr.rel (%p297) target = $region67
              $region64: #{tpu_custom_call.1} parent=59 // loop_body
                %v303 = vld [vmem:[%s301] sm:$0xff]
                %304 = vst [vmem:[%s302] sm:$0xff] %v303
                %v305 = vld [vmem:[%s301 + $0x8] sm:$0xff]
                %306 = vst [vmem:[%s302 + $0x8] sm:$0xff] %v305
                %v307 = vld [vmem:[%s301 + $0x10] sm:$0xff]
                %308 = vst [vmem:[%s302 + $0x10] sm:$0xff] %v307
                %v309 = vld [vmem:[%s301 + $0x30] sm:$0xff]
                %310 = vst [vmem:[%s302 + $0x18] sm:$0xff] %v309
                %v311 = vld [vmem:[%s301 + $0x38] sm:$0xff]
                %312 = vst [vmem:[%s302 + $0x20] sm:$0xff] %v311
                %v313 = vld [vmem:[%s301 + $0x40] sm:$0xff]
                %314 = vst [vmem:[%s302 + $0x28] sm:$0xff] %v313
                %v315 = vld [vmem:[%s301 + $0x60] sm:$0xff]
                %316 = vst [vmem:[%s302 + $0x30] sm:$0xff] %v315
                %v317 = vld [vmem:[%s301 + $0x68] sm:$0xff]
                %318 = vst [vmem:[%s302 + $0x38] sm:$0xff] %v317
                %v319 = vld [vmem:[%s301 + $0x70] sm:$0xff]
                %320 = vst [vmem:[%s302 + $0x40] sm:$0xff] %v319
                %v321 = vld [vmem:[%s301 + $0x90] sm:$0xff]
                %322 = vst [vmem:[%s302 + $0x48] sm:$0xff] %v321
                %v323 = vld [vmem:[%s301 + $0x98] sm:$0xff]
                %324 = vst [vmem:[%s302 + $0x50] sm:$0xff] %v323
                %v325 = vld [vmem:[%s301 + $0xa0] sm:$0xff]
                %326 = vst [vmem:[%s302 + $0x58] sm:$0xff] %v325
                %v327 = vld [vmem:[%s301 + $0xc0] sm:$0xff]
                %328 = vst [vmem:[%s302 + $0x60] sm:$0xff] %v327
                %v329 = vld [vmem:[%s301 + $0xc8] sm:$0xff]
                %330 = vst [vmem:[%s302 + $0x68] sm:$0xff] %v329
                %v331 = vld [vmem:[%s301 + $0xd0] sm:$0xff]
                %332 = vst [vmem:[%s302 + $0x70] sm:$0xff] %v331
                %v333 = vld [vmem:[%s301 + $0xf0] sm:$0xff]
                %334 = vst [vmem:[%s302 + $0x78] sm:$0xff] %v333
                %v335 = vld [vmem:[%s301 + $0xf8] sm:$0xff]
                %336 = vst [vmem:[%s302 + $0x80] sm:$0xff] %v335
                %v337 = vld [vmem:[%s301 + $0x100] sm:$0xff]
                %338 = vst [vmem:[%s302 + $0x88] sm:$0xff] %v337
                %v339 = vld [vmem:[%s301 + $0x120] sm:$0xff]
                %340 = vst [vmem:[%s302 + $0x90] sm:$0xff] %v339
                %v341 = vld [vmem:[%s301 + $0x128] sm:$0xff]
                %342 = vst [vmem:[%s302 + $0x98] sm:$0xff] %v341
                %v343 = vld [vmem:[%s301 + $0x130] sm:$0xff]
                %344 = vst [vmem:[%s302 + $0xa0] sm:$0xff] %v343
              $region65: #{tpu_custom_call.1} parent=59 // loop_footer
                %s300 = sadd.s32 1, %s296
              $region66: #{tpu_custom_call.1} parent=59 // loop_footer_branch
                %295 = sbr.rel target = $region62
              $region67: #{tpu_custom_call.1} parent=59 // loop_exit
                _
            $region60: #{tpu_custom_call.1} parent=55 // pred_fallthru
              _
            // Predicated region
            $region68: #{tpu_custom_call.1} parent=55 // pred_check
              _
            $region69: #{tpu_custom_call.1} parent=55 // pred_check_branch
              %346 = sbr.rel target = $region71
            $region70: #{tpu_custom_call.1} parent=55 // pred_region
              _
            $region71: #{tpu_custom_call.1} parent=55 // pred_fallthru
              _
          $region56: #{tpu_custom_call.1} parent=51 // pred_fallthru
            _
          %347 = vnop
        $region52: #{tpu_custom_call.1} parent=47 // pred_fallthru
          _
      $region48: #{tpu_custom_call.1} parent=5 // pred_fallthru
        _
      %p348 = scmp.le.s32.totalorder 1, %s18
      %p349 = scmp.lt.s32.totalorder %s18, 3
      %p350 = pnand %p348, %p349
      %p351 = pneg %p350
      // Predicated region
      $region72: #{tpu_custom_call.1} parent=5 // pred_check
        _
      $region73: #{tpu_custom_call.1} parent=5 // pred_check_branch
        %353 = sbr.rel (%p350) target = $region75
      $region74: #{tpu_custom_call.1} parent=5 // pred_region
        %s354 = ssub.s32 %s18, 1
        %s355 = sand.u32 %s31, 1
        %s356 = sand.u32 %s31, 1
        %s357 = smul.addr %s356, 168
        %s358 = scalar_lea.vmem [#allocation2], %s357
        // Predicated region
        $region76: #{tpu_custom_call.1} parent=74 // pred_check
          %p359 = pneg %p44
        $region77: #{tpu_custom_call.1} parent=74 // pred_check_branch
          %361 = sbr.rel (%p359) target = $region79
        $region78: #{tpu_custom_call.1} parent=74 // pred_region
          _
        $region79: #{tpu_custom_call.1} parent=74 // pred_fallthru
          _
        %s362 = sand.u32 %s31, 1
        %s363 = sand.u32 %s31, 1
        %s364 = smul.addr %s363, 168
        %s365 = scalar_lea.vmem [#allocation2], %s364
        %p366 = pneg %p44
        %p367 = pneg %p41
        %p368 = pneg %p65
        %p369 = pneg %p62
        %p370 = pneg %p86
        %p371 = pneg %p83
        %p372 = pneg %p107
        %p373 = pneg %p104
        %p374 = pneg %p128
        %p375 = pneg %p125
        %p376 = pneg %p149
        %p377 = pneg %p146
        %p378 = pneg %p170
        %p379 = pneg %p167
        %p380 = pneg %p191
        %p381 = pneg %p188
        %p382 = pneg %p212
        %p383 = pneg %p209
        %p384 = pneg %p238
        %p385 = pneg %p235
        %s386 = sand.u32 %s225, 1
        %s387 = scalar_lea.sflag [#allocation4], %s386
        %s388 = sand.u32 %s225, 1
        %s389 = smul.addr %s388, 3
        %s390 = scalar_lea.vmem [#allocation3], %s389
        %s391 = smul.u32 3, %s23
        %s392 = smul.u32 3, %s23
        %v394 = vld [vmem:[%s358] sm:$0xff]
        %v395 = vld [vmem:[%s358 + $0x8] sm:$0xff]
        %v396 = vld [vmem:[%s358 + $0x10] sm:$0xff]
        %v397 = vld [vmem:[%s358 + $0x18] sm:$0xff]
        %v398 = vld [vmem:[%s358 + $0x20] sm:$0xff]
        %v399 = vld [vmem:[%s358 + $0x28] sm:$0xff]
        %v400 = vld [vmem:[%s358 + $0x30] sm:$0xff]
        %v401 = vld [vmem:[%s358 + $0x38] sm:$0xff]
        %v402 = vld [vmem:[%s358 + $0x40] sm:$0xff]
        %v403 = vld [vmem:[%s358 + $0x48] sm:$0xff]
        %v404 = vld [vmem:[%s358 + $0x50] sm:$0xff]
        %v405 = vld [vmem:[%s358 + $0x58] sm:$0xff]
        %v406 = vld [vmem:[%s358 + $0x60] sm:$0xff]
        %v407 = vld [vmem:[%s358 + $0x68] sm:$0xff]
        %v408 = vld [vmem:[%s358 + $0x70] sm:$0xff]
        %v409 = vld [vmem:[%s358 + $0x78] sm:$0xff]
        %v410 = vld [vmem:[%s358 + $0x80] sm:$0xff]
        %v411 = vld [vmem:[%s358 + $0x88] sm:$0xff]
        %v412 = vld [vmem:[%s358 + $0x90] sm:$0xff]
        %v413 = vld [vmem:[%s358 + $0x98] sm:$0xff]
        %v414 = vld [vmem:[%s358 + $0xa0] sm:$0xff]
        %v415 = vld [vmem:[%s3] sm:$0xf]
        %v416 = vld [vmem:[%s3 + $0x4] sm:$0xf]
        %v417 = vld [vmem:[%s3 + $0x8] sm:$0xf]
        %v418 = vld [vmem:[%s3 + $0xc] sm:$0xf]
        %v419 = vld [vmem:[%s3 + $0x10] sm:$0xf]
        %v420 = vld [vmem:[%s3 + $0x14] sm:$0xf]
        %v421 = vld [vmem:[%s3 + $0x18] sm:$0xf]
        %v422 = vld [vmem:[%s3 + $0x1c] sm:$0xf]
        %v423 = vld [vmem:[%s3 + $0x20] sm:$0xf]
        %v424 = vld [vmem:[%s3 + $0x24] sm:$0xf]
        %v425 = vld [vmem:[%s3 + $0x28] sm:$0xf]
        %v426 = vld [vmem:[%s3 + $0x2c] sm:$0xf]
        %v427 = vld [vmem:[%s3 + $0x30] sm:$0xf]
        %v428 = vld [vmem:[%s3 + $0x34] sm:$0xf]
        %v429 = vld [vmem:[%s3 + $0x38] sm:$0xf]
        %v430 = vld [vmem:[%s3 + $0x3c] sm:$0xf]
        %v431 = vld [vmem:[%s3 + $0x40] sm:$0xf]
        %v432 = vld [vmem:[%s3 + $0x44] sm:$0xf]
        %v433 = vld [vmem:[%s3 + $0x48] sm:$0xf]
        %v434 = vld [vmem:[%s3 + $0x4c] sm:$0xf]
        %v435 = vld [vmem:[%s3 + $0x50] sm:$0xf]
        %v436 = vld [vmem:[%s3 + $0x54] sm:$0xf]
        %v437 = vld [vmem:[%s3 + $0x58] sm:$0xf]
        %v438 = vld [vmem:[%s3 + $0x5c] sm:$0xf]
        %v439 = vld [vmem:[%s3 + $0x60] sm:$0xf]
        %v440 = vld [vmem:[%s3 + $0x64] sm:$0xf]
        %v441 = vld [vmem:[%s3 + $0x68] sm:$0xf]
        %v442 = vld [vmem:[%s3 + $0x6c] sm:$0xf]
        %v443 = vld [vmem:[%s3 + $0x70] sm:$0xf]
        %v444 = vld [vmem:[%s3 + $0x74] sm:$0xf]
        %v445 = vld [vmem:[%s3 + $0x78] sm:$0xf]
        %v446 = vld [vmem:[%s3 + $0x7c] sm:$0xf]
        %v447 = vpack.c.bf16 %v406, %v403
        %v448 = vpack.c.bf16 %v407, %v404
        %v449 = vpack.c.bf16 %v408, %v405
        %v450 = vpack.c.bf16 %v412, %v409
        %v451 = vpack.c.bf16 %v413, %v410
        %v452 = vpack.c.bf16 %v414, %v411
        %v453 = vld [vmem:[%s4] sm:$0xff]
        %v454 = vld [vmem:[%s4 + $0x8] sm:$0xff]
        %v455 = vld [vmem:[%s4 + $0x10] sm:$0xff]
        %v456 = vld [vmem:[%s4 + $0x18] sm:$0xff]
        %v457 = vld [vmem:[%s4 + $0x20] sm:$0xff]
        %v458 = vld [vmem:[%s4 + $0x28] sm:$0xff]
        %v459 = vld [vmem:[%s4 + $0x30] sm:$0xff]
        %v460 = vld [vmem:[%s4 + $0x38] sm:$0xff]
        %v461 = vld [vmem:[%s4 + $0x40] sm:$0xff]
        %v462 = vld [vmem:[%s4 + $0x48] sm:$0xff]
        %v463 = vld [vmem:[%s4 + $0x50] sm:$0xff]
        %v464 = vld [vmem:[%s4 + $0x58] sm:$0xff]
        %v465 = vld [vmem:[%s4 + $0x60] sm:$0xff]
        %v466 = vld [vmem:[%s4 + $0x68] sm:$0xff]
        %v467 = vld [vmem:[%s4 + $0x70] sm:$0xff]
        %v468 = vld [vmem:[%s4 + $0x78] sm:$0xff]
        %v469 = vld [vmem:[%s4 + $0x80] sm:$0xff]
        %v470 = vld [vmem:[%s4 + $0x88] sm:$0xff]
        %v471 = vld [vmem:[%s4 + $0x90] sm:$0xff]
        %v472 = vld [vmem:[%s4 + $0x98] sm:$0xff]
        %v473 = vld [vmem:[%s4 + $0xa0] sm:$0xff]
        %v474 = vld [vmem:[%s4 + $0xa8] sm:$0xff]
        %v475 = vld [vmem:[%s4 + $0xb0] sm:$0xff]
        %v476 = vld [vmem:[%s4 + $0xb8] sm:$0xff]
        %v477 = vld [vmem:[%s4 + $0xc0] sm:$0xff]
        %v478 = vld [vmem:[%s4 + $0xc8] sm:$0xff]
        %v479 = vld [vmem:[%s4 + $0xd0] sm:$0xff]
        %v480 = vld [vmem:[%s4 + $0xd8] sm:$0xff]
        %v481 = vld [vmem:[%s4 + $0xe0] sm:$0xff]
        %v482 = vld [vmem:[%s4 + $0xe8] sm:$0xff]
        %v483 = vld [vmem:[%s4 + $0xf0] sm:$0xff]
        %v484 = vld [vmem:[%s4 + $0xf8] sm:$0xff]
        %486 = vset.pattern.permute.xlu0 0
        %487 = vperm.xlu0 %486, %v453
        %v488 = vpop.permute.xlu0 %487
        %491 = vset.pattern.permute.xlu0 0
        %492 = vperm.xlu0 %491, %v454
        %v493 = vpop.permute.xlu0 %492
        %496 = vset.pattern.permute.xlu0 0
        %497 = vperm.xlu0 %496, %v455
        %v498 = vpop.permute.xlu0 %497
        %501 = vset.pattern.permute.xlu0 0
        %502 = vperm.xlu0 %501, %v456
        %v503 = vpop.permute.xlu0 %502
        %506 = vset.pattern.permute.xlu0 0
        %507 = vperm.xlu0 %506, %v457
        %v508 = vpop.permute.xlu0 %507
        %511 = vset.pattern.permute.xlu0 0
        %512 = vperm.xlu0 %511, %v458
        %v513 = vpop.permute.xlu0 %512
        %516 = vset.pattern.permute.xlu0 0
        %517 = vperm.xlu0 %516, %v459
        %v518 = vpop.permute.xlu0 %517
        %521 = vset.pattern.permute.xlu0 0
        %522 = vperm.xlu0 %521, %v460
        %v523 = vpop.permute.xlu0 %522
        %526 = vset.pattern.permute.xlu0 0
        %527 = vperm.xlu0 %526, %v461
        %v528 = vpop.permute.xlu0 %527
        %531 = vset.pattern.permute.xlu0 0
        %532 = vperm.xlu0 %531, %v462
        %v533 = vpop.permute.xlu0 %532
        %536 = vset.pattern.permute.xlu0 0
        %537 = vperm.xlu0 %536, %v463
        %v538 = vpop.permute.xlu0 %537
        %541 = vset.pattern.permute.xlu0 0
        %542 = vperm.xlu0 %541, %v464
        %v543 = vpop.permute.xlu0 %542
        %546 = vset.pattern.permute.xlu0 0
        %547 = vperm.xlu0 %546, %v465
        %v548 = vpop.permute.xlu0 %547
        %551 = vset.pattern.permute.xlu0 0
        %552 = vperm.xlu0 %551, %v466
        %v553 = vpop.permute.xlu0 %552
        %556 = vset.pattern.permute.xlu0 0
        %557 = vperm.xlu0 %556, %v467
        %v558 = vpop.permute.xlu0 %557
        %561 = vset.pattern.permute.xlu0 0
        %562 = vperm.xlu0 %561, %v468
        %v563 = vpop.permute.xlu0 %562
        %566 = vset.pattern.permute.xlu0 0
        %567 = vperm.xlu0 %566, %v469
        %v568 = vpop.permute.xlu0 %567
        %571 = vset.pattern.permute.xlu0 0
        %572 = vperm.xlu0 %571, %v470
        %v573 = vpop.permute.xlu0 %572
        %576 = vset.pattern.permute.xlu0 0
        %577 = vperm.xlu0 %576, %v471
        %v578 = vpop.permute.xlu0 %577
        %581 = vset.pattern.permute.xlu0 0
        %582 = vperm.xlu0 %581, %v472
        %v583 = vpop.permute.xlu0 %582
        %586 = vset.pattern.permute.xlu0 0
        %587 = vperm.xlu0 %586, %v473
        %v588 = vpop.permute.xlu0 %587
        %591 = vset.pattern.permute.xlu0 0
        %592 = vperm.xlu0 %591, %v474
        %v593 = vpop.permute.xlu0 %592
        %596 = vset.pattern.permute.xlu0 0
        %597 = vperm.xlu0 %596, %v475
        %v598 = vpop.permute.xlu0 %597
        %601 = vset.pattern.permute.xlu0 0
        %602 = vperm.xlu0 %601, %v476
        %v603 = vpop.permute.xlu0 %602
        %606 = vset.pattern.permute.xlu0 0
        %607 = vperm.xlu0 %606, %v477
        %v608 = vpop.permute.xlu0 %607
        %611 = vset.pattern.permute.xlu0 0
        %612 = vperm.xlu0 %611, %v478
        %v613 = vpop.permute.xlu0 %612
        %616 = vset.pattern.permute.xlu0 0
        %617 = vperm.xlu0 %616, %v479
        %v618 = vpop.permute.xlu0 %617
        %621 = vset.pattern.permute.xlu0 0
        %622 = vperm.xlu0 %621, %v480
        %v623 = vpop.permute.xlu0 %622
        %626 = vset.pattern.permute.xlu0 0
        %627 = vperm.xlu0 %626, %v481
        %v628 = vpop.permute.xlu0 %627
        %631 = vset.pattern.permute.xlu0 0
        %632 = vperm.xlu0 %631, %v482
        %v633 = vpop.permute.xlu0 %632
        %636 = vset.pattern.permute.xlu0 0
        %637 = vperm.xlu0 %636, %v483
        %v638 = vpop.permute.xlu0 %637
        %641 = vset.pattern.permute.xlu0 0
        %642 = vperm.xlu0 %641, %v484
        %v643 = vpop.permute.xlu0 %642
        %v677 = vunpack.c.l.b16 %v415
        %v678 = vunpack.c.l.b16 %v416
        %v679 = vunpack.c.l.b16 %v417
        %v680 = vunpack.c.l.b16 %v418
        %v681 = vunpack.c.l.b16 %v419
        %v682 = vunpack.c.l.b16 %v420
        %v683 = vunpack.c.l.b16 %v421
        %v684 = vunpack.c.l.b16 %v422
        %v685 = vunpack.c.l.b16 %v423
        %v686 = vunpack.c.l.b16 %v424
        %v687 = vunpack.c.l.b16 %v425
        %v688 = vunpack.c.l.b16 %v426
        %v689 = vunpack.c.l.b16 %v427
        %v690 = vunpack.c.l.b16 %v428
        %v691 = vunpack.c.l.b16 %v429
        %v692 = vunpack.c.l.b16 %v430
        %v693 = vunpack.c.l.b16 %v431
        %v694 = vunpack.c.l.b16 %v432
        %v695 = vunpack.c.l.b16 %v433
        %v696 = vunpack.c.l.b16 %v434
        %v697 = vunpack.c.l.b16 %v435
        %v698 = vunpack.c.l.b16 %v436
        %v699 = vunpack.c.l.b16 %v437
        %v700 = vunpack.c.l.b16 %v438
        %v701 = vunpack.c.l.b16 %v439
        %v702 = vunpack.c.l.b16 %v440
        %v703 = vunpack.c.l.b16 %v441
        %v704 = vunpack.c.l.b16 %v442
        %v705 = vunpack.c.l.b16 %v443
        %v706 = vunpack.c.l.b16 %v444
        %v707 = vunpack.c.l.b16 %v445
        %v708 = vunpack.c.l.b16 %v446
        %v709 = vpack.c.b16 %v678, %v677
        %v710 = vpack.c.b16 %v680, %v679
        %v711 = vpack.c.b16 %v682, %v681
        %v712 = vpack.c.b16 %v684, %v683
        %v713 = vpack.c.b16 %v686, %v685
        %v714 = vpack.c.b16 %v688, %v687
        %v715 = vpack.c.b16 %v690, %v689
        %v716 = vpack.c.b16 %v692, %v691
        %v717 = vpack.c.b16 %v694, %v693
        %v718 = vpack.c.b16 %v696, %v695
        %v719 = vpack.c.b16 %v698, %v697
        %v720 = vpack.c.b16 %v700, %v699
        %v721 = vpack.c.b16 %v702, %v701
        %v722 = vpack.c.b16 %v704, %v703
        %v723 = vpack.c.b16 %v706, %v705
        %v724 = vpack.c.b16 %v708, %v707
        %vm725 = vcmask 261120
        %v727 = vsel %vm725, %v709, 0
        %v730 = vsel %vm725, %v710, 0
        %v733 = vsel %vm725, %v711, 0
        %v736 = vsel %vm725, %v712, 0
        %v739 = vsel %vm725, %v713, 0
        %v742 = vsel %vm725, %v714, 0
        %v745 = vsel %vm725, %v715, 0
        %v748 = vsel %vm725, %v716, 0
        %v751 = vsel %vm725, %v717, 0
        %v754 = vsel %vm725, %v718, 0
        %v757 = vsel %vm725, %v719, 0
        %v760 = vsel %vm725, %v720, 0
        %v763 = vsel %vm725, %v721, 0
        %v766 = vsel %vm725, %v722, 0
        %v769 = vsel %vm725, %v723, 0
        %v772 = vsel %vm725, %v724, 0
        %774 = vmatprep.subr.bf16.mxu0 %v448
        %775 = vmatpush1.bf16.msra.mxu0 %v447
        %776 = vmatprep.subr.bf16.mxu0 %v451
        %777 = vmatpush1.bf16.msra.mxu0 %v450
        %778 = vmatprep.subr.bf16.mxu0 0
        %779 = vmatpush1.bf16.msra.mxu0 0
        %780 = vmatprep.subr.bf16.mxu0 0
        %781 = vmatpush1.bf16.msra.mxu0 0
        %782 = vmatprep.subr.bf16.mxu0 0
        %783 = vmatpush1.bf16.msra.mxu0 0
        %784 = vmatprep.subr.bf16.mxu0 0
        %785 = vmatpush1.bf16.msra.mxu0 0
        %786 = vmatprep.subr.bf16.mxu0 0
        %787 = vmatpush1.bf16.msra.mxu0 0
        %788 = vmatprep.subr.bf16.mxu0 0
        %789 = vmatpush1.bf16.msra.mxu0 0
        %790 = vmatprep.subr.bf16.mxu0 0
        %791 = vmatpush1.bf16.msra.mxu0 0
        %792 = vmatprep.subr.bf16.mxu0 0
        %793 = vmatpush1.bf16.msra.mxu0 0
        %794 = vmatprep.subr.bf16.mxu0 0
        %795 = vmatpush1.bf16.msra.mxu0 0
        %796 = vmatprep.subr.bf16.mxu0 0
        %797 = vmatpush1.bf16.msra.mxu0 0
        %798 = vmatprep.subr.bf16.mxu0 0
        %799 = vmatpush1.bf16.msra.mxu0 0
        %800 = vmatprep.subr.bf16.mxu0 0
        %801 = vmatpush1.bf16.msra.mxu0 0
        %802 = vmatprep.subr.bf16.mxu0 0
        %803 = vmatpush1.bf16.msra.mxu0 0
        %804 = vmatprep.subr.bf16.mxu0 0
        %805 = vmatpush1.bf16.msra.mxu0 0
        %806 = vmatprep.mubr.bf16.mxu0 0
        %807 = vmatmul.mubr.bf16.gmra.mrb[0].mxu0 %v727
        %v808 = vpop.f32.mrb[0].mxu0
        %v809 = vadd.f32 %v488, %v808
        %v810 = vpop.f32.mrb[0].mxu0
        %v811 = vadd.f32 %v488, %v810
        %v812 = vpop.f32.mrb[0].mxu0
        %v813 = vadd.f32 %v493, %v812
        %v814 = vpop.f32.mrb[0].mxu0
        %v815 = vadd.f32 %v493, %v814
        %816 = vmatprep.mubr.bf16.mxu0 0
        %817 = vmatmul.mubr.bf16.gmra.mrb[0].mxu0 %v730
        %v818 = vpop.f32.mrb[0].mxu0
        %v819 = vadd.f32 %v498, %v818
        %v820 = vpop.f32.mrb[0].mxu0
        %v821 = vadd.f32 %v498, %v820
        %v822 = vpop.f32.mrb[0].mxu0
        %v823 = vadd.f32 %v503, %v822
        %v824 = vpop.f32.mrb[0].mxu0
        %v825 = vadd.f32 %v503, %v824
        %826 = vmatprep.mubr.bf16.mxu0 0
        %827 = vmatmul.mubr.bf16.gmra.mrb[0].mxu0 %v733
        %v828 = vpop.f32.mrb[0].mxu0
        %v829 = vadd.f32 %v508, %v828
        %v830 = vpop.f32.mrb[0].mxu0
        %v831 = vadd.f32 %v508, %v830
        %v832 = vpop.f32.mrb[0].mxu0
        %v833 = vadd.f32 %v513, %v832
        %v834 = vpop.f32.mrb[0].mxu0
        %v835 = vadd.f32 %v513, %v834
        %836 = vmatprep.mubr.bf16.mxu0 0
        %837 = vmatmul.mubr.bf16.gmra.mrb[0].mxu0 %v736
        %v838 = vpop.f32.mrb[0].mxu0
        %v839 = vadd.f32 %v518, %v838
        %v840 = vpop.f32.mrb[0].mxu0
        %v841 = vadd.f32 %v518, %v840
        %v842 = vpop.f32.mrb[0].mxu0
        %v843 = vadd.f32 %v523, %v842
        %v844 = vpop.f32.mrb[0].mxu0
        %v845 = vadd.f32 %v523, %v844
        %846 = vmatprep.mubr.bf16.mxu0 0
        %847 = vmatmul.mubr.bf16.gmra.mrb[0].mxu0 %v739
        %v848 = vpop.f32.mrb[0].mxu0
        %v849 = vadd.f32 %v528, %v848
        %v850 = vpop.f32.mrb[0].mxu0
        %v851 = vadd.f32 %v528, %v850
        %v852 = vpop.f32.mrb[0].mxu0
        %v853 = vadd.f32 %v533, %v852
        %v854 = vpop.f32.mrb[0].mxu0
        %v855 = vadd.f32 %v533, %v854
        %856 = vmatprep.mubr.bf16.mxu0 0
        %857 = vmatmul.mubr.bf16.gmra.mrb[0].mxu0 %v742
        %v858 = vpop.f32.mrb[0].mxu0
        %v859 = vadd.f32 %v538, %v858
        %v860 = vpop.f32.mrb[0].mxu0
        %v861 = vadd.f32 %v538, %v860
        %v862 = vpop.f32.mrb[0].mxu0
        %v863 = vadd.f32 %v543, %v862
        %v864 = vpop.f32.mrb[0].mxu0
        %v865 = vadd.f32 %v543, %v864
        %866 = vmatprep.mubr.bf16.mxu0 0
        %867 = vmatmul.mubr.bf16.gmra.mrb[0].mxu0 %v745
        %v868 = vpop.f32.mrb[0].mxu0
        %v869 = vadd.f32 %v548, %v868
        %v870 = vpop.f32.mrb[0].mxu0
        %v871 = vadd.f32 %v548, %v870
        %v872 = vpop.f32.mrb[0].mxu0
        %v873 = vadd.f32 %v553, %v872
        %v874 = vpop.f32.mrb[0].mxu0
        %v875 = vadd.f32 %v553, %v874
        %876 = vmatprep.mubr.bf16.mxu0 0
        %877 = vmatmul.mubr.bf16.gmra.mrb[0].mxu0 %v748
        %v878 = vpop.f32.mrb[0].mxu0
        %v879 = vadd.f32 %v558, %v878
        %v880 = vpop.f32.mrb[0].mxu0
        %v881 = vadd.f32 %v558, %v880
        %v882 = vpop.f32.mrb[0].mxu0
        %v883 = vadd.f32 %v563, %v882
        %v884 = vpop.f32.mrb[0].mxu0
        %v885 = vadd.f32 %v563, %v884
        %886 = vmatprep.mubr.bf16.mxu0 0
        %887 = vmatmul.mubr.bf16.gmra.mrb[0].mxu0 %v751
        %v888 = vpop.f32.mrb[0].mxu0
        %v889 = vadd.f32 %v568, %v888
        %v890 = vpop.f32.mrb[0].mxu0
        %v891 = vadd.f32 %v568, %v890
        %v892 = vpop.f32.mrb[0].mxu0
        %v893 = vadd.f32 %v573, %v892
        %v894 = vpop.f32.mrb[0].mxu0
        %v895 = vadd.f32 %v573, %v894
        %896 = vmatprep.mubr.bf16.mxu0 0
        %897 = vmatmul.mubr.bf16.gmra.mrb[0].mxu0 %v754
        %v898 = vpop.f32.mrb[0].mxu0
        %v899 = vadd.f32 %v578, %v898
        %v900 = vpop.f32.mrb[0].mxu0
        %v901 = vadd.f32 %v578, %v900
        %v902 = vpop.f32.mrb[0].mxu0
        %v903 = vadd.f32 %v583, %v902
        %v904 = vpop.f32.mrb[0].mxu0
        %v905 = vadd.f32 %v583, %v904
        %906 = vmatprep.mubr.bf16.mxu0 0
        %907 = vmatmul.mubr.bf16.gmra.mrb[0].mxu0 %v757
        %v908 = vpop.f32.mrb[0].mxu0
        %v909 = vadd.f32 %v588, %v908
        %v910 = vpop.f32.mrb[0].mxu0
        %v911 = vadd.f32 %v588, %v910
        %v912 = vpop.f32.mrb[0].mxu0
        %v913 = vadd.f32 %v593, %v912
        %v914 = vpop.f32.mrb[0].mxu0
        %v915 = vadd.f32 %v593, %v914
        %916 = vmatprep.mubr.bf16.mxu0 0
        %917 = vmatmul.mubr.bf16.gmra.mrb[0].mxu0 %v760
        %v918 = vpop.f32.mrb[0].mxu0
        %v919 = vadd.f32 %v598, %v918
        %v920 = vpop.f32.mrb[0].mxu0
        %v921 = vadd.f32 %v598, %v920
        %v922 = vpop.f32.mrb[0].mxu0
        %v923 = vadd.f32 %v603, %v922
        %v924 = vpop.f32.mrb[0].mxu0
        %v925 = vadd.f32 %v603, %v924
        %926 = vmatprep.mubr.bf16.mxu0 0
        %927 = vmatmul.mubr.bf16.gmra.mrb[0].mxu0 %v763
        %v928 = vpop.f32.mrb[0].mxu0
        %v929 = vadd.f32 %v608, %v928
        %v930 = vpop.f32.mrb[0].mxu0
        %v931 = vadd.f32 %v608, %v930
        %v932 = vpop.f32.mrb[0].mxu0
        %v933 = vadd.f32 %v613, %v932
        %v934 = vpop.f32.mrb[0].mxu0
        %v935 = vadd.f32 %v613, %v934
        %936 = vmatprep.mubr.bf16.mxu0 0
        %937 = vmatmul.mubr.bf16.gmra.mrb[0].mxu0 %v766
        %v938 = vpop.f32.mrb[0].mxu0
        %v939 = vadd.f32 %v618, %v938
        %v940 = vpop.f32.mrb[0].mxu0
        %v941 = vadd.f32 %v618, %v940
        %v942 = vpop.f32.mrb[0].mxu0
        %v943 = vadd.f32 %v623, %v942
        %v944 = vpop.f32.mrb[0].mxu0
        %v945 = vadd.f32 %v623, %v944
        %946 = vmatprep.mubr.bf16.mxu0 0
        %947 = vmatmul.mubr.bf16.gmra.mrb[0].mxu0 %v769
        %v948 = vpop.f32.mrb[0].mxu0
        %v949 = vadd.f32 %v628, %v948
        %v950 = vpop.f32.mrb[0].mxu0
        %v951 = vadd.f32 %v628, %v950
        %v952 = vpop.f32.mrb[0].mxu0
        %v953 = vadd.f32 %v633, %v952
        %v954 = vpop.f32.mrb[0].mxu0
        %v955 = vadd.f32 %v633, %v954
        %956 = vmatprep.mubr.bf16.mxu0 0
        %957 = vmatmul.mubr.bf16.gmra.mrb[0].mxu0 %v772
        %v958 = vpop.f32.mrb[0].mxu0
        %v959 = vadd.f32 %v638, %v958
        %v960 = vpop.f32.mrb[0].mxu0
        %v961 = vadd.f32 %v638, %v960
        %v962 = vpop.f32.mrb[0].mxu0
        %v963 = vadd.f32 %v643, %v962
        %v964 = vpop.f32.mrb[0].mxu0
        %v965 = vadd.f32 %v643, %v964
        %966 = vdwg.mxu0
        %967 = vmatprep.subr.bf16.mxu0 0
        %968 = vmatpush1.bf16.msra.mxu0 %v449
        %969 = vmatprep.subr.bf16.mxu0 0
        %970 = vmatpush1.bf16.msra.mxu0 %v452
        %971 = vmatprep.subr.bf16.mxu0 0
        %972 = vmatpush1.bf16.msra.mxu0 0
        %973 = vmatprep.subr.bf16.mxu0 0
        %974 = vmatpush1.bf16.msra.mxu0 0
        %975 = vmatprep.subr.bf16.mxu0 0
        %976 = vmatpush1.bf16.msra.mxu0 0
        %977 = vmatprep.subr.bf16.mxu0 0
        %978 = vmatpush1.bf16.msra.mxu0 0
        %979 = vmatprep.subr.bf16.mxu0 0
        %980 = vmatpush1.bf16.msra.mxu0 0
        %981 = vmatprep.subr.bf16.mxu0 0
        %982 = vmatpush1.bf16.msra.mxu0 0
        %983 = vmatprep.subr.bf16.mxu0 0
        %984 = vmatpush1.bf16.msra.mxu0 0
        %985 = vmatprep.subr.bf16.mxu0 0
        %986 = vmatpush1.bf16.msra.mxu0 0
        %987 = vmatprep.subr.bf16.mxu0 0
        %988 = vmatpush1.bf16.msra.mxu0 0
        %989 = vmatprep.subr.bf16.mxu0 0
        %990 = vmatpush1.bf16.msra.mxu0 0
        %991 = vmatprep.subr.bf16.mxu0 0
        %992 = vmatpush1.bf16.msra.mxu0 0
        %993 = vmatprep.subr.bf16.mxu0 0
        %994 = vmatpush1.bf16.msra.mxu0 0
        %995 = vmatprep.subr.bf16.mxu0 0
        %996 = vmatpush1.bf16.msra.mxu0 0
        %997 = vmatprep.subr.bf16.mxu0 0
        %998 = vmatpush1.bf16.msra.mxu0 0
        %999 = vmatprep.mubr.bf16.mxu0 0
        %1000 = vmatmul.mubr.bf16.gmra.mrb[0].mxu0 %v727
        %v1001 = vpop.f32.mrb[0].mxu0
        %v1002 = vadd.f32 %v488, %v1001
        %v1003 = vpop.f32.mrb[0].mxu0
        %v1004 = vpop.f32.mrb[0].mxu0
        %v1005 = vadd.f32 %v493, %v1004
        %v1006 = vpop.f32.mrb[0].mxu0
        %1007 = vmatprep.mubr.bf16.mxu0 0
        %1008 = vmatmul.mubr.bf16.gmra.mrb[0].mxu0 %v730
        %v1009 = vpop.f32.mrb[0].mxu0
        %v1010 = vadd.f32 %v498, %v1009
        %v1011 = vpop.f32.mrb[0].mxu0
        %v1012 = vpop.f32.mrb[0].mxu0
        %v1013 = vadd.f32 %v503, %v1012
        %v1014 = vpop.f32.mrb[0].mxu0
        %1015 = vmatprep.mubr.bf16.mxu0 0
        %1016 = vmatmul.mubr.bf16.gmra.mrb[0].mxu0 %v733
        %v1017 = vpop.f32.mrb[0].mxu0
        %v1018 = vadd.f32 %v508, %v1017
        %v1019 = vpop.f32.mrb[0].mxu0
        %v1020 = vpop.f32.mrb[0].mxu0
        %v1021 = vadd.f32 %v513, %v1020
        %v1022 = vpop.f32.mrb[0].mxu0
        %1023 = vmatprep.mubr.bf16.mxu0 0
        %1024 = vmatmul.mubr.bf16.gmra.mrb[0].mxu0 %v736
        %v1025 = vpop.f32.mrb[0].mxu0
        %v1026 = vadd.f32 %v518, %v1025
        %v1027 = vpop.f32.mrb[0].mxu0
        %v1028 = vpop.f32.mrb[0].mxu0
        %v1029 = vadd.f32 %v523, %v1028
        %v1030 = vpop.f32.mrb[0].mxu0
        %1031 = vmatprep.mubr.bf16.mxu0 0
        %1032 = vmatmul.mubr.bf16.gmra.mrb[0].mxu0 %v739
        %v1033 = vpop.f32.mrb[0].mxu0
        %v1034 = vadd.f32 %v528, %v1033
        %v1035 = vpop.f32.mrb[0].mxu0
        %v1036 = vpop.f32.mrb[0].mxu0
        %v1037 = vadd.f32 %v533, %v1036
        %v1038 = vpop.f32.mrb[0].mxu0
        %1039 = vmatprep.mubr.bf16.mxu0 0
        %1040 = vmatmul.mubr.bf16.gmra.mrb[0].mxu0 %v742
        %v1041 = vpop.f32.mrb[0].mxu0
        %v1042 = vadd.f32 %v538, %v1041
        %v1043 = vpop.f32.mrb[0].mxu0
        %v1044 = vpop.f32.mrb[0].mxu0
        %v1045 = vadd.f32 %v543, %v1044
        %v1046 = vpop.f32.mrb[0].mxu0
        %1047 = vmatprep.mubr.bf16.mxu0 0
        %1048 = vmatmul.mubr.bf16.gmra.mrb[0].mxu0 %v745
        %v1049 = vpop.f32.mrb[0].mxu0
        %v1050 = vadd.f32 %v548, %v1049
        %v1051 = vpop.f32.mrb[0].mxu0
        %v1052 = vpop.f32.mrb[0].mxu0
        %v1053 = vadd.f32 %v553, %v1052
        %v1054 = vpop.f32.mrb[0].mxu0
        %1055 = vmatprep.mubr.bf16.mxu0 0
        %1056 = vmatmul.mubr.bf16.gmra.mrb[0].mxu0 %v748
        %v1057 = vpop.f32.mrb[0].mxu0
        %v1058 = vadd.f32 %v558, %v1057
        %v1059 = vpop.f32.mrb[0].mxu0
        %v1060 = vpop.f32.mrb[0].mxu0
        %v1061 = vadd.f32 %v563, %v1060
        %v1062 = vpop.f32.mrb[0].mxu0
        %1063 = vmatprep.mubr.bf16.mxu0 0
        %1064 = vmatmul.mubr.bf16.gmra.mrb[0].mxu0 %v751
        %v1065 = vpop.f32.mrb[0].mxu0
        %v1066 = vadd.f32 %v568, %v1065
        %v1067 = vpop.f32.mrb[0].mxu0
        %v1068 = vpop.f32.mrb[0].mxu0
        %v1069 = vadd.f32 %v573, %v1068
        %v1070 = vpop.f32.mrb[0].mxu0
        %1071 = vmatprep.mubr.bf16.mxu0 0
        %1072 = vmatmul.mubr.bf16.gmra.mrb[0].mxu0 %v754
        %v1073 = vpop.f32.mrb[0].mxu0
        %v1074 = vadd.f32 %v578, %v1073
        %v1075 = vpop.f32.mrb[0].mxu0
        %v1076 = vpop.f32.mrb[0].mxu0
        %v1077 = vadd.f32 %v583, %v1076
        %v1078 = vpop.f32.mrb[0].mxu0
        %1079 = vmatprep.mubr.bf16.mxu0 0
        %1080 = vmatmul.mubr.bf16.gmra.mrb[0].mxu0 %v757
        %v1081 = vpop.f32.mrb[0].mxu0
        %v1082 = vadd.f32 %v588, %v1081
        %v1083 = vpop.f32.mrb[0].mxu0
        %v1084 = vpop.f32.mrb[0].mxu0
        %v1085 = vadd.f32 %v593, %v1084
        %v1086 = vpop.f32.mrb[0].mxu0
        %1087 = vmatprep.mubr.bf16.mxu0 0
        %1088 = vmatmul.mubr.bf16.gmra.mrb[0].mxu0 %v760
        %v1089 = vpop.f32.mrb[0].mxu0
        %v1090 = vadd.f32 %v598, %v1089
        %v1091 = vpop.f32.mrb[0].mxu0
        %v1092 = vpop.f32.mrb[0].mxu0
        %v1093 = vadd.f32 %v603, %v1092
        %v1094 = vpop.f32.mrb[0].mxu0
        %1095 = vmatprep.mubr.bf16.mxu0 0
        %1096 = vmatmul.mubr.bf16.gmra.mrb[0].mxu0 %v763
        %v1097 = vpop.f32.mrb[0].mxu0
        %v1098 = vadd.f32 %v608, %v1097
        %v1099 = vpop.f32.mrb[0].mxu0
        %v1100 = vpop.f32.mrb[0].mxu0
        %v1101 = vadd.f32 %v613, %v1100
        %v1102 = vpop.f32.mrb[0].mxu0
        %1103 = vmatprep.mubr.bf16.mxu0 0
        %1104 = vmatmul.mubr.bf16.gmra.mrb[0].mxu0 %v766
        %v1105 = vpop.f32.mrb[0].mxu0
        %v1106 = vadd.f32 %v618, %v1105
        %v1107 = vpop.f32.mrb[0].mxu0
        %v1108 = vpop.f32.mrb[0].mxu0
        %v1109 = vadd.f32 %v623, %v1108
        %v1110 = vpop.f32.mrb[0].mxu0
        %1111 = vmatprep.mubr.bf16.mxu0 0
        %1112 = vmatmul.mubr.bf16.gmra.mrb[0].mxu0 %v769
        %v1113 = vpop.f32.mrb[0].mxu0
        %v1114 = vadd.f32 %v628, %v1113
        %v1115 = vpop.f32.mrb[0].mxu0
        %v1116 = vpop.f32.mrb[0].mxu0
        %v1117 = vadd.f32 %v633, %v1116
        %v1118 = vpop.f32.mrb[0].mxu0
        %1119 = vmatprep.mubr.bf16.mxu0 0
        %1120 = vmatmul.mubr.bf16.gmra.mrb[0].mxu0 %v772
        %v1121 = vpop.f32.mrb[0].mxu0
        %v1122 = vadd.f32 %v638, %v1121
        %v1123 = vpop.f32.mrb[0].mxu0
        %v1124 = vpop.f32.mrb[0].mxu0
        %v1125 = vadd.f32 %v643, %v1124
        %v1126 = vpop.f32.mrb[0].mxu0
        %1127 = vdwg.mxu0
        %s1128 = scalar_lea.vmem %s1, 24
        %v1129 = vld [vmem:[%s1128] sm:$0xff]
        %v1130 = vld [vmem:[%s1128 + $0x8] sm:$0xff]
        %v1131 = vld [vmem:[%s1128 + $0x10] sm:$0xff]
        %v1132 = vsub.f32 1.0, %v1129
        %v1133 = vsub.f32 1.0, %v1130
        %v1134 = vsub.f32 1.0, %v1131
        %1136 = vset.pattern.permute.xlu0 0
        %1137 = vperm.xlu0 %1136, %v1129
        %v1138 = vpop.permute.xlu0 %1137
        %1141 = vset.pattern.permute.xlu0 0
        %1142 = vperm.xlu0 %1141, %v1130
        %v1143 = vpop.permute.xlu0 %1142
        %1146 = vset.pattern.permute.xlu0 0
        %1147 = vperm.xlu0 %1146, %v1131
        %v1148 = vpop.permute.xlu0 %1147
        %v1150 = vmul.f32 %v394, %v1138
        %v1151 = vmul.f32 %v395, %v1138
        %v1152 = vmul.f32 %v396, %v1138
        %v1153 = vmul.f32 %v397, %v1143
        %v1154 = vmul.f32 %v398, %v1143
        %v1155 = vmul.f32 %v399, %v1143
        %v1156 = vmul.f32 %v400, %v1148
        %v1157 = vmul.f32 %v401, %v1148
        %v1158 = vmul.f32 %v402, %v1148
        %s1159 = scalar_lea.vmem %s2, 64
        %v1160 = vld [vmem:[%s1159] sm:$0xf]
        %v1161 = vld [vmem:[%s1159 + $0x4] sm:$0xf]
        %v1162 = vld [vmem:[%s1159 + $0x8] sm:$0xf]
        %v1163 = vld [vmem:[%s1159 + $0xc] sm:$0xf]
        %v1164 = vld [vmem:[%s1159 + $0x10] sm:$0xf]
        %v1165 = vld [vmem:[%s1159 + $0x14] sm:$0xf]
        %v1166 = vld [vmem:[%s1159 + $0x18] sm:$0xf]
        %v1167 = vld [vmem:[%s1159 + $0x1c] sm:$0xf]
        %v1168 = vld [vmem:[%s1159 + $0x20] sm:$0xf]
        %v1169 = vld [vmem:[%s1159 + $0x24] sm:$0xf]
        %v1170 = vld [vmem:[%s1159 + $0x28] sm:$0xf]
        %v1171 = vld [vmem:[%s1159 + $0x2c] sm:$0xf]
        %v1172 = vld [vmem:[%s1159 + $0x30] sm:$0xf]
        %v1173 = vld [vmem:[%s1159 + $0x34] sm:$0xf]
        %v1174 = vld [vmem:[%s1159 + $0x38] sm:$0xf]
        %v1175 = vld [vmem:[%s1159 + $0x3c] sm:$0xf]
        %v1176 = vpack.c.bf16 %v397, %v394
        %v1177 = vpack.c.bf16 %v398, %v395
        %v1178 = vpack.c.bf16 %v399, %v396
        %v1179 = vpack.c.bf16 %v400, %v400
        %v1180 = vpack.c.bf16 %v401, %v401
        %v1181 = vpack.c.bf16 %v402, %v402
        %v1198 = vunpack.c.l.b16 %v1160
        %v1199 = vunpack.c.l.b16 %v1161
        %v1200 = vunpack.c.l.b16 %v1162
        %v1201 = vunpack.c.l.b16 %v1163
        %v1202 = vunpack.c.l.b16 %v1164
        %v1203 = vunpack.c.l.b16 %v1165
        %v1204 = vunpack.c.l.b16 %v1166
        %v1205 = vunpack.c.l.b16 %v1167
        %v1206 = vunpack.c.l.b16 %v1168
        %v1207 = vunpack.c.l.b16 %v1169
        %v1208 = vunpack.c.l.b16 %v1170
        %v1209 = vunpack.c.l.b16 %v1171
        %v1210 = vunpack.c.l.b16 %v1172
        %v1211 = vunpack.c.l.b16 %v1173
        %v1212 = vunpack.c.l.b16 %v1174
        %v1213 = vunpack.c.l.b16 %v1175
        %v1214 = vpack.c.b16 %v1199, %v1198
        %v1215 = vpack.c.b16 %v1201, %v1200
        %v1216 = vpack.c.b16 %v1203, %v1202
        %v1217 = vpack.c.b16 %v1205, %v1204
        %v1218 = vpack.c.b16 %v1207, %v1206
        %v1219 = vpack.c.b16 %v1209, %v1208
        %v1220 = vpack.c.b16 %v1211, %v1210
        %v1221 = vpack.c.b16 %v1213, %v1212
        %vm1222 = vcmask 195584
        %v1224 = vsel %vm1222, %v1214, 0
        %v1227 = vsel %vm1222, %v1215, 0
        %v1230 = vsel %vm1222, %v1216, 0
        %v1233 = vsel %vm1222, %v1217, 0
        %v1236 = vsel %vm1222, %v1218, 0
        %v1239 = vsel %vm1222, %v1219, 0
        %v1242 = vsel %vm1222, %v1220, 0
        %v1245 = vsel %vm1222, %v1221, 0
        %vm1247 = vcmask 1043456
        %v1249 = vsel %vm1247, %v1179, 0
        %v1252 = vsel %vm1247, %v1180, 0
        %v1255 = vsel %vm1247, %v1181, 0
        %1257 = vmatprep.subr.bf16.mxu0 %v1177
        %1258 = vmatpush1.bf16.msra.mxu0 %v1176
        %1259 = vmatprep.subr.bf16.mxu0 %v1252
        %1260 = vmatpush1.bf16.msra.mxu0 %v1249
        %1261 = vmatprep.subr.bf16.mxu0 0
        %1262 = vmatpush1.bf16.msra.mxu0 0
        %1263 = vmatprep.subr.bf16.mxu0 0
        %1264 = vmatpush1.bf16.msra.mxu0 0
        %1265 = vmatprep.subr.bf16.mxu0 0
        %1266 = vmatpush1.bf16.msra.mxu0 0
        %1267 = vmatprep.subr.bf16.mxu0 0
        %1268 = vmatpush1.bf16.msra.mxu0 0
        %1269 = vmatprep.subr.bf16.mxu0 0
        %1270 = vmatpush1.bf16.msra.mxu0 0
        %1271 = vmatprep.subr.bf16.mxu0 0
        %1272 = vmatpush1.bf16.msra.mxu0 0
        %1273 = vmatprep.subr.bf16.mxu0 0
        %1274 = vmatpush1.bf16.msra.mxu0 0
        %1275 = vmatprep.subr.bf16.mxu0 0
        %1276 = vmatpush1.bf16.msra.mxu0 0
        %1277 = vmatprep.subr.bf16.mxu0 0
        %1278 = vmatpush1.bf16.msra.mxu0 0
        %1279 = vmatprep.subr.bf16.mxu0 0
        %1280 = vmatpush1.bf16.msra.mxu0 0
        %1281 = vmatprep.subr.bf16.mxu0 0
        %1282 = vmatpush1.bf16.msra.mxu0 0
        %1283 = vmatprep.subr.bf16.mxu0 0
        %1284 = vmatpush1.bf16.msra.mxu0 0
        %1285 = vmatprep.subr.bf16.mxu0 0
        %1286 = vmatpush1.bf16.msra.mxu0 0
        %1287 = vmatprep.subr.bf16.mxu0 0
        %1288 = vmatpush1.bf16.msra.mxu0 0
        %1289 = vmatprep.mubr.bf16.mxu0 0
        %1290 = vmatmul.mubr.bf16.gmra.mrb[0].mxu0 %v1224
        %v1291 = vpop.f32.mrb[0].mxu0
        %v1292 = vadd.f32 %v889, %v1291
        %v1293 = vpop.f32.mrb[0].mxu0
        %v1294 = vadd.f32 %v891, %v1293
        %v1295 = vpop.f32.mrb[0].mxu0
        %v1296 = vadd.f32 %v893, %v1295
        %v1297 = vpop.f32.mrb[0].mxu0
        %v1298 = vadd.f32 %v895, %v1297
        %1299 = vmatprep.mubr.bf16.mxu0 0
        %1300 = vmatmul.mubr.bf16.gmra.mrb[0].mxu0 %v1227
        %v1301 = vpop.f32.mrb[0].mxu0
        %v1302 = vadd.f32 %v899, %v1301
        %v1303 = vpop.f32.mrb[0].mxu0
        %v1304 = vadd.f32 %v901, %v1303
        %v1305 = vpop.f32.mrb[0].mxu0
        %v1306 = vadd.f32 %v903, %v1305
        %v1307 = vpop.f32.mrb[0].mxu0
        %v1308 = vadd.f32 %v905, %v1307
        %1309 = vmatprep.mubr.bf16.mxu0 0
        %1310 = vmatmul.mubr.bf16.gmra.mrb[0].mxu0 %v1230
        %v1311 = vpop.f32.mrb[0].mxu0
        %v1312 = vadd.f32 %v909, %v1311
        %v1313 = vpop.f32.mrb[0].mxu0
        %v1314 = vadd.f32 %v911, %v1313
        %v1315 = vpop.f32.mrb[0].mxu0
        %v1316 = vadd.f32 %v913, %v1315
        %v1317 = vpop.f32.mrb[0].mxu0
        %v1318 = vadd.f32 %v915, %v1317
        %1319 = vmatprep.mubr.bf16.mxu0 0
        %1320 = vmatmul.mubr.bf16.gmra.mrb[0].mxu0 %v1233
        %v1321 = vpop.f32.mrb[0].mxu0
        %v1322 = vadd.f32 %v919, %v1321
        %v1323 = vpop.f32.mrb[0].mxu0
        %v1324 = vadd.f32 %v921, %v1323
        %v1325 = vpop.f32.mrb[0].mxu0
        %v1326 = vadd.f32 %v923, %v1325
        %v1327 = vpop.f32.mrb[0].mxu0
        %v1328 = vadd.f32 %v925, %v1327
        %1329 = vmatprep.mubr.bf16.mxu0 0
        %1330 = vmatmul.mubr.bf16.gmra.mrb[0].mxu0 %v1236
        %v1331 = vpop.f32.mrb[0].mxu0
        %v1332 = vadd.f32 %v929, %v1331
        %v1333 = vpop.f32.mrb[0].mxu0
        %v1334 = vadd.f32 %v931, %v1333
        %v1335 = vpop.f32.mrb[0].mxu0
        %v1336 = vadd.f32 %v933, %v1335
        %v1337 = vpop.f32.mrb[0].mxu0
        %v1338 = vadd.f32 %v935, %v1337
        %1339 = vmatprep.mubr.bf16.mxu0 0
        %1340 = vmatmul.mubr.bf16.gmra.mrb[0].mxu0 %v1239
        %v1341 = vpop.f32.mrb[0].mxu0
        %v1342 = vadd.f32 %v939, %v1341
        %v1343 = vpop.f32.mrb[0].mxu0
        %v1344 = vadd.f32 %v941, %v1343
        %v1345 = vpop.f32.mrb[0].mxu0
        %v1346 = vadd.f32 %v943, %v1345
        %v1347 = vpop.f32.mrb[0].mxu0
        %v1348 = vadd.f32 %v945, %v1347
        %1349 = vmatprep.mubr.bf16.mxu0 0
        %1350 = vmatmul.mubr.bf16.gmra.mrb[0].mxu0 %v1242
        %v1351 = vpop.f32.mrb[0].mxu0
        %v1352 = vadd.f32 %v949, %v1351
        %v1353 = vpop.f32.mrb[0].mxu0
        %v1354 = vadd.f32 %v951, %v1353
        %v1355 = vpop.f32.mrb[0].mxu0
        %v1356 = vadd.f32 %v953, %v1355
        %v1357 = vpop.f32.mrb[0].mxu0
        %v1358 = vadd.f32 %v955, %v1357
        %1359 = vmatprep.mubr.bf16.mxu0 0
        %1360 = vmatmul.mubr.bf16.gmra.mrb[0].mxu0 %v1245
        %v1361 = vpop.f32.mrb[0].mxu0
        %v1362 = vadd.f32 %v959, %v1361
        %v1363 = vpop.f32.mrb[0].mxu0
        %v1364 = vadd.f32 %v961, %v1363
        %v1365 = vpop.f32.mrb[0].mxu0
        %v1366 = vadd.f32 %v963, %v1365
        %v1367 = vpop.f32.mrb[0].mxu0
        %v1368 = vadd.f32 %v965, %v1367
        %1369 = vdwg.mxu0
        %1370 = vmatprep.subr.bf16.mxu0 0
        %1371 = vmatpush1.bf16.msra.mxu0 %v1178
        %1372 = vmatprep.subr.bf16.mxu0 0
        %1373 = vmatpush1.bf16.msra.mxu0 %v1255
        %1374 = vmatprep.subr.bf16.mxu0 0
        %1375 = vmatpush1.bf16.msra.mxu0 0
        %1376 = vmatprep.subr.bf16.mxu0 0
        %1377 = vmatpush1.bf16.msra.mxu0 0
        %1378 = vmatprep.subr.bf16.mxu0 0
        %1379 = vmatpush1.bf16.msra.mxu0 0
        %1380 = vmatprep.subr.bf16.mxu0 0
        %1381 = vmatpush1.bf16.msra.mxu0 0
        %1382 = vmatprep.subr.bf16.mxu0 0
        %1383 = vmatpush1.bf16.msra.mxu0 0
        %1384 = vmatprep.subr.bf16.mxu0 0
        %1385 = vmatpush1.bf16.msra.mxu0 0
        %1386 = vmatprep.subr.bf16.mxu0 0
        %1387 = vmatpush1.bf16.msra.mxu0 0
        %1388 = vmatprep.subr.bf16.mxu0 0
        %1389 = vmatpush1.bf16.msra.mxu0 0
        %1390 = vmatprep.subr.bf16.mxu0 0
        %1391 = vmatpush1.bf16.msra.mxu0 0
        %1392 = vmatprep.subr.bf16.mxu0 0
        %1393 = vmatpush1.bf16.msra.mxu0 0
        %1394 = vmatprep.subr.bf16.mxu0 0
        %1395 = vmatpush1.bf16.msra.mxu0 0
        %1396 = vmatprep.subr.bf16.mxu0 0
        %1397 = vmatpush1.bf16.msra.mxu0 0
        %1398 = vmatprep.subr.bf16.mxu0 0
        %1399 = vmatpush1.bf16.msra.mxu0 0
        %1400 = vmatprep.subr.bf16.mxu0 0
        %1401 = vmatpush1.bf16.msra.mxu0 0
        %1402 = vmatprep.mubr.bf16.mxu0 0
        %1403 = vmatmul.mubr.bf16.gmra.mrb[0].mxu0 %v1224
        %v1404 = vpop.f32.mrb[0].mxu0
        %v1405 = vadd.f32 %v1066, %v1404
        %v1406 = vpop.f32.mrb[0].mxu0
        %v1407 = vpop.f32.mrb[0].mxu0
        %v1408 = vadd.f32 %v1069, %v1407
        %v1409 = vpop.f32.mrb[0].mxu0
        %1410 = vmatprep.mubr.bf16.mxu0 0
        %1411 = vmatmul.mubr.bf16.gmra.mrb[0].mxu0 %v1227
        %v1412 = vpop.f32.mrb[0].mxu0
        %v1413 = vadd.f32 %v1074, %v1412
        %v1414 = vpop.f32.mrb[0].mxu0
        %v1415 = vpop.f32.mrb[0].mxu0
        %v1416 = vadd.f32 %v1077, %v1415
        %v1417 = vpop.f32.mrb[0].mxu0
        %1418 = vmatprep.mubr.bf16.mxu0 0
        %1419 = vmatmul.mubr.bf16.gmra.mrb[0].mxu0 %v1230
        %v1420 = vpop.f32.mrb[0].mxu0
        %v1421 = vadd.f32 %v1082, %v1420
        %v1422 = vpop.f32.mrb[0].mxu0
        %v1423 = vpop.f32.mrb[0].mxu0
        %v1424 = vadd.f32 %v1085, %v1423
        %v1425 = vpop.f32.mrb[0].mxu0
        %1426 = vmatprep.mubr.bf16.mxu0 0
        %1427 = vmatmul.mubr.bf16.gmra.mrb[0].mxu0 %v1233
        %v1428 = vpop.f32.mrb[0].mxu0
        %v1429 = vadd.f32 %v1090, %v1428
        %v1430 = vpop.f32.mrb[0].mxu0
        %v1431 = vpop.f32.mrb[0].mxu0
        %v1432 = vadd.f32 %v1093, %v1431
        %v1433 = vpop.f32.mrb[0].mxu0
        %1434 = vmatprep.mubr.bf16.mxu0 0
        %1435 = vmatmul.mubr.bf16.gmra.mrb[0].mxu0 %v1236
        %v1436 = vpop.f32.mrb[0].mxu0
        %v1437 = vadd.f32 %v1098, %v1436
        %v1438 = vpop.f32.mrb[0].mxu0
        %v1439 = vpop.f32.mrb[0].mxu0
        %v1440 = vadd.f32 %v1101, %v1439
        %v1441 = vpop.f32.mrb[0].mxu0
        %1442 = vmatprep.mubr.bf16.mxu0 0
        %1443 = vmatmul.mubr.bf16.gmra.mrb[0].mxu0 %v1239
        %v1444 = vpop.f32.mrb[0].mxu0
        %v1445 = vadd.f32 %v1106, %v1444
        %v1446 = vpop.f32.mrb[0].mxu0
        %v1447 = vpop.f32.mrb[0].mxu0
        %v1448 = vadd.f32 %v1109, %v1447
        %v1449 = vpop.f32.mrb[0].mxu0
        %1450 = vmatprep.mubr.bf16.mxu0 0
        %1451 = vmatmul.mubr.bf16.gmra.mrb[0].mxu0 %v1242
        %v1452 = vpop.f32.mrb[0].mxu0
        %v1453 = vadd.f32 %v1114, %v1452
        %v1454 = vpop.f32.mrb[0].mxu0
        %v1455 = vpop.f32.mrb[0].mxu0
        %v1456 = vadd.f32 %v1117, %v1455
        %v1457 = vpop.f32.mrb[0].mxu0
        %1458 = vmatprep.mubr.bf16.mxu0 0
        %1459 = vmatmul.mubr.bf16.gmra.mrb[0].mxu0 %v1245
        %v1460 = vpop.f32.mrb[0].mxu0
        %v1461 = vadd.f32 %v1122, %v1460
        %v1462 = vpop.f32.mrb[0].mxu0
        %v1463 = vpop.f32.mrb[0].mxu0
        %v1464 = vadd.f32 %v1125, %v1463
        %v1465 = vpop.f32.mrb[0].mxu0
        %1466 = vdwg.mxu0
        %vm1467 = vcmp.ge.f32.partialorder %v1292, 0.0
        %vm1468 = vcmp.ge.f32.partialorder %v1294, 0.0
        %vm1469 = vcmp.ge.f32.partialorder %v1405, 0.0
        %vm1470 = vcmp.ge.f32.partialorder %v1296, 0.0
        %vm1471 = vcmp.ge.f32.partialorder %v1298, 0.0
        %vm1472 = vcmp.ge.f32.partialorder %v1408, 0.0
        %vm1473 = vcmp.ge.f32.partialorder %v1302, 0.0
        %vm1474 = vcmp.ge.f32.partialorder %v1304, 0.0
        %vm1475 = vcmp.ge.f32.partialorder %v1413, 0.0
        %vm1476 = vcmp.ge.f32.partialorder %v1306, 0.0
        %vm1477 = vcmp.ge.f32.partialorder %v1308, 0.0
        %vm1478 = vcmp.ge.f32.partialorder %v1416, 0.0
        %vm1479 = vcmp.ge.f32.partialorder %v1312, 0.0
        %vm1480 = vcmp.ge.f32.partialorder %v1314, 0.0
        %vm1481 = vcmp.ge.f32.partialorder %v1421, 0.0
        %vm1482 = vcmp.ge.f32.partialorder %v1316, 0.0
        %vm1483 = vcmp.ge.f32.partialorder %v1318, 0.0
        %vm1484 = vcmp.ge.f32.partialorder %v1424, 0.0
        %vm1485 = vcmp.ge.f32.partialorder %v1322, 0.0
        %vm1486 = vcmp.ge.f32.partialorder %v1324, 0.0
        %vm1487 = vcmp.ge.f32.partialorder %v1429, 0.0
        %vm1488 = vcmp.ge.f32.partialorder %v1326, 0.0
        %vm1489 = vcmp.ge.f32.partialorder %v1328, 0.0
        %vm1490 = vcmp.ge.f32.partialorder %v1432, 0.0
        %vm1491 = vcmp.ge.f32.partialorder %v1332, 0.0
        %vm1492 = vcmp.ge.f32.partialorder %v1334, 0.0
        %vm1493 = vcmp.ge.f32.partialorder %v1437, 0.0
        %vm1494 = vcmp.ge.f32.partialorder %v1336, 0.0
        %vm1495 = vcmp.ge.f32.partialorder %v1338, 0.0
        %vm1496 = vcmp.ge.f32.partialorder %v1440, 0.0
        %vm1497 = vcmp.ge.f32.partialorder %v1342, 0.0
        %vm1498 = vcmp.ge.f32.partialorder %v1344, 0.0
        %vm1499 = vcmp.ge.f32.partialorder %v1445, 0.0
        %vm1500 = vcmp.ge.f32.partialorder %v1346, 0.0
        %vm1501 = vcmp.ge.f32.partialorder %v1348, 0.0
        %vm1502 = vcmp.ge.f32.partialorder %v1448, 0.0
        %vm1503 = vcmp.ge.f32.partialorder %v1352, 0.0
        %vm1504 = vcmp.ge.f32.partialorder %v1354, 0.0
        %vm1505 = vcmp.ge.f32.partialorder %v1453, 0.0
        %vm1506 = vcmp.ge.f32.partialorder %v1356, 0.0
        %vm1507 = vcmp.ge.f32.partialorder %v1358, 0.0
        %vm1508 = vcmp.ge.f32.partialorder %v1456, 0.0
        %vm1509 = vcmp.ge.f32.partialorder %v1362, 0.0
        %vm1510 = vcmp.ge.f32.partialorder %v1364, 0.0
        %vm1511 = vcmp.ge.f32.partialorder %v1461, 0.0
        %vm1512 = vcmp.ge.f32.partialorder %v1366, 0.0
        %vm1513 = vcmp.ge.f32.partialorder %v1368, 0.0
        %vm1514 = vcmp.ge.f32.partialorder %v1464, 0.0
        %v1515 = vmul.f32 %v1292, 0.01
        %v1516 = vmul.f32 %v1294, 0.01
        %v1517 = vmul.f32 %v1405, 0.01
        %v1518 = vmul.f32 %v1296, 0.01
        %v1519 = vmul.f32 %v1298, 0.01
        %v1520 = vmul.f32 %v1408, 0.01
        %v1521 = vmul.f32 %v1302, 0.01
        %v1522 = vmul.f32 %v1304, 0.01
        %v1523 = vmul.f32 %v1413, 0.01
        %v1524 = vmul.f32 %v1306, 0.01
        %v1525 = vmul.f32 %v1308, 0.01
        %v1526 = vmul.f32 %v1416, 0.01
        %v1527 = vmul.f32 %v1312, 0.01
        %v1528 = vmul.f32 %v1314, 0.01
        %v1529 = vmul.f32 %v1421, 0.01
        %v1530 = vmul.f32 %v1316, 0.01
        %v1531 = vmul.f32 %v1318, 0.01
        %v1532 = vmul.f32 %v1424, 0.01
        %v1533 = vmul.f32 %v1322, 0.01
        %v1534 = vmul.f32 %v1324, 0.01
        %v1535 = vmul.f32 %v1429, 0.01
        %v1536 = vmul.f32 %v1326, 0.01
        %v1537 = vmul.f32 %v1328, 0.01
        %v1538 = vmul.f32 %v1432, 0.01
        %v1539 = vmul.f32 %v1332, 0.01
        %v1540 = vmul.f32 %v1334, 0.01
        %v1541 = vmul.f32 %v1437, 0.01
        %v1542 = vmul.f32 %v1336, 0.01
        %v1543 = vmul.f32 %v1338, 0.01
        %v1544 = vmul.f32 %v1440, 0.01
        %v1545 = vmul.f32 %v1342, 0.01
        %v1546 = vmul.f32 %v1344, 0.01
        %v1547 = vmul.f32 %v1445, 0.01
        %v1548 = vmul.f32 %v1346, 0.01
        %v1549 = vmul.f32 %v1348, 0.01
        %v1550 = vmul.f32 %v1448, 0.01
        %v1551 = vmul.f32 %v1352, 0.01
        %v1552 = vmul.f32 %v1354, 0.01
        %v1553 = vmul.f32 %v1453, 0.01
        %v1554 = vmul.f32 %v1356, 0.01
        %v1555 = vmul.f32 %v1358, 0.01
        %v1556 = vmul.f32 %v1456, 0.01
        %v1557 = vmul.f32 %v1362, 0.01
        %v1558 = vmul.f32 %v1364, 0.01
        %v1559 = vmul.f32 %v1461, 0.01
        %v1560 = vmul.f32 %v1366, 0.01
        %v1561 = vmul.f32 %v1368, 0.01
        %v1562 = vmul.f32 %v1464, 0.01
        %v1563 = vsel %vm1467, %v1292, %v1515
        %v1564 = vsel %vm1468, %v1294, %v1516
        %v1565 = vsel %vm1469, %v1405, %v1517
        %v1566 = vsel %vm1470, %v1296, %v1518
        %v1567 = vsel %vm1471, %v1298, %v1519
        %v1568 = vsel %vm1472, %v1408, %v1520
        %v1569 = vsel %vm1473, %v1302, %v1521
        %v1570 = vsel %vm1474, %v1304, %v1522
        %v1571 = vsel %vm1475, %v1413, %v1523
        %v1572 = vsel %vm1476, %v1306, %v1524
        %v1573 = vsel %vm1477, %v1308, %v1525
        %v1574 = vsel %vm1478, %v1416, %v1526
        %v1575 = vsel %vm1479, %v1312, %v1527
        %v1576 = vsel %vm1480, %v1314, %v1528
        %v1577 = vsel %vm1481, %v1421, %v1529
        %v1578 = vsel %vm1482, %v1316, %v1530
        %v1579 = vsel %vm1483, %v1318, %v1531
        %v1580 = vsel %vm1484, %v1424, %v1532
        %v1581 = vsel %vm1485, %v1322, %v1533
        %v1582 = vsel %vm1486, %v1324, %v1534
        %v1583 = vsel %vm1487, %v1429, %v1535
        %v1584 = vsel %vm1488, %v1326, %v1536
        %v1585 = vsel %vm1489, %v1328, %v1537
        %v1586 = vsel %vm1490, %v1432, %v1538
        %v1587 = vsel %vm1491, %v1332, %v1539
        %v1588 = vsel %vm1492, %v1334, %v1540
        %v1589 = vsel %vm1493, %v1437, %v1541
        %v1590 = vsel %vm1494, %v1336, %v1542
        %v1591 = vsel %vm1495, %v1338, %v1543
        %v1592 = vsel %vm1496, %v1440, %v1544
        %v1593 = vsel %vm1497, %v1342, %v1545
        %v1594 = vsel %vm1498, %v1344, %v1546
        %v1595 = vsel %vm1499, %v1445, %v1547
        %v1596 = vsel %vm1500, %v1346, %v1548
        %v1597 = vsel %vm1501, %v1348, %v1549
        %v1598 = vsel %vm1502, %v1448, %v1550
        %v1599 = vsel %vm1503, %v1352, %v1551
        %v1600 = vsel %vm1504, %v1354, %v1552
        %v1601 = vsel %vm1505, %v1453, %v1553
        %v1602 = vsel %vm1506, %v1356, %v1554
        %v1603 = vsel %vm1507, %v1358, %v1555
        %v1604 = vsel %vm1508, %v1456, %v1556
        %v1605 = vsel %vm1509, %v1362, %v1557
        %v1606 = vsel %vm1510, %v1364, %v1558
        %v1607 = vsel %vm1511, %v1461, %v1559
        %v1608 = vsel %vm1512, %v1366, %v1560
        %v1609 = vsel %vm1513, %v1368, %v1561
        %v1610 = vsel %vm1514, %v1464, %v1562
        %s1611 = scalar_lea.vmem %s5, 64
        %v1612 = vld [vmem:[%s1611] sm:$0xf]
        %v1613 = vld [vmem:[%s1611 + $0x4] sm:$0xf]
        %v1614 = vld [vmem:[%s1611 + $0x8] sm:$0xf]
        %v1615 = vld [vmem:[%s1611 + $0xc] sm:$0xf]
        %v1616 = vld [vmem:[%s1611 + $0x10] sm:$0xf]
        %v1617 = vld [vmem:[%s1611 + $0x14] sm:$0xf]
        %v1618 = vld [vmem:[%s1611 + $0x18] sm:$0xf]
        %v1619 = vld [vmem:[%s1611 + $0x1c] sm:$0xf]
        %v1620 = vld [vmem:[%s1611 + $0x20] sm:$0xf]
        %v1621 = vld [vmem:[%s1611 + $0x24] sm:$0xf]
        %v1622 = vld [vmem:[%s1611 + $0x28] sm:$0xf]
        %v1623 = vld [vmem:[%s1611 + $0x2c] sm:$0xf]
        %v1624 = vld [vmem:[%s1611 + $0x30] sm:$0xf]
        %v1625 = vld [vmem:[%s1611 + $0x34] sm:$0xf]
        %v1626 = vld [vmem:[%s1611 + $0x38] sm:$0xf]
        %v1627 = vld [vmem:[%s1611 + $0x3c] sm:$0xf]
        %v1628 = vpack.c.bf16 %v1566, %v1563
        %v1629 = vpack.c.bf16 %v1567, %v1564
        %v1630 = vpack.c.bf16 %v1568, %v1565
        %v1631 = vpack.c.bf16 %v1572, %v1569
        %v1632 = vpack.c.bf16 %v1573, %v1570
        %v1633 = vpack.c.bf16 %v1574, %v1571
        %v1634 = vpack.c.bf16 %v1578, %v1575
        %v1635 = vpack.c.bf16 %v1579, %v1576
        %v1636 = vpack.c.bf16 %v1580, %v1577
        %v1637 = vpack.c.bf16 %v1584, %v1581
        %v1638 = vpack.c.bf16 %v1585, %v1582
        %v1639 = vpack.c.bf16 %v1586, %v1583
        %v1640 = vpack.c.bf16 %v1590, %v1587
        %v1641 = vpack.c.bf16 %v1591, %v1588
        %v1642 = vpack.c.bf16 %v1592, %v1589
        %v1643 = vpack.c.bf16 %v1596, %v1593
        %v1644 = vpack.c.bf16 %v1597, %v1594
        %v1645 = vpack.c.bf16 %v1598, %v1595
        %v1646 = vpack.c.bf16 %v1602, %v1599
        %v1647 = vpack.c.bf16 %v1603, %v1600
        %v1648 = vpack.c.bf16 %v1604, %v1601
        %v1649 = vpack.c.bf16 %v1608, %v1605
        %v1650 = vpack.c.bf16 %v1609, %v1606
        %v1651 = vpack.c.bf16 %v1610, %v1607
        %s1652 = scalar_lea.vmem %s6, 128
        %v1653 = vld [vmem:[%s1652] sm:$0xff]
        %v1654 = vld [vmem:[%s1652 + $0x8] sm:$0xff]
        %v1655 = vld [vmem:[%s1652 + $0x10] sm:$0xff]
        %v1656 = vld [vmem:[%s1652 + $0x18] sm:$0xff]
        %v1657 = vld [vmem:[%s1652 + $0x20] sm:$0xff]
        %v1658 = vld [vmem:[%s1652 + $0x28] sm:$0xff]
        %v1659 = vld [vmem:[%s1652 + $0x30] sm:$0xff]
        %v1660 = vld [vmem:[%s1652 + $0x38] sm:$0xff]
        %v1661 = vld [vmem:[%s1652 + $0x40] sm:$0xff]
        %v1662 = vld [vmem:[%s1652 + $0x48] sm:$0xff]
        %v1663 = vld [vmem:[%s1652 + $0x50] sm:$0xff]
        %v1664 = vld [vmem:[%s1652 + $0x58] sm:$0xff]
        %v1665 = vld [vmem:[%s1652 + $0x60] sm:$0xff]
        %v1666 = vld [vmem:[%s1652 + $0x68] sm:$0xff]
        %v1667 = vld [vmem:[%s1652 + $0x70] sm:$0xff]
        %v1668 = vld [vmem:[%s1652 + $0x78] sm:$0xff]
        %1670 = vset.pattern.permute.xlu0 0
        %1671 = vperm.xlu0 %1670, %v1653
        %v1672 = vpop.permute.xlu0 %1671
        %1675 = vset.pattern.permute.xlu0 0
        %1676 = vperm.xlu0 %1675, %v1654
        %v1677 = vpop.permute.xlu0 %1676
        %1680 = vset.pattern.permute.xlu0 0
        %1681 = vperm.xlu0 %1680, %v1655
        %v1682 = vpop.permute.xlu0 %1681
        %1685 = vset.pattern.permute.xlu0 0
        %1686 = vperm.xlu0 %1685, %v1656
        %v1687 = vpop.permute.xlu0 %1686
        %1690 = vset.pattern.permute.xlu0 0
        %1691 = vperm.xlu0 %1690, %v1657
        %v1692 = vpop.permute.xlu0 %1691
        %1695 = vset.pattern.permute.xlu0 0
        %1696 = vperm.xlu0 %1695, %v1658
        %v1697 = vpop.permute.xlu0 %1696
        %1700 = vset.pattern.permute.xlu0 0
        %1701 = vperm.xlu0 %1700, %v1659
        %v1702 = vpop.permute.xlu0 %1701
        %1705 = vset.pattern.permute.xlu0 0
        %1706 = vperm.xlu0 %1705, %v1660
        %v1707 = vpop.permute.xlu0 %1706
        %1710 = vset.pattern.permute.xlu0 0
        %1711 = vperm.xlu0 %1710, %v1661
        %v1712 = vpop.permute.xlu0 %1711
        %1715 = vset.pattern.permute.xlu0 0
        %1716 = vperm.xlu0 %1715, %v1662
        %v1717 = vpop.permute.xlu0 %1716
        %1720 = vset.pattern.permute.xlu0 0
        %1721 = vperm.xlu0 %1720, %v1663
        %v1722 = vpop.permute.xlu0 %1721
        %1725 = vset.pattern.permute.xlu0 0
        %1726 = vperm.xlu0 %1725, %v1664
        %v1727 = vpop.permute.xlu0 %1726
        %1730 = vset.pattern.permute.xlu0 0
        %1731 = vperm.xlu0 %1730, %v1665
        %v1732 = vpop.permute.xlu0 %1731
        %1735 = vset.pattern.permute.xlu0 0
        %1736 = vperm.xlu0 %1735, %v1666
        %v1737 = vpop.permute.xlu0 %1736
        %1740 = vset.pattern.permute.xlu0 0
        %1741 = vperm.xlu0 %1740, %v1667
        %v1742 = vpop.permute.xlu0 %1741
        %1745 = vset.pattern.permute.xlu0 0
        %1746 = vperm.xlu0 %1745, %v1668
        %v1747 = vpop.permute.xlu0 %1746
        %v1765 = vunpack.c.l.b16 %v1612
        %v1766 = vunpack.c.l.b16 %v1613
        %v1767 = vunpack.c.l.b16 %v1614
        %v1768 = vunpack.c.l.b16 %v1615
        %v1769 = vunpack.c.l.b16 %v1616
        %v1770 = vunpack.c.l.b16 %v1617
        %v1771 = vunpack.c.l.b16 %v1618
        %v1772 = vunpack.c.l.b16 %v1619
        %v1773 = vunpack.c.l.b16 %v1620
        %v1774 = vunpack.c.l.b16 %v1621
        %v1775 = vunpack.c.l.b16 %v1622
        %v1776 = vunpack.c.l.b16 %v1623
        %v1777 = vunpack.c.l.b16 %v1624
        %v1778 = vunpack.c.l.b16 %v1625
        %v1779 = vunpack.c.l.b16 %v1626
        %v1780 = vunpack.c.l.b16 %v1627
        %v1781 = vpack.c.b16 %v1766, %v1765
        %v1782 = vpack.c.b16 %v1768, %v1767
        %v1783 = vpack.c.b16 %v1770, %v1769
        %v1784 = vpack.c.b16 %v1772, %v1771
        %v1785 = vpack.c.b16 %v1774, %v1773
        %v1786 = vpack.c.b16 %v1776, %v1775
        %v1787 = vpack.c.b16 %v1778, %v1777
        %v1788 = vpack.c.b16 %v1780, %v1779
        %1797 = vmatprep.subr.bf16.mxu0 %v1629
        %1798 = vmatpush1.bf16.msra.mxu0 %v1628
        %1799 = vmatprep.subr.bf16.mxu0 %v1632
        %1800 = vmatpush1.bf16.msra.mxu0 %v1631
        %1801 = vmatprep.subr.bf16.mxu0 %v1635
        %1802 = vmatpush1.bf16.msra.mxu0 %v1634
        %1803 = vmatprep.subr.bf16.mxu0 %v1638
        %1804 = vmatpush1.bf16.msra.mxu0 %v1637
        %1805 = vmatprep.subr.bf16.mxu0 %v1641
        %1806 = vmatpush1.bf16.msra.mxu0 %v1640
        %1807 = vmatprep.subr.bf16.mxu0 %v1644
        %1808 = vmatpush1.bf16.msra.mxu0 %v1643
        %1809 = vmatprep.subr.bf16.mxu0 %v1647
        %1810 = vmatpush1.bf16.msra.mxu0 %v1646
        %1811 = vmatprep.subr.bf16.mxu0 %v1650
        %1812 = vmatpush1.bf16.msra.mxu0 %v1649
        %1813 = vmatprep.subr.bf16.mxu0 0
        %1814 = vmatpush1.bf16.msra.mxu0 0
        %1815 = vmatprep.subr.bf16.mxu0 0
        %1816 = vmatpush1.bf16.msra.mxu0 0
        %1817 = vmatprep.subr.bf16.mxu0 0
        %1818 = vmatpush1.bf16.msra.mxu0 0
        %1819 = vmatprep.subr.bf16.mxu0 0
        %1820 = vmatpush1.bf16.msra.mxu0 0
        %1821 = vmatprep.subr.bf16.mxu0 0
        %1822 = vmatpush1.bf16.msra.mxu0 0
        %1823 = vmatprep.subr.bf16.mxu0 0
        %1824 = vmatpush1.bf16.msra.mxu0 0
        %1825 = vmatprep.subr.bf16.mxu0 0
        %1826 = vmatpush1.bf16.msra.mxu0 0
        %1827 = vmatprep.subr.bf16.mxu0 0
        %1828 = vmatpush1.bf16.msra.mxu0 0
        %1829 = vmatprep.mubr.bf16.mxu0 0
        %1830 = vmatmul.mubr.bf16.gmra.mrb[0].mxu0 %v1781
        %v1831 = vpop.f32.mrb[0].mxu0
        %v1832 = vadd.f32 %v1672, %v1831
        %v1833 = vpop.f32.mrb[0].mxu0
        %v1834 = vadd.f32 %v1672, %v1833
        %v1835 = vpop.f32.mrb[0].mxu0
        %v1836 = vadd.f32 %v1677, %v1835
        %v1837 = vpop.f32.mrb[0].mxu0
        %v1838 = vadd.f32 %v1677, %v1837
        %1839 = vmatprep.mubr.bf16.mxu0 0
        %1840 = vmatmul.mubr.bf16.gmra.mrb[0].mxu0 %v1782
        %v1841 = vpop.f32.mrb[0].mxu0
        %v1842 = vadd.f32 %v1682, %v1841
        %v1843 = vpop.f32.mrb[0].mxu0
        %v1844 = vadd.f32 %v1682, %v1843
        %v1845 = vpop.f32.mrb[0].mxu0
        %v1846 = vadd.f32 %v1687, %v1845
        %v1847 = vpop.f32.mrb[0].mxu0
        %v1848 = vadd.f32 %v1687, %v1847
        %1849 = vmatprep.mubr.bf16.mxu0 0
        %1850 = vmatmul.mubr.bf16.gmra.mrb[0].mxu0 %v1783
        %v1851 = vpop.f32.mrb[0].mxu0
        %v1852 = vadd.f32 %v1692, %v1851
        %v1853 = vpop.f32.mrb[0].mxu0
        %v1854 = vadd.f32 %v1692, %v1853
        %v1855 = vpop.f32.mrb[0].mxu0
        %v1856 = vadd.f32 %v1697, %v1855
        %v1857 = vpop.f32.mrb[0].mxu0
        %v1858 = vadd.f32 %v1697, %v1857
        %1859 = vmatprep.mubr.bf16.mxu0 0
        %1860 = vmatmul.mubr.bf16.gmra.mrb[0].mxu0 %v1784
        %v1861 = vpop.f32.mrb[0].mxu0
        %v1862 = vadd.f32 %v1702, %v1861
        %v1863 = vpop.f32.mrb[0].mxu0
        %v1864 = vadd.f32 %v1702, %v1863
        %v1865 = vpop.f32.mrb[0].mxu0
        %v1866 = vadd.f32 %v1707, %v1865
        %v1867 = vpop.f32.mrb[0].mxu0
        %v1868 = vadd.f32 %v1707, %v1867
        %1869 = vmatprep.mubr.bf16.mxu0 0
        %1870 = vmatmul.mubr.bf16.gmra.mrb[0].mxu0 %v1785
        %v1871 = vpop.f32.mrb[0].mxu0
        %v1872 = vadd.f32 %v1712, %v1871
        %v1873 = vpop.f32.mrb[0].mxu0
        %v1874 = vadd.f32 %v1712, %v1873
        %v1875 = vpop.f32.mrb[0].mxu0
        %v1876 = vadd.f32 %v1717, %v1875
        %v1877 = vpop.f32.mrb[0].mxu0
        %v1878 = vadd.f32 %v1717, %v1877
        %1879 = vmatprep.mubr.bf16.mxu0 0
        %1880 = vmatmul.mubr.bf16.gmra.mrb[0].mxu0 %v1786
        %v1881 = vpop.f32.mrb[0].mxu0
        %v1882 = vadd.f32 %v1722, %v1881
        %v1883 = vpop.f32.mrb[0].mxu0
        %v1884 = vadd.f32 %v1722, %v1883
        %v1885 = vpop.f32.mrb[0].mxu0
        %v1886 = vadd.f32 %v1727, %v1885
        %v1887 = vpop.f32.mrb[0].mxu0
        %v1888 = vadd.f32 %v1727, %v1887
        %1889 = vmatprep.mubr.bf16.mxu0 0
        %1890 = vmatmul.mubr.bf16.gmra.mrb[0].mxu0 %v1787
        %v1891 = vpop.f32.mrb[0].mxu0
        %v1892 = vadd.f32 %v1732, %v1891
        %v1893 = vpop.f32.mrb[0].mxu0
        %v1894 = vadd.f32 %v1732, %v1893
        %v1895 = vpop.f32.mrb[0].mxu0
        %v1896 = vadd.f32 %v1737, %v1895
        %v1897 = vpop.f32.mrb[0].mxu0
        %v1898 = vadd.f32 %v1737, %v1897
        %1899 = vmatprep.mubr.bf16.mxu0 0
        %1900 = vmatmul.mubr.bf16.gmra.mrb[0].mxu0 %v1788
        %v1901 = vpop.f32.mrb[0].mxu0
        %v1902 = vadd.f32 %v1742, %v1901
        %v1903 = vpop.f32.mrb[0].mxu0
        %v1904 = vadd.f32 %v1742, %v1903
        %v1905 = vpop.f32.mrb[0].mxu0
        %v1906 = vadd.f32 %v1747, %v1905
        %v1907 = vpop.f32.mrb[0].mxu0
        %v1908 = vadd.f32 %v1747, %v1907
        %1909 = vdwg.mxu0
        %1910 = vmatprep.subr.bf16.mxu0 0
        %1911 = vmatpush1.bf16.msra.mxu0 %v1630
        %1912 = vmatprep.subr.bf16.mxu0 0
        %1913 = vmatpush1.bf16.msra.mxu0 %v1633
        %1914 = vmatprep.subr.bf16.mxu0 0
        %1915 = vmatpush1.bf16.msra.mxu0 %v1636
        %1916 = vmatprep.subr.bf16.mxu0 0
        %1917 = vmatpush1.bf16.msra.mxu0 %v1639
        %1918 = vmatprep.subr.bf16.mxu0 0
        %1919 = vmatpush1.bf16.msra.mxu0 %v1642
        %1920 = vmatprep.subr.bf16.mxu0 0
        %1921 = vmatpush1.bf16.msra.mxu0 %v1645
        %1922 = vmatprep.subr.bf16.mxu0 0
        %1923 = vmatpush1.bf16.msra.mxu0 %v1648
        %1924 = vmatprep.subr.bf16.mxu0 0
        %1925 = vmatpush1.bf16.msra.mxu0 %v1651
        %1926 = vmatprep.subr.bf16.mxu0 0
        %1927 = vmatpush1.bf16.msra.mxu0 0
        %1928 = vmatprep.subr.bf16.mxu0 0
        %1929 = vmatpush1.bf16.msra.mxu0 0
        %1930 = vmatprep.subr.bf16.mxu0 0
        %1931 = vmatpush1.bf16.msra.mxu0 0
        %1932 = vmatprep.subr.bf16.mxu0 0
        %1933 = vmatpush1.bf16.msra.mxu0 0
        %1934 = vmatprep.subr.bf16.mxu0 0
        %1935 = vmatpush1.bf16.msra.mxu0 0
        %1936 = vmatprep.subr.bf16.mxu0 0
        %1937 = vmatpush1.bf16.msra.mxu0 0
        %1938 = vmatprep.subr.bf16.mxu0 0
        %1939 = vmatpush1.bf16.msra.mxu0 0
        %1940 = vmatprep.subr.bf16.mxu0 0
        %1941 = vmatpush1.bf16.msra.mxu0 0
        %1942 = vmatprep.mubr.bf16.mxu0 0
        %1943 = vmatmul.mubr.bf16.gmra.mrb[0].mxu0 %v1781
        %v1944 = vpop.f32.mrb[0].mxu0
        %v1945 = vadd.f32 %v1672, %v1944
        %v1946 = vpop.f32.mrb[0].mxu0
        %v1947 = vpop.f32.mrb[0].mxu0
        %v1948 = vadd.f32 %v1677, %v1947
        %v1949 = vpop.f32.mrb[0].mxu0
        %1950 = vmatprep.mubr.bf16.mxu0 0
        %1951 = vmatmul.mubr.bf16.gmra.mrb[0].mxu0 %v1782
        %v1952 = vpop.f32.mrb[0].mxu0
        %v1953 = vadd.f32 %v1682, %v1952
        %v1954 = vpop.f32.mrb[0].mxu0
        %v1955 = vpop.f32.mrb[0].mxu0
        %v1956 = vadd.f32 %v1687, %v1955
        %v1957 = vpop.f32.mrb[0].mxu0
        %1958 = vmatprep.mubr.bf16.mxu0 0
        %1959 = vmatmul.mubr.bf16.gmra.mrb[0].mxu0 %v1783
        %v1960 = vpop.f32.mrb[0].mxu0
        %v1961 = vadd.f32 %v1692, %v1960
        %v1962 = vpop.f32.mrb[0].mxu0
        %v1963 = vpop.f32.mrb[0].mxu0
        %v1964 = vadd.f32 %v1697, %v1963
        %v1965 = vpop.f32.mrb[0].mxu0
        %1966 = vmatprep.mubr.bf16.mxu0 0
        %1967 = vmatmul.mubr.bf16.gmra.mrb[0].mxu0 %v1784
        %v1968 = vpop.f32.mrb[0].mxu0
        %v1969 = vadd.f32 %v1702, %v1968
        %v1970 = vpop.f32.mrb[0].mxu0
        %v1971 = vpop.f32.mrb[0].mxu0
        %v1972 = vadd.f32 %v1707, %v1971
        %v1973 = vpop.f32.mrb[0].mxu0
        %1974 = vmatprep.mubr.bf16.mxu0 0
        %1975 = vmatmul.mubr.bf16.gmra.mrb[0].mxu0 %v1785
        %v1976 = vpop.f32.mrb[0].mxu0
        %v1977 = vadd.f32 %v1712, %v1976
        %v1978 = vpop.f32.mrb[0].mxu0
        %v1979 = vpop.f32.mrb[0].mxu0
        %v1980 = vadd.f32 %v1717, %v1979
        %v1981 = vpop.f32.mrb[0].mxu0
        %1982 = vmatprep.mubr.bf16.mxu0 0
        %1983 = vmatmul.mubr.bf16.gmra.mrb[0].mxu0 %v1786
        %v1984 = vpop.f32.mrb[0].mxu0
        %v1985 = vadd.f32 %v1722, %v1984
        %v1986 = vpop.f32.mrb[0].mxu0
        %v1987 = vpop.f32.mrb[0].mxu0
        %v1988 = vadd.f32 %v1727, %v1987
        %v1989 = vpop.f32.mrb[0].mxu0
        %1990 = vmatprep.mubr.bf16.mxu0 0
        %1991 = vmatmul.mubr.bf16.gmra.mrb[0].mxu0 %v1787
        %v1992 = vpop.f32.mrb[0].mxu0
        %v1993 = vadd.f32 %v1732, %v1992
        %v1994 = vpop.f32.mrb[0].mxu0
        %v1995 = vpop.f32.mrb[0].mxu0
        %v1996 = vadd.f32 %v1737, %v1995
        %v1997 = vpop.f32.mrb[0].mxu0
        %1998 = vmatprep.mubr.bf16.mxu0 0
        %1999 = vmatmul.mubr.bf16.gmra.mrb[0].mxu0 %v1788
        %v2000 = vpop.f32.mrb[0].mxu0
        %v2001 = vadd.f32 %v1742, %v2000
        %v2002 = vpop.f32.mrb[0].mxu0
        %v2003 = vpop.f32.mrb[0].mxu0
        %v2004 = vadd.f32 %v1747, %v2003
        %v2005 = vpop.f32.mrb[0].mxu0
        %2006 = vdwg.mxu0
        %vm2007 = vcmp.ge.f32.partialorder %v1832, 0.0
        %vm2008 = vcmp.ge.f32.partialorder %v1834, 0.0
        %vm2009 = vcmp.ge.f32.partialorder %v1945, 0.0
        %vm2010 = vcmp.ge.f32.partialorder %v1836, 0.0
        %vm2011 = vcmp.ge.f32.partialorder %v1838, 0.0
        %vm2012 = vcmp.ge.f32.partialorder %v1948, 0.0
        %vm2013 = vcmp.ge.f32.partialorder %v1842, 0.0
        %vm2014 = vcmp.ge.f32.partialorder %v1844, 0.0
        %vm2015 = vcmp.ge.f32.partialorder %v1953, 0.0
        %vm2016 = vcmp.ge.f32.partialorder %v1846, 0.0
        %vm2017 = vcmp.ge.f32.partialorder %v1848, 0.0
        %vm2018 = vcmp.ge.f32.partialorder %v1956, 0.0
        %vm2019 = vcmp.ge.f32.partialorder %v1852, 0.0
        %vm2020 = vcmp.ge.f32.partialorder %v1854, 0.0
        %vm2021 = vcmp.ge.f32.partialorder %v1961, 0.0
        %vm2022 = vcmp.ge.f32.partialorder %v1856, 0.0
        %vm2023 = vcmp.ge.f32.partialorder %v1858, 0.0
        %vm2024 = vcmp.ge.f32.partialorder %v1964, 0.0
        %vm2025 = vcmp.ge.f32.partialorder %v1862, 0.0
        %vm2026 = vcmp.ge.f32.partialorder %v1864, 0.0
        %vm2027 = vcmp.ge.f32.partialorder %v1969, 0.0
        %vm2028 = vcmp.ge.f32.partialorder %v1866, 0.0
        %vm2029 = vcmp.ge.f32.partialorder %v1868, 0.0
        %vm2030 = vcmp.ge.f32.partialorder %v1972, 0.0
        %vm2031 = vcmp.ge.f32.partialorder %v1872, 0.0
        %vm2032 = vcmp.ge.f32.partialorder %v1874, 0.0
        %vm2033 = vcmp.ge.f32.partialorder %v1977, 0.0
        %vm2034 = vcmp.ge.f32.partialorder %v1876, 0.0
        %vm2035 = vcmp.ge.f32.partialorder %v1878, 0.0
        %vm2036 = vcmp.ge.f32.partialorder %v1980, 0.0
        %vm2037 = vcmp.ge.f32.partialorder %v1882, 0.0
        %vm2038 = vcmp.ge.f32.partialorder %v1884, 0.0
        %vm2039 = vcmp.ge.f32.partialorder %v1985, 0.0
        %vm2040 = vcmp.ge.f32.partialorder %v1886, 0.0
        %vm2041 = vcmp.ge.f32.partialorder %v1888, 0.0
        %vm2042 = vcmp.ge.f32.partialorder %v1988, 0.0
        %vm2043 = vcmp.ge.f32.partialorder %v1892, 0.0
        %vm2044 = vcmp.ge.f32.partialorder %v1894, 0.0
        %vm2045 = vcmp.ge.f32.partialorder %v1993, 0.0
        %vm2046 = vcmp.ge.f32.partialorder %v1896, 0.0
        %vm2047 = vcmp.ge.f32.partialorder %v1898, 0.0
        %vm2048 = vcmp.ge.f32.partialorder %v1996, 0.0
        %vm2049 = vcmp.ge.f32.partialorder %v1902, 0.0
        %vm2050 = vcmp.ge.f32.partialorder %v1904, 0.0
        %vm2051 = vcmp.ge.f32.partialorder %v2001, 0.0
        %vm2052 = vcmp.ge.f32.partialorder %v1906, 0.0
        %vm2053 = vcmp.ge.f32.partialorder %v1908, 0.0
        %vm2054 = vcmp.ge.f32.partialorder %v2004, 0.0
        %v2055 = vmul.f32 %v1832, 0.01
        %v2056 = vmul.f32 %v1834, 0.01
        %v2057 = vmul.f32 %v1945, 0.01
        %v2058 = vmul.f32 %v1836, 0.01
        %v2059 = vmul.f32 %v1838, 0.01
        %v2060 = vmul.f32 %v1948, 0.01
        %v2061 = vmul.f32 %v1842, 0.01
        %v2062 = vmul.f32 %v1844, 0.01
        %v2063 = vmul.f32 %v1953, 0.01
        %v2064 = vmul.f32 %v1846, 0.01
        %v2065 = vmul.f32 %v1848, 0.01
        %v2066 = vmul.f32 %v1956, 0.01
        %v2067 = vmul.f32 %v1852, 0.01
        %v2068 = vmul.f32 %v1854, 0.01
        %v2069 = vmul.f32 %v1961, 0.01
        %v2070 = vmul.f32 %v1856, 0.01
        %v2071 = vmul.f32 %v1858, 0.01
        %v2072 = vmul.f32 %v1964, 0.01
        %v2073 = vmul.f32 %v1862, 0.01
        %v2074 = vmul.f32 %v1864, 0.01
        %v2075 = vmul.f32 %v1969, 0.01
        %v2076 = vmul.f32 %v1866, 0.01
        %v2077 = vmul.f32 %v1868, 0.01
        %v2078 = vmul.f32 %v1972, 0.01
        %v2079 = vmul.f32 %v1872, 0.01
        %v2080 = vmul.f32 %v1874, 0.01
        %v2081 = vmul.f32 %v1977, 0.01
        %v2082 = vmul.f32 %v1876, 0.01
        %v2083 = vmul.f32 %v1878, 0.01
        %v2084 = vmul.f32 %v1980, 0.01
        %v2085 = vmul.f32 %v1882, 0.01
        %v2086 = vmul.f32 %v1884, 0.01
        %v2087 = vmul.f32 %v1985, 0.01
        %v2088 = vmul.f32 %v1886, 0.01
        %v2089 = vmul.f32 %v1888, 0.01
        %v2090 = vmul.f32 %v1988, 0.01
        %v2091 = vmul.f32 %v1892, 0.01
        %v2092 = vmul.f32 %v1894, 0.01
        %v2093 = vmul.f32 %v1993, 0.01
        %v2094 = vmul.f32 %v1896, 0.01
        %v2095 = vmul.f32 %v1898, 0.01
        %v2096 = vmul.f32 %v1996, 0.01
        %v2097 = vmul.f32 %v1902, 0.01
        %v2098 = vmul.f32 %v1904, 0.01
        %v2099 = vmul.f32 %v2001, 0.01
        %v2100 = vmul.f32 %v1906, 0.01
        %v2101 = vmul.f32 %v1908, 0.01
        %v2102 = vmul.f32 %v2004, 0.01
        %v2103 = vsel %vm2007, %v1832, %v2055
        %v2104 = vsel %vm2008, %v1834, %v2056
        %v2105 = vsel %vm2009, %v1945, %v2057
        %v2106 = vsel %vm2010, %v1836, %v2058
        %v2107 = vsel %vm2011, %v1838, %v2059
        %v2108 = vsel %vm2012, %v1948, %v2060
        %v2109 = vsel %vm2013, %v1842, %v2061
        %v2110 = vsel %vm2014, %v1844, %v2062
        %v2111 = vsel %vm2015, %v1953, %v2063
        %v2112 = vsel %vm2016, %v1846, %v2064
        %v2113 = vsel %vm2017, %v1848, %v2065
        %v2114 = vsel %vm2018, %v1956, %v2066
        %v2115 = vsel %vm2019, %v1852, %v2067
        %v2116 = vsel %vm2020, %v1854, %v2068
        %v2117 = vsel %vm2021, %v1961, %v2069
        %v2118 = vsel %vm2022, %v1856, %v2070
        %v2119 = vsel %vm2023, %v1858, %v2071
        %v2120 = vsel %vm2024, %v1964, %v2072
        %v2121 = vsel %vm2025, %v1862, %v2073
        %v2122 = vsel %vm2026, %v1864, %v2074
        %v2123 = vsel %vm2027, %v1969, %v2075
        %v2124 = vsel %vm2028, %v1866, %v2076
        %v2125 = vsel %vm2029, %v1868, %v2077
        %v2126 = vsel %vm2030, %v1972, %v2078
        %v2127 = vsel %vm2031, %v1872, %v2079
        %v2128 = vsel %vm2032, %v1874, %v2080
        %v2129 = vsel %vm2033, %v1977, %v2081
        %v2130 = vsel %vm2034, %v1876, %v2082
        %v2131 = vsel %vm2035, %v1878, %v2083
        %v2132 = vsel %vm2036, %v1980, %v2084
        %v2133 = vsel %vm2037, %v1882, %v2085
        %v2134 = vsel %vm2038, %v1884, %v2086
        %v2135 = vsel %vm2039, %v1985, %v2087
        %v2136 = vsel %vm2040, %v1886, %v2088
        %v2137 = vsel %vm2041, %v1888, %v2089
        %v2138 = vsel %vm2042, %v1988, %v2090
        %v2139 = vsel %vm2043, %v1892, %v2091
        %v2140 = vsel %vm2044, %v1894, %v2092
        %v2141 = vsel %vm2045, %v1993, %v2093
        %v2142 = vsel %vm2046, %v1896, %v2094
        %v2143 = vsel %vm2047, %v1898, %v2095
        %v2144 = vsel %vm2048, %v1996, %v2096
        %v2145 = vsel %vm2049, %v1902, %v2097
        %v2146 = vsel %vm2050, %v1904, %v2098
        %v2147 = vsel %vm2051, %v2001, %v2099
        %v2148 = vsel %vm2052, %v1906, %v2100
        %v2149 = vsel %vm2053, %v1908, %v2101
        %v2150 = vsel %vm2054, %v2004, %v2102
        %s2151 = scalar_lea.vmem %s7, 24
        %v2152 = vld [vmem:[%s2151] sm:$0xf]
        %v2153 = vld [vmem:[%s2151 + $0x4] sm:$0xf]
        %v2154 = vld [vmem:[%s2151 + $0x8] sm:$0xf]
        %v2155 = vld [vmem:[%s2151 + $0xc] sm:$0xf]
        %v2156 = vld [vmem:[%s2151 + $0x10] sm:$0xf]
        %v2157 = vld [vmem:[%s2151 + $0x14] sm:$0xf]
        %v2158 = vpack.c.bf16 %v2106, %v2103
        %v2159 = vpack.c.bf16 %v2107, %v2104
        %v2160 = vpack.c.bf16 %v2108, %v2105
        %v2161 = vpack.c.bf16 %v2112, %v2109
        %v2162 = vpack.c.bf16 %v2113, %v2110
        %v2163 = vpack.c.bf16 %v2114, %v2111
        %v2164 = vpack.c.bf16 %v2118, %v2115
        %v2165 = vpack.c.bf16 %v2119, %v2116
        %v2166 = vpack.c.bf16 %v2120, %v2117
        %v2167 = vpack.c.bf16 %v2124, %v2121
        %v2168 = vpack.c.bf16 %v2125, %v2122
        %v2169 = vpack.c.bf16 %v2126, %v2123
        %v2170 = vpack.c.bf16 %v2130, %v2127
        %v2171 = vpack.c.bf16 %v2131, %v2128
        %v2172 = vpack.c.bf16 %v2132, %v2129
        %v2173 = vpack.c.bf16 %v2136, %v2133
        %v2174 = vpack.c.bf16 %v2137, %v2134
        %v2175 = vpack.c.bf16 %v2138, %v2135
        %v2176 = vpack.c.bf16 %v2142, %v2139
        %v2177 = vpack.c.bf16 %v2143, %v2140
        %v2178 = vpack.c.bf16 %v2144, %v2141
        %v2179 = vpack.c.bf16 %v2148, %v2145
        %v2180 = vpack.c.bf16 %v2149, %v2146
        %v2181 = vpack.c.bf16 %v2150, %v2147
        %s2182 = scalar_lea.vmem %s8, 48
        %v2183 = vld [vmem:[%s2182] sm:$0xff]
        %v2184 = vld [vmem:[%s2182 + $0x8] sm:$0xff]
        %v2185 = vld [vmem:[%s2182 + $0x10] sm:$0xff]
        %v2186 = vld [vmem:[%s2182 + $0x18] sm:$0xff]
        %v2187 = vld [vmem:[%s2182 + $0x20] sm:$0xff]
        %v2188 = vld [vmem:[%s2182 + $0x28] sm:$0xff]
        %2190 = vset.pattern.permute.xlu0 0
        %2191 = vperm.xlu0 %2190, %v2183
        %v2192 = vpop.permute.xlu0 %2191
        %2195 = vset.pattern.permute.xlu0 0
        %2196 = vperm.xlu0 %2195, %v2184
        %v2197 = vpop.permute.xlu0 %2196
        %2200 = vset.pattern.permute.xlu0 0
        %2201 = vperm.xlu0 %2200, %v2185
        %v2202 = vpop.permute.xlu0 %2201
        %2205 = vset.pattern.permute.xlu0 0
        %2206 = vperm.xlu0 %2205, %v2186
        %v2207 = vpop.permute.xlu0 %2206
        %2210 = vset.pattern.permute.xlu0 0
        %2211 = vperm.xlu0 %2210, %v2187
        %v2212 = vpop.permute.xlu0 %2211
        %2215 = vset.pattern.permute.xlu0 0
        %2216 = vperm.xlu0 %2215, %v2188
        %v2217 = vpop.permute.xlu0 %2216
        %v2225 = vunpack.c.l.b16 %v2152
        %v2226 = vunpack.c.l.b16 %v2153
        %v2227 = vunpack.c.l.b16 %v2154
        %v2228 = vunpack.c.l.b16 %v2155
        %v2229 = vunpack.c.l.b16 %v2156
        %v2230 = vunpack.c.l.b16 %v2157
        %v2231 = vpack.c.b16 %v2226, %v2225
        %v2232 = vpack.c.b16 %v2228, %v2227
        %v2233 = vpack.c.b16 %v2230, %v2229
        %2237 = vmatprep.subr.bf16.mxu0 %v2159
        %2238 = vmatpush1.bf16.msra.mxu0 %v2158
        %2239 = vmatprep.subr.bf16.mxu0 %v2162
        %2240 = vmatpush1.bf16.msra.mxu0 %v2161
        %2241 = vmatprep.subr.bf16.mxu0 %v2165
        %2242 = vmatpush1.bf16.msra.mxu0 %v2164
        %2243 = vmatprep.subr.bf16.mxu0 %v2168
        %2244 = vmatpush1.bf16.msra.mxu0 %v2167
        %2245 = vmatprep.subr.bf16.mxu0 %v2171
        %2246 = vmatpush1.bf16.msra.mxu0 %v2170
        %2247 = vmatprep.subr.bf16.mxu0 %v2174
        %2248 = vmatpush1.bf16.msra.mxu0 %v2173
        %2249 = vmatprep.subr.bf16.mxu0 %v2177
        %2250 = vmatpush1.bf16.msra.mxu0 %v2176
        %2251 = vmatprep.subr.bf16.mxu0 %v2180
        %2252 = vmatpush1.bf16.msra.mxu0 %v2179
        %2253 = vmatprep.subr.bf16.mxu0 0
        %2254 = vmatpush1.bf16.msra.mxu0 0
        %2255 = vmatprep.subr.bf16.mxu0 0
        %2256 = vmatpush1.bf16.msra.mxu0 0
        %2257 = vmatprep.subr.bf16.mxu0 0
        %2258 = vmatpush1.bf16.msra.mxu0 0
        %2259 = vmatprep.subr.bf16.mxu0 0
        %2260 = vmatpush1.bf16.msra.mxu0 0
        %2261 = vmatprep.subr.bf16.mxu0 0
        %2262 = vmatpush1.bf16.msra.mxu0 0
        %2263 = vmatprep.subr.bf16.mxu0 0
        %2264 = vmatpush1.bf16.msra.mxu0 0
        %2265 = vmatprep.subr.bf16.mxu0 0
        %2266 = vmatpush1.bf16.msra.mxu0 0
        %2267 = vmatprep.subr.bf16.mxu0 0
        %2268 = vmatpush1.bf16.msra.mxu0 0
        %2269 = vmatprep.mubr.bf16.mxu0 0
        %2270 = vmatmul.mubr.bf16.gmra.mrb[0].mxu0 %v2231
        %v2271 = vpop.f32.mrb[0].mxu0
        %v2272 = vadd.f32 %v2192, %v2271
        %v2273 = vpop.f32.mrb[0].mxu0
        %v2274 = vadd.f32 %v2192, %v2273
        %v2275 = vpop.f32.mrb[0].mxu0
        %v2276 = vadd.f32 %v2197, %v2275
        %v2277 = vpop.f32.mrb[0].mxu0
        %v2278 = vadd.f32 %v2197, %v2277
        %2279 = vmatprep.mubr.bf16.mxu0 0
        %2280 = vmatmul.mubr.bf16.gmra.mrb[0].mxu0 %v2232
        %v2281 = vpop.f32.mrb[0].mxu0
        %v2282 = vadd.f32 %v2202, %v2281
        %v2283 = vpop.f32.mrb[0].mxu0
        %v2284 = vadd.f32 %v2202, %v2283
        %v2285 = vpop.f32.mrb[0].mxu0
        %v2286 = vadd.f32 %v2207, %v2285
        %v2287 = vpop.f32.mrb[0].mxu0
        %v2288 = vadd.f32 %v2207, %v2287
        %2289 = vmatprep.mubr.bf16.mxu0 0
        %2290 = vmatmul.mubr.bf16.gmra.mrb[0].mxu0 %v2233
        %v2291 = vpop.f32.mrb[0].mxu0
        %v2292 = vadd.f32 %v2212, %v2291
        %v2293 = vpop.f32.mrb[0].mxu0
        %v2294 = vadd.f32 %v2212, %v2293
        %v2295 = vpop.f32.mrb[0].mxu0
        %v2296 = vadd.f32 %v2217, %v2295
        %v2297 = vpop.f32.mrb[0].mxu0
        %v2298 = vadd.f32 %v2217, %v2297
        %2299 = vdwg.mxu0
        %2300 = vmatprep.subr.bf16.mxu0 0
        %2301 = vmatpush1.bf16.msra.mxu0 %v2160
        %2302 = vmatprep.subr.bf16.mxu0 0
        %2303 = vmatpush1.bf16.msra.mxu0 %v2163
        %2304 = vmatprep.subr.bf16.mxu0 0
        %2305 = vmatpush1.bf16.msra.mxu0 %v2166
        %2306 = vmatprep.subr.bf16.mxu0 0
        %2307 = vmatpush1.bf16.msra.mxu0 %v2169
        %2308 = vmatprep.subr.bf16.mxu0 0
        %2309 = vmatpush1.bf16.msra.mxu0 %v2172
        %2310 = vmatprep.subr.bf16.mxu0 0
        %2311 = vmatpush1.bf16.msra.mxu0 %v2175
        %2312 = vmatprep.subr.bf16.mxu0 0
        %2313 = vmatpush1.bf16.msra.mxu0 %v2178
        %2314 = vmatprep.subr.bf16.mxu0 0
        %2315 = vmatpush1.bf16.msra.mxu0 %v2181
        %2316 = vmatprep.subr.bf16.mxu0 0
        %2317 = vmatpush1.bf16.msra.mxu0 0
        %2318 = vmatprep.subr.bf16.mxu0 0
        %2319 = vmatpush1.bf16.msra.mxu0 0
        %2320 = vmatprep.subr.bf16.mxu0 0
        %2321 = vmatpush1.bf16.msra.mxu0 0
        %2322 = vmatprep.subr.bf16.mxu0 0
        %2323 = vmatpush1.bf16.msra.mxu0 0
        %2324 = vmatprep.subr.bf16.mxu0 0
        %2325 = vmatpush1.bf16.msra.mxu0 0
        %2326 = vmatprep.subr.bf16.mxu0 0
        %2327 = vmatpush1.bf16.msra.mxu0 0
        %2328 = vmatprep.subr.bf16.mxu0 0
        %2329 = vmatpush1.bf16.msra.mxu0 0
        %2330 = vmatprep.subr.bf16.mxu0 0
        %2331 = vmatpush1.bf16.msra.mxu0 0
        %2332 = vmatprep.mubr.bf16.mxu0 0
        %2333 = vmatmul.mubr.bf16.gmra.mrb[0].mxu0 %v2231
        %v2334 = vpop.f32.mrb[0].mxu0
        %v2335 = vadd.f32 %v2192, %v2334
        %v2336 = vpop.f32.mrb[0].mxu0
        %v2337 = vpop.f32.mrb[0].mxu0
        %v2338 = vadd.f32 %v2197, %v2337
        %v2339 = vpop.f32.mrb[0].mxu0
        %2340 = vmatprep.mubr.bf16.mxu0 0
        %2341 = vmatmul.mubr.bf16.gmra.mrb[0].mxu0 %v2232
        %v2342 = vpop.f32.mrb[0].mxu0
        %v2343 = vadd.f32 %v2202, %v2342
        %v2344 = vpop.f32.mrb[0].mxu0
        %v2345 = vpop.f32.mrb[0].mxu0
        %v2346 = vadd.f32 %v2207, %v2345
        %v2347 = vpop.f32.mrb[0].mxu0
        %2348 = vmatprep.mubr.bf16.mxu0 0
        %2349 = vmatmul.mubr.bf16.gmra.mrb[0].mxu0 %v2233
        %v2350 = vpop.f32.mrb[0].mxu0
        %v2351 = vadd.f32 %v2212, %v2350
        %v2352 = vpop.f32.mrb[0].mxu0
        %v2353 = vpop.f32.mrb[0].mxu0
        %v2354 = vadd.f32 %v2217, %v2353
        %v2355 = vpop.f32.mrb[0].mxu0
        %2356 = vdwg.mxu0
        %v2357 = vtanh.pop %v2272
        %v2358 = vtanh.pop %v2274
        %v2359 = vtanh.pop %v2335
        %v2360 = vtanh.pop %v2276
        %v2361 = vtanh.pop %v2278
        %v2362 = vtanh.pop %v2338
        %v2363 = vtanh.pop %v2282
        %v2364 = vtanh.pop %v2284
        %v2365 = vtanh.pop %v2343
        %2367 = vset.pattern.permute.xlu0 0
        %2368 = vperm.xlu0 %2367, %v1132
        %v2369 = vpop.permute.xlu0 %2368
        %2372 = vset.pattern.permute.xlu0 0
        %2373 = vperm.xlu0 %2372, %v1133
        %v2374 = vpop.permute.xlu0 %2373
        %2377 = vset.pattern.permute.xlu0 0
        %2378 = vperm.xlu0 %2377, %v1134
        %v2379 = vpop.permute.xlu0 %2378
        %v2381 = vmul.f32 %v2357, %v2369
        %v2382 = vmul.f32 %v2358, %v2369
        %v2383 = vmul.f32 %v2359, %v2369
        %v2384 = vmul.f32 %v2360, %v2374
        %v2385 = vmul.f32 %v2361, %v2374
        %v2386 = vmul.f32 %v2362, %v2374
        %v2387 = vmul.f32 %v2363, %v2379
        %v2388 = vmul.f32 %v2364, %v2379
        %v2389 = vmul.f32 %v2365, %v2379
        %v2390 = vsub.f32 %v394, %v2286
        %v2391 = vsub.f32 %v395, %v2288
        %v2392 = vsub.f32 %v396, %v2346
        %v2393 = vsub.f32 %v397, %v2292
        %v2394 = vsub.f32 %v398, %v2294
        %v2395 = vsub.f32 %v399, %v2351
        %v2396 = vsub.f32 %v400, %v2296
        %v2397 = vsub.f32 %v401, %v2298
        %v2398 = vsub.f32 %v402, %v2354
        %v2399 = vmul.f32 %v2369, %v2390
        %v2400 = vmul.f32 %v2369, %v2391
        %v2401 = vmul.f32 %v2369, %v2392
        %v2402 = vmul.f32 %v2374, %v2393
        %v2403 = vmul.f32 %v2374, %v2394
        %v2404 = vmul.f32 %v2374, %v2395
        %v2405 = vmul.f32 %v2379, %v2396
        %v2406 = vmul.f32 %v2379, %v2397
        %v2407 = vmul.f32 %v2379, %v2398
        %v2408 = vsub.f32 0.0, %v2381
        %v2409 = vsub.f32 0.0, %v2382
        %v2410 = vsub.f32 0.0, %v2383
        %v2411 = vsub.f32 0.0, %v2384
        %v2412 = vsub.f32 0.0, %v2385
        %v2413 = vsub.f32 0.0, %v2386
        %v2414 = vsub.f32 0.0, %v2387
        %v2415 = vsub.f32 0.0, %v2388
        %v2416 = vsub.f32 0.0, %v2389
        %v2417 = vmul.f32 %v2408, 1.442695
        %v2418 = vpow.pop %v2417
        %v2419 = vmul.f32 %v2409, 1.442695
        %v2420 = vpow.pop %v2419
        %v2421 = vmul.f32 %v2410, 1.442695
        %v2422 = vpow.pop %v2421
        %v2423 = vmul.f32 %v2411, 1.442695
        %v2424 = vpow.pop %v2423
        %v2425 = vmul.f32 %v2412, 1.442695
        %v2426 = vpow.pop %v2425
        %v2427 = vmul.f32 %v2413, 1.442695
        %v2428 = vpow.pop %v2427
        %v2429 = vmul.f32 %v2414, 1.442695
        %v2430 = vpow.pop %v2429
        %v2431 = vmul.f32 %v2415, 1.442695
        %v2432 = vpow.pop %v2431
        %v2433 = vmul.f32 %v2416, 1.442695
        %v2434 = vpow.pop %v2433
        %v2435 = vmul.f32 %v2399, %v2418
        %v2436 = vmul.f32 %v2400, %v2420
        %v2437 = vmul.f32 %v2401, %v2422
        %v2438 = vmul.f32 %v2402, %v2424
        %v2439 = vmul.f32 %v2403, %v2426
        %v2440 = vmul.f32 %v2404, %v2428
        %v2441 = vmul.f32 %v2405, %v2430
        %v2442 = vmul.f32 %v2406, %v2432
        %v2443 = vmul.f32 %v2407, %v2434
        %v2444 = vadd.f32 %v2435, %v1150
        %v2445 = vadd.f32 %v2436, %v1151
        %v2446 = vadd.f32 %v2437, %v1152
        %v2447 = vadd.f32 %v2438, %v1153
        %v2448 = vadd.f32 %v2439, %v1154
        %v2449 = vadd.f32 %v2440, %v1155
        %v2450 = vadd.f32 %v2441, %v1156
        %v2451 = vadd.f32 %v2442, %v1157
        %v2452 = vadd.f32 %v2443, %v1158
        %v2453 = vadd.f32 %v2381, %v2384
        %v2454 = vadd.f32 %v2453, %v2387
        %v2455 = vrot.slane %v2454, 4
        %v2456 = vadd.f32 %v2454, %v2455
        %v2457 = vrot.slane %v2456, 2
        %v2458 = vadd.f32 %v2456, %v2457
        %v2459 = vrot.slane %v2458, 1
        %v2460 = vadd.f32 %v2458, %v2459
        %v2461 = vadd.f32 %v2382, %v2385
        %v2462 = vadd.f32 %v2461, %v2388
        %v2463 = vrot.slane %v2462, 4
        %v2464 = vadd.f32 %v2462, %v2463
        %v2465 = vrot.slane %v2464, 2
        %v2466 = vadd.f32 %v2464, %v2465
        %v2467 = vrot.slane %v2466, 1
        %v2468 = vadd.f32 %v2466, %v2467
        %v2469 = vadd.f32 %v2383, %v2386
        %v2470 = vadd.f32 %v2469, %v2389
        %v2471 = vrot.slane %v2470, 4
        %v2472 = vadd.f32 %v2470, %v2471
        %v2473 = vrot.slane %v2472, 2
        %v2474 = vadd.f32 %v2472, %v2473
        %v2475 = vrot.slane %v2474, 1
        %v2476 = vadd.f32 %v2474, %v2475
        %v2477 = vsub.f32 0.0, %v2460
        %v2478 = vsub.f32 0.0, %v2468
        %v2479 = vsub.f32 0.0, %v2476
        %v2480 = vld [vmem:[%s1] sm:$0xff]
        %v2481 = vld [vmem:[%s1 + $0x8] sm:$0xff]
        %v2482 = vld [vmem:[%s1 + $0x10] sm:$0xff]
        %v2483 = vsub.f32 1.0, %v2480
        %v2484 = vsub.f32 1.0, %v2481
        %v2485 = vsub.f32 1.0, %v2482
        %2487 = vset.pattern.permute.xlu0 0
        %2488 = vperm.xlu0 %2487, %v2480
        %v2489 = vpop.permute.xlu0 %2488
        %2492 = vset.pattern.permute.xlu0 0
        %2493 = vperm.xlu0 %2492, %v2481
        %v2494 = vpop.permute.xlu0 %2493
        %2497 = vset.pattern.permute.xlu0 0
        %2498 = vperm.xlu0 %2497, %v2482
        %v2499 = vpop.permute.xlu0 %2498
        %v2501 = vmul.f32 %v2444, %v2489
        %v2502 = vmul.f32 %v2445, %v2489
        %v2503 = vmul.f32 %v2446, %v2489
        %v2504 = vmul.f32 %v2447, %v2494
        %v2505 = vmul.f32 %v2448, %v2494
        %v2506 = vmul.f32 %v2449, %v2494
        %v2507 = vmul.f32 %v2450, %v2499
        %v2508 = vmul.f32 %v2451, %v2499
        %v2509 = vmul.f32 %v2452, %v2499
        %v2510 = vld [vmem:[%s2] sm:$0xf]
        %v2511 = vld [vmem:[%s2 + $0x4] sm:$0xf]
        %v2512 = vld [vmem:[%s2 + $0x8] sm:$0xf]
        %v2513 = vld [vmem:[%s2 + $0xc] sm:$0xf]
        %v2514 = vld [vmem:[%s2 + $0x10] sm:$0xf]
        %v2515 = vld [vmem:[%s2 + $0x14] sm:$0xf]
        %v2516 = vld [vmem:[%s2 + $0x18] sm:$0xf]
        %v2517 = vld [vmem:[%s2 + $0x1c] sm:$0xf]
        %v2518 = vld [vmem:[%s2 + $0x20] sm:$0xf]
        %v2519 = vld [vmem:[%s2 + $0x24] sm:$0xf]
        %v2520 = vld [vmem:[%s2 + $0x28] sm:$0xf]
        %v2521 = vld [vmem:[%s2 + $0x2c] sm:$0xf]
        %v2522 = vld [vmem:[%s2 + $0x30] sm:$0xf]
        %v2523 = vld [vmem:[%s2 + $0x34] sm:$0xf]
        %v2524 = vld [vmem:[%s2 + $0x38] sm:$0xf]
        %v2525 = vld [vmem:[%s2 + $0x3c] sm:$0xf]
        %v2526 = vpack.c.bf16 %v2447, %v2444
        %v2527 = vpack.c.bf16 %v2448, %v2445
        %v2528 = vpack.c.bf16 %v2449, %v2446
        %v2529 = vpack.c.bf16 %v2450, %v2450
        %v2530 = vpack.c.bf16 %v2451, %v2451
        %v2531 = vpack.c.bf16 %v2452, %v2452
        %v2548 = vunpack.c.l.b16 %v2510
        %v2549 = vunpack.c.l.b16 %v2511
        %v2550 = vunpack.c.l.b16 %v2512
        %v2551 = vunpack.c.l.b16 %v2513
        %v2552 = vunpack.c.l.b16 %v2514
        %v2553 = vunpack.c.l.b16 %v2515
        %v2554 = vunpack.c.l.b16 %v2516
        %v2555 = vunpack.c.l.b16 %v2517
        %v2556 = vunpack.c.l.b16 %v2518
        %v2557 = vunpack.c.l.b16 %v2519
        %v2558 = vunpack.c.l.b16 %v2520
        %v2559 = vunpack.c.l.b16 %v2521
        %v2560 = vunpack.c.l.b16 %v2522
        %v2561 = vunpack.c.l.b16 %v2523
        %v2562 = vunpack.c.l.b16 %v2524
        %v2563 = vunpack.c.l.b16 %v2525
        %v2564 = vpack.c.b16 %v2549, %v2548
        %v2565 = vpack.c.b16 %v2551, %v2550
        %v2566 = vpack.c.b16 %v2553, %v2552
        %v2567 = vpack.c.b16 %v2555, %v2554
        %v2568 = vpack.c.b16 %v2557, %v2556
        %v2569 = vpack.c.b16 %v2559, %v2558
        %v2570 = vpack.c.b16 %v2561, %v2560
        %v2571 = vpack.c.b16 %v2563, %v2562
        %v2573 = vsel %vm1222, %v2564, 0
        %v2576 = vsel %vm1222, %v2565, 0
        %v2579 = vsel %vm1222, %v2566, 0
        %v2582 = vsel %vm1222, %v2567, 0
        %v2585 = vsel %vm1222, %v2568, 0
        %v2588 = vsel %vm1222, %v2569, 0
        %v2591 = vsel %vm1222, %v2570, 0
        %v2594 = vsel %vm1222, %v2571, 0
        %v2597 = vsel %vm1247, %v2529, 0
        %v2600 = vsel %vm1247, %v2530, 0
        %v2603 = vsel %vm1247, %v2531, 0
        %2605 = vmatprep.subr.bf16.mxu0 %v2527
        %2606 = vmatpush1.bf16.msra.mxu0 %v2526
        %2607 = vmatprep.subr.bf16.mxu0 %v2600
        %2608 = vmatpush1.bf16.msra.mxu0 %v2597
        %2609 = vmatprep.subr.bf16.mxu0 0
        %2610 = vmatpush1.bf16.msra.mxu0 0
        %2611 = vmatprep.subr.bf16.mxu0 0
        %2612 = vmatpush1.bf16.msra.mxu0 0
        %2613 = vmatprep.subr.bf16.mxu0 0
        %2614 = vmatpush1.bf16.msra.mxu0 0
        %2615 = vmatprep.subr.bf16.mxu0 0
        %2616 = vmatpush1.bf16.msra.mxu0 0
        %2617 = vmatprep.subr.bf16.mxu0 0
        %2618 = vmatpush1.bf16.msra.mxu0 0
        %2619 = vmatprep.subr.bf16.mxu0 0
        %2620 = vmatpush1.bf16.msra.mxu0 0
        %2621 = vmatprep.subr.bf16.mxu0 0
        %2622 = vmatpush1.bf16.msra.mxu0 0
        %2623 = vmatprep.subr.bf16.mxu0 0
        %2624 = vmatpush1.bf16.msra.mxu0 0
        %2625 = vmatprep.subr.bf16.mxu0 0
        %2626 = vmatpush1.bf16.msra.mxu0 0
        %2627 = vmatprep.subr.bf16.mxu0 0
        %2628 = vmatpush1.bf16.msra.mxu0 0
        %2629 = vmatprep.subr.bf16.mxu0 0
        %2630 = vmatpush1.bf16.msra.mxu0 0
        %2631 = vmatprep.subr.bf16.mxu0 0
        %2632 = vmatpush1.bf16.msra.mxu0 0
        %2633 = vmatprep.subr.bf16.mxu0 0
        %2634 = vmatpush1.bf16.msra.mxu0 0
        %2635 = vmatprep.subr.bf16.mxu0 0
        %2636 = vmatpush1.bf16.msra.mxu0 0
        %2637 = vmatprep.mubr.bf16.mxu0 0
        %2638 = vmatmul.mubr.bf16.gmra.mrb[0].mxu0 %v2573
        %v2639 = vpop.f32.mrb[0].mxu0
        %v2640 = vadd.f32 %v809, %v2639
        %v2641 = vpop.f32.mrb[0].mxu0
        %v2642 = vadd.f32 %v811, %v2641
        %v2643 = vpop.f32.mrb[0].mxu0
        %v2644 = vadd.f32 %v813, %v2643
        %v2645 = vpop.f32.mrb[0].mxu0
        %v2646 = vadd.f32 %v815, %v2645
        %2647 = vmatprep.mubr.bf16.mxu0 0
        %2648 = vmatmul.mubr.bf16.gmra.mrb[0].mxu0 %v2576
        %v2649 = vpop.f32.mrb[0].mxu0
        %v2650 = vadd.f32 %v819, %v2649
        %v2651 = vpop.f32.mrb[0].mxu0
        %v2652 = vadd.f32 %v821, %v2651
        %v2653 = vpop.f32.mrb[0].mxu0
        %v2654 = vadd.f32 %v823, %v2653
        %v2655 = vpop.f32.mrb[0].mxu0
        %v2656 = vadd.f32 %v825, %v2655
        %2657 = vmatprep.mubr.bf16.mxu0 0
        %2658 = vmatmul.mubr.bf16.gmra.mrb[0].mxu0 %v2579
        %v2659 = vpop.f32.mrb[0].mxu0
        %v2660 = vadd.f32 %v829, %v2659
        %v2661 = vpop.f32.mrb[0].mxu0
        %v2662 = vadd.f32 %v831, %v2661
        %v2663 = vpop.f32.mrb[0].mxu0
        %v2664 = vadd.f32 %v833, %v2663
        %v2665 = vpop.f32.mrb[0].mxu0
        %v2666 = vadd.f32 %v835, %v2665
        %2667 = vmatprep.mubr.bf16.mxu0 0
        %2668 = vmatmul.mubr.bf16.gmra.mrb[0].mxu0 %v2582
        %v2669 = vpop.f32.mrb[0].mxu0
        %v2670 = vadd.f32 %v839, %v2669
        %v2671 = vpop.f32.mrb[0].mxu0
        %v2672 = vadd.f32 %v841, %v2671
        %v2673 = vpop.f32.mrb[0].mxu0
        %v2674 = vadd.f32 %v843, %v2673
        %v2675 = vpop.f32.mrb[0].mxu0
        %v2676 = vadd.f32 %v845, %v2675
        %2677 = vmatprep.mubr.bf16.mxu0 0
        %2678 = vmatmul.mubr.bf16.gmra.mrb[0].mxu0 %v2585
        %v2679 = vpop.f32.mrb[0].mxu0
        %v2680 = vadd.f32 %v849, %v2679
        %v2681 = vpop.f32.mrb[0].mxu0
        %v2682 = vadd.f32 %v851, %v2681
        %v2683 = vpop.f32.mrb[0].mxu0
        %v2684 = vadd.f32 %v853, %v2683
        %v2685 = vpop.f32.mrb[0].mxu0
        %v2686 = vadd.f32 %v855, %v2685
        %2687 = vmatprep.mubr.bf16.mxu0 0
        %2688 = vmatmul.mubr.bf16.gmra.mrb[0].mxu0 %v2588
        %v2689 = vpop.f32.mrb[0].mxu0
        %v2690 = vadd.f32 %v859, %v2689
        %v2691 = vpop.f32.mrb[0].mxu0
        %v2692 = vadd.f32 %v861, %v2691
        %v2693 = vpop.f32.mrb[0].mxu0
        %v2694 = vadd.f32 %v863, %v2693
        %v2695 = vpop.f32.mrb[0].mxu0
        %v2696 = vadd.f32 %v865, %v2695
        %2697 = vmatprep.mubr.bf16.mxu0 0
        %2698 = vmatmul.mubr.bf16.gmra.mrb[0].mxu0 %v2591
        %v2699 = vpop.f32.mrb[0].mxu0
        %v2700 = vadd.f32 %v869, %v2699
        %v2701 = vpop.f32.mrb[0].mxu0
        %v2702 = vadd.f32 %v871, %v2701
        %v2703 = vpop.f32.mrb[0].mxu0
        %v2704 = vadd.f32 %v873, %v2703
        %v2705 = vpop.f32.mrb[0].mxu0
        %v2706 = vadd.f32 %v875, %v2705
        %2707 = vmatprep.mubr.bf16.mxu0 0
        %2708 = vmatmul.mubr.bf16.gmra.mrb[0].mxu0 %v2594
        %v2709 = vpop.f32.mrb[0].mxu0
        %v2710 = vadd.f32 %v879, %v2709
        %v2711 = vpop.f32.mrb[0].mxu0
        %v2712 = vadd.f32 %v881, %v2711
        %v2713 = vpop.f32.mrb[0].mxu0
        %v2714 = vadd.f32 %v883, %v2713
        %v2715 = vpop.f32.mrb[0].mxu0
        %v2716 = vadd.f32 %v885, %v2715
        %2717 = vdwg.mxu0
        %2718 = vmatprep.subr.bf16.mxu0 0
        %2719 = vmatpush1.bf16.msra.mxu0 %v2528
        %2720 = vmatprep.subr.bf16.mxu0 0
        %2721 = vmatpush1.bf16.msra.mxu0 %v2603
        %2722 = vmatprep.subr.bf16.mxu0 0
        %2723 = vmatpush1.bf16.msra.mxu0 0
        %2724 = vmatprep.subr.bf16.mxu0 0
        %2725 = vmatpush1.bf16.msra.mxu0 0
        %2726 = vmatprep.subr.bf16.mxu0 0
        %2727 = vmatpush1.bf16.msra.mxu0 0
        %2728 = vmatprep.subr.bf16.mxu0 0
        %2729 = vmatpush1.bf16.msra.mxu0 0
        %2730 = vmatprep.subr.bf16.mxu0 0
        %2731 = vmatpush1.bf16.msra.mxu0 0
        %2732 = vmatprep.subr.bf16.mxu0 0
        %2733 = vmatpush1.bf16.msra.mxu0 0
        %2734 = vmatprep.subr.bf16.mxu0 0
        %2735 = vmatpush1.bf16.msra.mxu0 0
        %2736 = vmatprep.subr.bf16.mxu0 0
        %2737 = vmatpush1.bf16.msra.mxu0 0
        %2738 = vmatprep.subr.bf16.mxu0 0
        %2739 = vmatpush1.bf16.msra.mxu0 0
        %2740 = vmatprep.subr.bf16.mxu0 0
        %2741 = vmatpush1.bf16.msra.mxu0 0
        %2742 = vmatprep.subr.bf16.mxu0 0
        %2743 = vmatpush1.bf16.msra.mxu0 0
        %2744 = vmatprep.subr.bf16.mxu0 0
        %2745 = vmatpush1.bf16.msra.mxu0 0
        %2746 = vmatprep.subr.bf16.mxu0 0
        %2747 = vmatpush1.bf16.msra.mxu0 0
        %2748 = vmatprep.subr.bf16.mxu0 0
        %2749 = vmatpush1.bf16.msra.mxu0 0
        %2750 = vmatprep.mubr.bf16.mxu0 0
        %2751 = vmatmul.mubr.bf16.gmra.mrb[0].mxu0 %v2573
        %v2752 = vpop.f32.mrb[0].mxu0
        %v2753 = vadd.f32 %v1002, %v2752
        %v2754 = vpop.f32.mrb[0].mxu0
        %v2755 = vpop.f32.mrb[0].mxu0
        %v2756 = vadd.f32 %v1005, %v2755
        %v2757 = vpop.f32.mrb[0].mxu0
        %2758 = vmatprep.mubr.bf16.mxu0 0
        %2759 = vmatmul.mubr.bf16.gmra.mrb[0].mxu0 %v2576
        %v2760 = vpop.f32.mrb[0].mxu0
        %v2761 = vadd.f32 %v1010, %v2760
        %v2762 = vpop.f32.mrb[0].mxu0
        %v2763 = vpop.f32.mrb[0].mxu0
        %v2764 = vadd.f32 %v1013, %v2763
        %v2765 = vpop.f32.mrb[0].mxu0
        %2766 = vmatprep.mubr.bf16.mxu0 0
        %2767 = vmatmul.mubr.bf16.gmra.mrb[0].mxu0 %v2579
        %v2768 = vpop.f32.mrb[0].mxu0
        %v2769 = vadd.f32 %v1018, %v2768
        %v2770 = vpop.f32.mrb[0].mxu0
        %v2771 = vpop.f32.mrb[0].mxu0
        %v2772 = vadd.f32 %v1021, %v2771
        %v2773 = vpop.f32.mrb[0].mxu0
        %2774 = vmatprep.mubr.bf16.mxu0 0
        %2775 = vmatmul.mubr.bf16.gmra.mrb[0].mxu0 %v2582
        %v2776 = vpop.f32.mrb[0].mxu0
        %v2777 = vadd.f32 %v1026, %v2776
        %v2778 = vpop.f32.mrb[0].mxu0
        %v2779 = vpop.f32.mrb[0].mxu0
        %v2780 = vadd.f32 %v1029, %v2779
        %v2781 = vpop.f32.mrb[0].mxu0
        %2782 = vmatprep.mubr.bf16.mxu0 0
        %2783 = vmatmul.mubr.bf16.gmra.mrb[0].mxu0 %v2585
        %v2784 = vpop.f32.mrb[0].mxu0
        %v2785 = vadd.f32 %v1034, %v2784
        %v2786 = vpop.f32.mrb[0].mxu0
        %v2787 = vpop.f32.mrb[0].mxu0
        %v2788 = vadd.f32 %v1037, %v2787
        %v2789 = vpop.f32.mrb[0].mxu0
        %2790 = vmatprep.mubr.bf16.mxu0 0
        %2791 = vmatmul.mubr.bf16.gmra.mrb[0].mxu0 %v2588
        %v2792 = vpop.f32.mrb[0].mxu0
        %v2793 = vadd.f32 %v1042, %v2792
        %v2794 = vpop.f32.mrb[0].mxu0
        %v2795 = vpop.f32.mrb[0].mxu0
        %v2796 = vadd.f32 %v1045, %v2795
        %v2797 = vpop.f32.mrb[0].mxu0
        %2798 = vmatprep.mubr.bf16.mxu0 0
        %2799 = vmatmul.mubr.bf16.gmra.mrb[0].mxu0 %v2591
        %v2800 = vpop.f32.mrb[0].mxu0
        %v2801 = vadd.f32 %v1050, %v2800
        %v2802 = vpop.f32.mrb[0].mxu0
        %v2803 = vpop.f32.mrb[0].mxu0
        %v2804 = vadd.f32 %v1053, %v2803
        %v2805 = vpop.f32.mrb[0].mxu0
        %2806 = vmatprep.mubr.bf16.mxu0 0
        %2807 = vmatmul.mubr.bf16.gmra.mrb[0].mxu0 %v2594
        %v2808 = vpop.f32.mrb[0].mxu0
        %v2809 = vadd.f32 %v1058, %v2808
        %v2810 = vpop.f32.mrb[0].mxu0
        %v2811 = vpop.f32.mrb[0].mxu0
        %v2812 = vadd.f32 %v1061, %v2811
        %v2813 = vpop.f32.mrb[0].mxu0
        %2814 = vdwg.mxu0
        %vm2815 = vcmp.ge.f32.partialorder %v2640, 0.0
        %vm2816 = vcmp.ge.f32.partialorder %v2642, 0.0
        %vm2817 = vcmp.ge.f32.partialorder %v2753, 0.0
        %vm2818 = vcmp.ge.f32.partialorder %v2644, 0.0
        %vm2819 = vcmp.ge.f32.partialorder %v2646, 0.0
        %vm2820 = vcmp.ge.f32.partialorder %v2756, 0.0
        %vm2821 = vcmp.ge.f32.partialorder %v2650, 0.0
        %vm2822 = vcmp.ge.f32.partialorder %v2652, 0.0
        %vm2823 = vcmp.ge.f32.partialorder %v2761, 0.0
        %vm2824 = vcmp.ge.f32.partialorder %v2654, 0.0
        %vm2825 = vcmp.ge.f32.partialorder %v2656, 0.0
        %vm2826 = vcmp.ge.f32.partialorder %v2764, 0.0
        %vm2827 = vcmp.ge.f32.partialorder %v2660, 0.0
        %vm2828 = vcmp.ge.f32.partialorder %v2662, 0.0
        %vm2829 = vcmp.ge.f32.partialorder %v2769, 0.0
        %vm2830 = vcmp.ge.f32.partialorder %v2664, 0.0
        %vm2831 = vcmp.ge.f32.partialorder %v2666, 0.0
        %vm2832 = vcmp.ge.f32.partialorder %v2772, 0.0
        %vm2833 = vcmp.ge.f32.partialorder %v2670, 0.0
        %vm2834 = vcmp.ge.f32.partialorder %v2672, 0.0
        %vm2835 = vcmp.ge.f32.partialorder %v2777, 0.0
        %vm2836 = vcmp.ge.f32.partialorder %v2674, 0.0
        %vm2837 = vcmp.ge.f32.partialorder %v2676, 0.0
        %vm2838 = vcmp.ge.f32.partialorder %v2780, 0.0
        %vm2839 = vcmp.ge.f32.partialorder %v2680, 0.0
        %vm2840 = vcmp.ge.f32.partialorder %v2682, 0.0
        %vm2841 = vcmp.ge.f32.partialorder %v2785, 0.0
        %vm2842 = vcmp.ge.f32.partialorder %v2684, 0.0
        %vm2843 = vcmp.ge.f32.partialorder %v2686, 0.0
        %vm2844 = vcmp.ge.f32.partialorder %v2788, 0.0
        %vm2845 = vcmp.ge.f32.partialorder %v2690, 0.0
        %vm2846 = vcmp.ge.f32.partialorder %v2692, 0.0
        %vm2847 = vcmp.ge.f32.partialorder %v2793, 0.0
        %vm2848 = vcmp.ge.f32.partialorder %v2694, 0.0
        %vm2849 = vcmp.ge.f32.partialorder %v2696, 0.0
        %vm2850 = vcmp.ge.f32.partialorder %v2796, 0.0
        %vm2851 = vcmp.ge.f32.partialorder %v2700, 0.0
        %vm2852 = vcmp.ge.f32.partialorder %v2702, 0.0
        %vm2853 = vcmp.ge.f32.partialorder %v2801, 0.0
        %vm2854 = vcmp.ge.f32.partialorder %v2704, 0.0
        %vm2855 = vcmp.ge.f32.partialorder %v2706, 0.0
        %vm2856 = vcmp.ge.f32.partialorder %v2804, 0.0
        %vm2857 = vcmp.ge.f32.partialorder %v2710, 0.0
        %vm2858 = vcmp.ge.f32.partialorder %v2712, 0.0
        %vm2859 = vcmp.ge.f32.partialorder %v2809, 0.0
        %vm2860 = vcmp.ge.f32.partialorder %v2714, 0.0
        %vm2861 = vcmp.ge.f32.partialorder %v2716, 0.0
        %vm2862 = vcmp.ge.f32.partialorder %v2812, 0.0
        %v2863 = vmul.f32 %v2640, 0.01
        %v2864 = vmul.f32 %v2642, 0.01
        %v2865 = vmul.f32 %v2753, 0.01
        %v2866 = vmul.f32 %v2644, 0.01
        %v2867 = vmul.f32 %v2646, 0.01
        %v2868 = vmul.f32 %v2756, 0.01
        %v2869 = vmul.f32 %v2650, 0.01
        %v2870 = vmul.f32 %v2652, 0.01
        %v2871 = vmul.f32 %v2761, 0.01
        %v2872 = vmul.f32 %v2654, 0.01
        %v2873 = vmul.f32 %v2656, 0.01
        %v2874 = vmul.f32 %v2764, 0.01
        %v2875 = vmul.f32 %v2660, 0.01
        %v2876 = vmul.f32 %v2662, 0.01
        %v2877 = vmul.f32 %v2769, 0.01
        %v2878 = vmul.f32 %v2664, 0.01
        %v2879 = vmul.f32 %v2666, 0.01
        %v2880 = vmul.f32 %v2772, 0.01
        %v2881 = vmul.f32 %v2670, 0.01
        %v2882 = vmul.f32 %v2672, 0.01
        %v2883 = vmul.f32 %v2777, 0.01
        %v2884 = vmul.f32 %v2674, 0.01
        %v2885 = vmul.f32 %v2676, 0.01
        %v2886 = vmul.f32 %v2780, 0.01
        %v2887 = vmul.f32 %v2680, 0.01
        %v2888 = vmul.f32 %v2682, 0.01
        %v2889 = vmul.f32 %v2785, 0.01
        %v2890 = vmul.f32 %v2684, 0.01
        %v2891 = vmul.f32 %v2686, 0.01
        %v2892 = vmul.f32 %v2788, 0.01
        %v2893 = vmul.f32 %v2690, 0.01
        %v2894 = vmul.f32 %v2692, 0.01
        %v2895 = vmul.f32 %v2793, 0.01
        %v2896 = vmul.f32 %v2694, 0.01
        %v2897 = vmul.f32 %v2696, 0.01
        %v2898 = vmul.f32 %v2796, 0.01
        %v2899 = vmul.f32 %v2700, 0.01
        %v2900 = vmul.f32 %v2702, 0.01
        %v2901 = vmul.f32 %v2801, 0.01
        %v2902 = vmul.f32 %v2704, 0.01
        %v2903 = vmul.f32 %v2706, 0.01
        %v2904 = vmul.f32 %v2804, 0.01
        %v2905 = vmul.f32 %v2710, 0.01
        %v2906 = vmul.f32 %v2712, 0.01
        %v2907 = vmul.f32 %v2809, 0.01
        %v2908 = vmul.f32 %v2714, 0.01
        %v2909 = vmul.f32 %v2716, 0.01
        %v2910 = vmul.f32 %v2812, 0.01
        %v2911 = vsel %vm2815, %v2640, %v2863
        %v2912 = vsel %vm2816, %v2642, %v2864
        %v2913 = vsel %vm2817, %v2753, %v2865
        %v2914 = vsel %vm2818, %v2644, %v2866
        %v2915 = vsel %vm2819, %v2646, %v2867
        %v2916 = vsel %vm2820, %v2756, %v2868
        %v2917 = vsel %vm2821, %v2650, %v2869
        %v2918 = vsel %vm2822, %v2652, %v2870
        %v2919 = vsel %vm2823, %v2761, %v2871
        %v2920 = vsel %vm2824, %v2654, %v2872
        %v2921 = vsel %vm2825, %v2656, %v2873
        %v2922 = vsel %vm2826, %v2764, %v2874
        %v2923 = vsel %vm2827, %v2660, %v2875
        %v2924 = vsel %vm2828, %v2662, %v2876
        %v2925 = vsel %vm2829, %v2769, %v2877
        %v2926 = vsel %vm2830, %v2664, %v2878
        %v2927 = vsel %vm2831, %v2666, %v2879
        %v2928 = vsel %vm2832, %v2772, %v2880
        %v2929 = vsel %vm2833, %v2670, %v2881
        %v2930 = vsel %vm2834, %v2672, %v2882
        %v2931 = vsel %vm2835, %v2777, %v2883
        %v2932 = vsel %vm2836, %v2674, %v2884
        %v2933 = vsel %vm2837, %v2676, %v2885
        %v2934 = vsel %vm2838, %v2780, %v2886
        %v2935 = vsel %vm2839, %v2680, %v2887
        %v2936 = vsel %vm2840, %v2682, %v2888
        %v2937 = vsel %vm2841, %v2785, %v2889
        %v2938 = vsel %vm2842, %v2684, %v2890
        %v2939 = vsel %vm2843, %v2686, %v2891
        %v2940 = vsel %vm2844, %v2788, %v2892
        %v2941 = vsel %vm2845, %v2690, %v2893
        %v2942 = vsel %vm2846, %v2692, %v2894
        %v2943 = vsel %vm2847, %v2793, %v2895
        %v2944 = vsel %vm2848, %v2694, %v2896
        %v2945 = vsel %vm2849, %v2696, %v2897
        %v2946 = vsel %vm2850, %v2796, %v2898
        %v2947 = vsel %vm2851, %v2700, %v2899
        %v2948 = vsel %vm2852, %v2702, %v2900
        %v2949 = vsel %vm2853, %v2801, %v2901
        %v2950 = vsel %vm2854, %v2704, %v2902
        %v2951 = vsel %vm2855, %v2706, %v2903
        %v2952 = vsel %vm2856, %v2804, %v2904
        %v2953 = vsel %vm2857, %v2710, %v2905
        %v2954 = vsel %vm2858, %v2712, %v2906
        %v2955 = vsel %vm2859, %v2809, %v2907
        %v2956 = vsel %vm2860, %v2714, %v2908
        %v2957 = vsel %vm2861, %v2716, %v2909
        %v2958 = vsel %vm2862, %v2812, %v2910
        %v2959 = vld [vmem:[%s5] sm:$0xf]
        %v2960 = vld [vmem:[%s5 + $0x4] sm:$0xf]
        %v2961 = vld [vmem:[%s5 + $0x8] sm:$0xf]
        %v2962 = vld [vmem:[%s5 + $0xc] sm:$0xf]
        %v2963 = vld [vmem:[%s5 + $0x10] sm:$0xf]
        %v2964 = vld [vmem:[%s5 + $0x14] sm:$0xf]
        %v2965 = vld [vmem:[%s5 + $0x18] sm:$0xf]
        %v2966 = vld [vmem:[%s5 + $0x1c] sm:$0xf]
        %v2967 = vld [vmem:[%s5 + $0x20] sm:$0xf]
        %v2968 = vld [vmem:[%s5 + $0x24] sm:$0xf]
        %v2969 = vld [vmem:[%s5 + $0x28] sm:$0xf]
        %v2970 = vld [vmem:[%s5 + $0x2c] sm:$0xf]
        %v2971 = vld [vmem:[%s5 + $0x30] sm:$0xf]
        %v2972 = vld [vmem:[%s5 + $0x34] sm:$0xf]
        %v2973 = vld [vmem:[%s5 + $0x38] sm:$0xf]
        %v2974 = vld [vmem:[%s5 + $0x3c] sm:$0xf]
        %v2975 = vpack.c.bf16 %v2914, %v2911
        %v2976 = vpack.c.bf16 %v2915, %v2912
        %v2977 = vpack.c.bf16 %v2916, %v2913
        %v2978 = vpack.c.bf16 %v2920, %v2917
        %v2979 = vpack.c.bf16 %v2921, %v2918
        %v2980 = vpack.c.bf16 %v2922, %v2919
        %v2981 = vpack.c.bf16 %v2926, %v2923
        %v2982 = vpack.c.bf16 %v2927, %v2924
        %v2983 = vpack.c.bf16 %v2928, %v2925
        %v2984 = vpack.c.bf16 %v2932, %v2929
        %v2985 = vpack.c.bf16 %v2933, %v2930
        %v2986 = vpack.c.bf16 %v2934, %v2931
        %v2987 = vpack.c.bf16 %v2938, %v2935
        %v2988 = vpack.c.bf16 %v2939, %v2936
        %v2989 = vpack.c.bf16 %v2940, %v2937
        %v2990 = vpack.c.bf16 %v2944, %v2941
        %v2991 = vpack.c.bf16 %v2945, %v2942
        %v2992 = vpack.c.bf16 %v2946, %v2943
        %v2993 = vpack.c.bf16 %v2950, %v2947
        %v2994 = vpack.c.bf16 %v2951, %v2948
        %v2995 = vpack.c.bf16 %v2952, %v2949
        %v2996 = vpack.c.bf16 %v2956, %v2953
        %v2997 = vpack.c.bf16 %v2957, %v2954
        %v2998 = vpack.c.bf16 %v2958, %v2955
        %v2999 = vld [vmem:[%s6] sm:$0xff]
        %v3000 = vld [vmem:[%s6 + $0x8] sm:$0xff]
        %v3001 = vld [vmem:[%s6 + $0x10] sm:$0xff]
        %v3002 = vld [vmem:[%s6 + $0x18] sm:$0xff]
        %v3003 = vld [vmem:[%s6 + $0x20] sm:$0xff]
        %v3004 = vld [vmem:[%s6 + $0x28] sm:$0xff]
        %v3005 = vld [vmem:[%s6 + $0x30] sm:$0xff]
        %v3006 = vld [vmem:[%s6 + $0x38] sm:$0xff]
        %v3007 = vld [vmem:[%s6 + $0x40] sm:$0xff]
        %v3008 = vld [vmem:[%s6 + $0x48] sm:$0xff]
        %v3009 = vld [vmem:[%s6 + $0x50] sm:$0xff]
        %v3010 = vld [vmem:[%s6 + $0x58] sm:$0xff]
        %v3011 = vld [vmem:[%s6 + $0x60] sm:$0xff]
        %v3012 = vld [vmem:[%s6 + $0x68] sm:$0xff]
        %v3013 = vld [vmem:[%s6 + $0x70] sm:$0xff]
        %v3014 = vld [vmem:[%s6 + $0x78] sm:$0xff]
        %3016 = vset.pattern.permute.xlu0 0
        %3017 = vperm.xlu0 %3016, %v2999
        %v3018 = vpop.permute.xlu0 %3017
        %3021 = vset.pattern.permute.xlu0 0
        %3022 = vperm.xlu0 %3021, %v3000
        %v3023 = vpop.permute.xlu0 %3022
        %3026 = vset.pattern.permute.xlu0 0
        %3027 = vperm.xlu0 %3026, %v3001
        %v3028 = vpop.permute.xlu0 %3027
        %3031 = vset.pattern.permute.xlu0 0
        %3032 = vperm.xlu0 %3031, %v3002
        %v3033 = vpop.permute.xlu0 %3032
        %3036 = vset.pattern.permute.xlu0 0
        %3037 = vperm.xlu0 %3036, %v3003
        %v3038 = vpop.permute.xlu0 %3037
        %3041 = vset.pattern.permute.xlu0 0
        %3042 = vperm.xlu0 %3041, %v3004
        %v3043 = vpop.permute.xlu0 %3042
        %3046 = vset.pattern.permute.xlu0 0
        %3047 = vperm.xlu0 %3046, %v3005
        %v3048 = vpop.permute.xlu0 %3047
        %3051 = vset.pattern.permute.xlu0 0
        %3052 = vperm.xlu0 %3051, %v3006
        %v3053 = vpop.permute.xlu0 %3052
        %3056 = vset.pattern.permute.xlu0 0
        %3057 = vperm.xlu0 %3056, %v3007
        %v3058 = vpop.permute.xlu0 %3057
        %3061 = vset.pattern.permute.xlu0 0
        %3062 = vperm.xlu0 %3061, %v3008
        %v3063 = vpop.permute.xlu0 %3062
        %3066 = vset.pattern.permute.xlu0 0
        %3067 = vperm.xlu0 %3066, %v3009
        %v3068 = vpop.permute.xlu0 %3067
        %3071 = vset.pattern.permute.xlu0 0
        %3072 = vperm.xlu0 %3071, %v3010
        %v3073 = vpop.permute.xlu0 %3072
        %3076 = vset.pattern.permute.xlu0 0
        %3077 = vperm.xlu0 %3076, %v3011
        %v3078 = vpop.permute.xlu0 %3077
        %3081 = vset.pattern.permute.xlu0 0
        %3082 = vperm.xlu0 %3081, %v3012
        %v3083 = vpop.permute.xlu0 %3082
        %3086 = vset.pattern.permute.xlu0 0
        %3087 = vperm.xlu0 %3086, %v3013
        %v3088 = vpop.permute.xlu0 %3087
        %3091 = vset.pattern.permute.xlu0 0
        %3092 = vperm.xlu0 %3091, %v3014
        %v3093 = vpop.permute.xlu0 %3092
        %v3111 = vunpack.c.l.b16 %v2959
        %v3112 = vunpack.c.l.b16 %v2960
        %v3113 = vunpack.c.l.b16 %v2961
        %v3114 = vunpack.c.l.b16 %v2962
        %v3115 = vunpack.c.l.b16 %v2963
        %v3116 = vunpack.c.l.b16 %v2964
        %v3117 = vunpack.c.l.b16 %v2965
        %v3118 = vunpack.c.l.b16 %v2966
        %v3119 = vunpack.c.l.b16 %v2967
        %v3120 = vunpack.c.l.b16 %v2968
        %v3121 = vunpack.c.l.b16 %v2969
        %v3122 = vunpack.c.l.b16 %v2970
        %v3123 = vunpack.c.l.b16 %v2971
        %v3124 = vunpack.c.l.b16 %v2972
        %v3125 = vunpack.c.l.b16 %v2973
        %v3126 = vunpack.c.l.b16 %v2974
        %v3127 = vpack.c.b16 %v3112, %v3111
        %v3128 = vpack.c.b16 %v3114, %v3113
        %v3129 = vpack.c.b16 %v3116, %v3115
        %v3130 = vpack.c.b16 %v3118, %v3117
        %v3131 = vpack.c.b16 %v3120, %v3119
        %v3132 = vpack.c.b16 %v3122, %v3121
        %v3133 = vpack.c.b16 %v3124, %v3123
        %v3134 = vpack.c.b16 %v3126, %v3125
        %3143 = vmatprep.subr.bf16.mxu0 %v2976
        %3144 = vmatpush1.bf16.msra.mxu0 %v2975
        %3145 = vmatprep.subr.bf16.mxu0 %v2979
        %3146 = vmatpush1.bf16.msra.mxu0 %v2978
        %3147 = vmatprep.subr.bf16.mxu0 %v2982
        %3148 = vmatpush1.bf16.msra.mxu0 %v2981
        %3149 = vmatprep.subr.bf16.mxu0 %v2985
        %3150 = vmatpush1.bf16.msra.mxu0 %v2984
        %3151 = vmatprep.subr.bf16.mxu0 %v2988
        %3152 = vmatpush1.bf16.msra.mxu0 %v2987
        %3153 = vmatprep.subr.bf16.mxu0 %v2991
        %3154 = vmatpush1.bf16.msra.mxu0 %v2990
        %3155 = vmatprep.subr.bf16.mxu0 %v2994
        %3156 = vmatpush1.bf16.msra.mxu0 %v2993
        %3157 = vmatprep.subr.bf16.mxu0 %v2997
        %3158 = vmatpush1.bf16.msra.mxu0 %v2996
        %3159 = vmatprep.subr.bf16.mxu0 0
        %3160 = vmatpush1.bf16.msra.mxu0 0
        %3161 = vmatprep.subr.bf16.mxu0 0
        %3162 = vmatpush1.bf16.msra.mxu0 0
        %3163 = vmatprep.subr.bf16.mxu0 0
        %3164 = vmatpush1.bf16.msra.mxu0 0
        %3165 = vmatprep.subr.bf16.mxu0 0
        %3166 = vmatpush1.bf16.msra.mxu0 0
        %3167 = vmatprep.subr.bf16.mxu0 0
        %3168 = vmatpush1.bf16.msra.mxu0 0
        %3169 = vmatprep.subr.bf16.mxu0 0
        %3170 = vmatpush1.bf16.msra.mxu0 0
        %3171 = vmatprep.subr.bf16.mxu0 0
        %3172 = vmatpush1.bf16.msra.mxu0 0
        %3173 = vmatprep.subr.bf16.mxu0 0
        %3174 = vmatpush1.bf16.msra.mxu0 0
        %3175 = vmatprep.mubr.bf16.mxu0 0
        %3176 = vmatmul.mubr.bf16.gmra.mrb[0].mxu0 %v3127
        %v3177 = vpop.f32.mrb[0].mxu0
        %v3178 = vadd.f32 %v3018, %v3177
        %v3179 = vpop.f32.mrb[0].mxu0
        %v3180 = vadd.f32 %v3018, %v3179
        %v3181 = vpop.f32.mrb[0].mxu0
        %v3182 = vadd.f32 %v3023, %v3181
        %v3183 = vpop.f32.mrb[0].mxu0
        %v3184 = vadd.f32 %v3023, %v3183
        %3185 = vmatprep.mubr.bf16.mxu0 0
        %3186 = vmatmul.mubr.bf16.gmra.mrb[0].mxu0 %v3128
        %v3187 = vpop.f32.mrb[0].mxu0
        %v3188 = vadd.f32 %v3028, %v3187
        %v3189 = vpop.f32.mrb[0].mxu0
        %v3190 = vadd.f32 %v3028, %v3189
        %v3191 = vpop.f32.mrb[0].mxu0
        %v3192 = vadd.f32 %v3033, %v3191
        %v3193 = vpop.f32.mrb[0].mxu0
        %v3194 = vadd.f32 %v3033, %v3193
        %3195 = vmatprep.mubr.bf16.mxu0 0
        %3196 = vmatmul.mubr.bf16.gmra.mrb[0].mxu0 %v3129
        %v3197 = vpop.f32.mrb[0].mxu0
        %v3198 = vadd.f32 %v3038, %v3197
        %v3199 = vpop.f32.mrb[0].mxu0
        %v3200 = vadd.f32 %v3038, %v3199
        %v3201 = vpop.f32.mrb[0].mxu0
        %v3202 = vadd.f32 %v3043, %v3201
        %v3203 = vpop.f32.mrb[0].mxu0
        %v3204 = vadd.f32 %v3043, %v3203
        %3205 = vmatprep.mubr.bf16.mxu0 0
        %3206 = vmatmul.mubr.bf16.gmra.mrb[0].mxu0 %v3130
        %v3207 = vpop.f32.mrb[0].mxu0
        %v3208 = vadd.f32 %v3048, %v3207
        %v3209 = vpop.f32.mrb[0].mxu0
        %v3210 = vadd.f32 %v3048, %v3209
        %v3211 = vpop.f32.mrb[0].mxu0
        %v3212 = vadd.f32 %v3053, %v3211
        %v3213 = vpop.f32.mrb[0].mxu0
        %v3214 = vadd.f32 %v3053, %v3213
        %3215 = vmatprep.mubr.bf16.mxu0 0
        %3216 = vmatmul.mubr.bf16.gmra.mrb[0].mxu0 %v3131
        %v3217 = vpop.f32.mrb[0].mxu0
        %v3218 = vadd.f32 %v3058, %v3217
        %v3219 = vpop.f32.mrb[0].mxu0
        %v3220 = vadd.f32 %v3058, %v3219
        %v3221 = vpop.f32.mrb[0].mxu0
        %v3222 = vadd.f32 %v3063, %v3221
        %v3223 = vpop.f32.mrb[0].mxu0
        %v3224 = vadd.f32 %v3063, %v3223
        %3225 = vmatprep.mubr.bf16.mxu0 0
        %3226 = vmatmul.mubr.bf16.gmra.mrb[0].mxu0 %v3132
        %v3227 = vpop.f32.mrb[0].mxu0
        %v3228 = vadd.f32 %v3068, %v3227
        %v3229 = vpop.f32.mrb[0].mxu0
        %v3230 = vadd.f32 %v3068, %v3229
        %v3231 = vpop.f32.mrb[0].mxu0
        %v3232 = vadd.f32 %v3073, %v3231
        %v3233 = vpop.f32.mrb[0].mxu0
        %v3234 = vadd.f32 %v3073, %v3233
        %3235 = vmatprep.mubr.bf16.mxu0 0
        %3236 = vmatmul.mubr.bf16.gmra.mrb[0].mxu0 %v3133
        %v3237 = vpop.f32.mrb[0].mxu0
        %v3238 = vadd.f32 %v3078, %v3237
        %v3239 = vpop.f32.mrb[0].mxu0
        %v3240 = vadd.f32 %v3078, %v3239
        %v3241 = vpop.f32.mrb[0].mxu0
        %v3242 = vadd.f32 %v3083, %v3241
        %v3243 = vpop.f32.mrb[0].mxu0
        %v3244 = vadd.f32 %v3083, %v3243
        %3245 = vmatprep.mubr.bf16.mxu0 0
        %3246 = vmatmul.mubr.bf16.gmra.mrb[0].mxu0 %v3134
        %v3247 = vpop.f32.mrb[0].mxu0
        %v3248 = vadd.f32 %v3088, %v3247
        %v3249 = vpop.f32.mrb[0].mxu0
        %v3250 = vadd.f32 %v3088, %v3249
        %v3251 = vpop.f32.mrb[0].mxu0
        %v3252 = vadd.f32 %v3093, %v3251
        %v3253 = vpop.f32.mrb[0].mxu0
        %v3254 = vadd.f32 %v3093, %v3253
        %3255 = vdwg.mxu0
        %3256 = vmatprep.subr.bf16.mxu0 0
        %3257 = vmatpush1.bf16.msra.mxu0 %v2977
        %3258 = vmatprep.subr.bf16.mxu0 0
        %3259 = vmatpush1.bf16.msra.mxu0 %v2980
        %3260 = vmatprep.subr.bf16.mxu0 0
        %3261 = vmatpush1.bf16.msra.mxu0 %v2983
        %3262 = vmatprep.subr.bf16.mxu0 0
        %3263 = vmatpush1.bf16.msra.mxu0 %v2986
        %3264 = vmatprep.subr.bf16.mxu0 0
        %3265 = vmatpush1.bf16.msra.mxu0 %v2989
        %3266 = vmatprep.subr.bf16.mxu0 0
        %3267 = vmatpush1.bf16.msra.mxu0 %v2992
        %3268 = vmatprep.subr.bf16.mxu0 0
        %3269 = vmatpush1.bf16.msra.mxu0 %v2995
        %3270 = vmatprep.subr.bf16.mxu0 0
        %3271 = vmatpush1.bf16.msra.mxu0 %v2998
        %3272 = vmatprep.subr.bf16.mxu0 0
        %3273 = vmatpush1.bf16.msra.mxu0 0
        %3274 = vmatprep.subr.bf16.mxu0 0
        %3275 = vmatpush1.bf16.msra.mxu0 0
        %3276 = vmatprep.subr.bf16.mxu0 0
        %3277 = vmatpush1.bf16.msra.mxu0 0
        %3278 = vmatprep.subr.bf16.mxu0 0
        %3279 = vmatpush1.bf16.msra.mxu0 0
        %3280 = vmatprep.subr.bf16.mxu0 0
        %3281 = vmatpush1.bf16.msra.mxu0 0
        %3282 = vmatprep.subr.bf16.mxu0 0
        %3283 = vmatpush1.bf16.msra.mxu0 0
        %3284 = vmatprep.subr.bf16.mxu0 0
        %3285 = vmatpush1.bf16.msra.mxu0 0
        %3286 = vmatprep.subr.bf16.mxu0 0
        %3287 = vmatpush1.bf16.msra.mxu0 0
        %3288 = vmatprep.mubr.bf16.mxu0 0
        %3289 = vmatmul.mubr.bf16.gmra.mrb[0].mxu0 %v3127
        %v3290 = vpop.f32.mrb[0].mxu0
        %v3291 = vadd.f32 %v3018, %v3290
        %v3292 = vpop.f32.mrb[0].mxu0
        %v3293 = vpop.f32.mrb[0].mxu0
        %v3294 = vadd.f32 %v3023, %v3293
        %v3295 = vpop.f32.mrb[0].mxu0
        %3296 = vmatprep.mubr.bf16.mxu0 0
        %3297 = vmatmul.mubr.bf16.gmra.mrb[0].mxu0 %v3128
        %v3298 = vpop.f32.mrb[0].mxu0
        %v3299 = vadd.f32 %v3028, %v3298
        %v3300 = vpop.f32.mrb[0].mxu0
        %v3301 = vpop.f32.mrb[0].mxu0
        %v3302 = vadd.f32 %v3033, %v3301
        %v3303 = vpop.f32.mrb[0].mxu0
        %3304 = vmatprep.mubr.bf16.mxu0 0
        %3305 = vmatmul.mubr.bf16.gmra.mrb[0].mxu0 %v3129
        %v3306 = vpop.f32.mrb[0].mxu0
        %v3307 = vadd.f32 %v3038, %v3306
        %v3308 = vpop.f32.mrb[0].mxu0
        %v3309 = vpop.f32.mrb[0].mxu0
        %v3310 = vadd.f32 %v3043, %v3309
        %v3311 = vpop.f32.mrb[0].mxu0
        %3312 = vmatprep.mubr.bf16.mxu0 0
        %3313 = vmatmul.mubr.bf16.gmra.mrb[0].mxu0 %v3130
        %v3314 = vpop.f32.mrb[0].mxu0
        %v3315 = vadd.f32 %v3048, %v3314
        %v3316 = vpop.f32.mrb[0].mxu0
        %v3317 = vpop.f32.mrb[0].mxu0
        %v3318 = vadd.f32 %v3053, %v3317
        %v3319 = vpop.f32.mrb[0].mxu0
        %3320 = vmatprep.mubr.bf16.mxu0 0
        %3321 = vmatmul.mubr.bf16.gmra.mrb[0].mxu0 %v3131
        %v3322 = vpop.f32.mrb[0].mxu0
        %v3323 = vadd.f32 %v3058, %v3322
        %v3324 = vpop.f32.mrb[0].mxu0
        %v3325 = vpop.f32.mrb[0].mxu0
        %v3326 = vadd.f32 %v3063, %v3325
        %v3327 = vpop.f32.mrb[0].mxu0
        %3328 = vmatprep.mubr.bf16.mxu0 0
        %3329 = vmatmul.mubr.bf16.gmra.mrb[0].mxu0 %v3132
        %v3330 = vpop.f32.mrb[0].mxu0
        %v3331 = vadd.f32 %v3068, %v3330
        %v3332 = vpop.f32.mrb[0].mxu0
        %v3333 = vpop.f32.mrb[0].mxu0
        %v3334 = vadd.f32 %v3073, %v3333
        %v3335 = vpop.f32.mrb[0].mxu0
        %3336 = vmatprep.mubr.bf16.mxu0 0
        %3337 = vmatmul.mubr.bf16.gmra.mrb[0].mxu0 %v3133
        %v3338 = vpop.f32.mrb[0].mxu0
        %v3339 = vadd.f32 %v3078, %v3338
        %v3340 = vpop.f32.mrb[0].mxu0
        %v3341 = vpop.f32.mrb[0].mxu0
        %v3342 = vadd.f32 %v3083, %v3341
        %v3343 = vpop.f32.mrb[0].mxu0
        %3344 = vmatprep.mubr.bf16.mxu0 0
        %3345 = vmatmul.mubr.bf16.gmra.mrb[0].mxu0 %v3134
        %v3346 = vpop.f32.mrb[0].mxu0
        %v3347 = vadd.f32 %v3088, %v3346
        %v3348 = vpop.f32.mrb[0].mxu0
        %v3349 = vpop.f32.mrb[0].mxu0
        %v3350 = vadd.f32 %v3093, %v3349
        %v3351 = vpop.f32.mrb[0].mxu0
        %3352 = vdwg.mxu0
        %vm3353 = vcmp.ge.f32.partialorder %v3178, 0.0
        %vm3354 = vcmp.ge.f32.partialorder %v3180, 0.0
        %vm3355 = vcmp.ge.f32.partialorder %v3291, 0.0
        %vm3356 = vcmp.ge.f32.partialorder %v3182, 0.0
        %vm3357 = vcmp.ge.f32.partialorder %v3184, 0.0
        %vm3358 = vcmp.ge.f32.partialorder %v3294, 0.0
        %vm3359 = vcmp.ge.f32.partialorder %v3188, 0.0
        %vm3360 = vcmp.ge.f32.partialorder %v3190, 0.0
        %vm3361 = vcmp.ge.f32.partialorder %v3299, 0.0
        %vm3362 = vcmp.ge.f32.partialorder %v3192, 0.0
        %vm3363 = vcmp.ge.f32.partialorder %v3194, 0.0
        %vm3364 = vcmp.ge.f32.partialorder %v3302, 0.0
        %vm3365 = vcmp.ge.f32.partialorder %v3198, 0.0
        %vm3366 = vcmp.ge.f32.partialorder %v3200, 0.0
        %vm3367 = vcmp.ge.f32.partialorder %v3307, 0.0
        %vm3368 = vcmp.ge.f32.partialorder %v3202, 0.0
        %vm3369 = vcmp.ge.f32.partialorder %v3204, 0.0
        %vm3370 = vcmp.ge.f32.partialorder %v3310, 0.0
        %vm3371 = vcmp.ge.f32.partialorder %v3208, 0.0
        %vm3372 = vcmp.ge.f32.partialorder %v3210, 0.0
        %vm3373 = vcmp.ge.f32.partialorder %v3315, 0.0
        %vm3374 = vcmp.ge.f32.partialorder %v3212, 0.0
        %vm3375 = vcmp.ge.f32.partialorder %v3214, 0.0
        %vm3376 = vcmp.ge.f32.partialorder %v3318, 0.0
        %vm3377 = vcmp.ge.f32.partialorder %v3218, 0.0
        %vm3378 = vcmp.ge.f32.partialorder %v3220, 0.0
        %vm3379 = vcmp.ge.f32.partialorder %v3323, 0.0
        %vm3380 = vcmp.ge.f32.partialorder %v3222, 0.0
        %vm3381 = vcmp.ge.f32.partialorder %v3224, 0.0
        %vm3382 = vcmp.ge.f32.partialorder %v3326, 0.0
        %vm3383 = vcmp.ge.f32.partialorder %v3228, 0.0
        %vm3384 = vcmp.ge.f32.partialorder %v3230, 0.0
        %vm3385 = vcmp.ge.f32.partialorder %v3331, 0.0
        %vm3386 = vcmp.ge.f32.partialorder %v3232, 0.0
        %vm3387 = vcmp.ge.f32.partialorder %v3234, 0.0
        %vm3388 = vcmp.ge.f32.partialorder %v3334, 0.0
        %vm3389 = vcmp.ge.f32.partialorder %v3238, 0.0
        %vm3390 = vcmp.ge.f32.partialorder %v3240, 0.0
        %vm3391 = vcmp.ge.f32.partialorder %v3339, 0.0
        %vm3392 = vcmp.ge.f32.partialorder %v3242, 0.0
        %vm3393 = vcmp.ge.f32.partialorder %v3244, 0.0
        %vm3394 = vcmp.ge.f32.partialorder %v3342, 0.0
        %vm3395 = vcmp.ge.f32.partialorder %v3248, 0.0
        %vm3396 = vcmp.ge.f32.partialorder %v3250, 0.0
        %vm3397 = vcmp.ge.f32.partialorder %v3347, 0.0
        %vm3398 = vcmp.ge.f32.partialorder %v3252, 0.0
        %vm3399 = vcmp.ge.f32.partialorder %v3254, 0.0
        %vm3400 = vcmp.ge.f32.partialorder %v3350, 0.0
        %v3401 = vmul.f32 %v3178, 0.01
        %v3402 = vmul.f32 %v3180, 0.01
        %v3403 = vmul.f32 %v3291, 0.01
        %v3404 = vmul.f32 %v3182, 0.01
        %v3405 = vmul.f32 %v3184, 0.01
        %v3406 = vmul.f32 %v3294, 0.01
        %v3407 = vmul.f32 %v3188, 0.01
        %v3408 = vmul.f32 %v3190, 0.01
        %v3409 = vmul.f32 %v3299, 0.01
        %v3410 = vmul.f32 %v3192, 0.01
        %v3411 = vmul.f32 %v3194, 0.01
        %v3412 = vmul.f32 %v3302, 0.01
        %v3413 = vmul.f32 %v3198, 0.01
        %v3414 = vmul.f32 %v3200, 0.01
        %v3415 = vmul.f32 %v3307, 0.01
        %v3416 = vmul.f32 %v3202, 0.01
        %v3417 = vmul.f32 %v3204, 0.01
        %v3418 = vmul.f32 %v3310, 0.01
        %v3419 = vmul.f32 %v3208, 0.01
        %v3420 = vmul.f32 %v3210, 0.01
        %v3421 = vmul.f32 %v3315, 0.01
        %v3422 = vmul.f32 %v3212, 0.01
        %v3423 = vmul.f32 %v3214, 0.01
        %v3424 = vmul.f32 %v3318, 0.01
        %v3425 = vmul.f32 %v3218, 0.01
        %v3426 = vmul.f32 %v3220, 0.01
        %v3427 = vmul.f32 %v3323, 0.01
        %v3428 = vmul.f32 %v3222, 0.01
        %v3429 = vmul.f32 %v3224, 0.01
        %v3430 = vmul.f32 %v3326, 0.01
        %v3431 = vmul.f32 %v3228, 0.01
        %v3432 = vmul.f32 %v3230, 0.01
        %v3433 = vmul.f32 %v3331, 0.01
        %v3434 = vmul.f32 %v3232, 0.01
        %v3435 = vmul.f32 %v3234, 0.01
        %v3436 = vmul.f32 %v3334, 0.01
        %v3437 = vmul.f32 %v3238, 0.01
        %v3438 = vmul.f32 %v3240, 0.01
        %v3439 = vmul.f32 %v3339, 0.01
        %v3440 = vmul.f32 %v3242, 0.01
        %v3441 = vmul.f32 %v3244, 0.01
        %v3442 = vmul.f32 %v3342, 0.01
        %v3443 = vmul.f32 %v3248, 0.01
        %v3444 = vmul.f32 %v3250, 0.01
        %v3445 = vmul.f32 %v3347, 0.01
        %v3446 = vmul.f32 %v3252, 0.01
        %v3447 = vmul.f32 %v3254, 0.01
        %v3448 = vmul.f32 %v3350, 0.01
        %v3449 = vsel %vm3353, %v3178, %v3401
        %v3450 = vsel %vm3354, %v3180, %v3402
        %v3451 = vsel %vm3355, %v3291, %v3403
        %v3452 = vsel %vm3356, %v3182, %v3404
        %v3453 = vsel %vm3357, %v3184, %v3405
        %v3454 = vsel %vm3358, %v3294, %v3406
        %v3455 = vsel %vm3359, %v3188, %v3407
        %v3456 = vsel %vm3360, %v3190, %v3408
        %v3457 = vsel %vm3361, %v3299, %v3409
        %v3458 = vsel %vm3362, %v3192, %v3410
        %v3459 = vsel %vm3363, %v3194, %v3411
        %v3460 = vsel %vm3364, %v3302, %v3412
        %v3461 = vsel %vm3365, %v3198, %v3413
        %v3462 = vsel %vm3366, %v3200, %v3414
        %v3463 = vsel %vm3367, %v3307, %v3415
        %v3464 = vsel %vm3368, %v3202, %v3416
        %v3465 = vsel %vm3369, %v3204, %v3417
        %v3466 = vsel %vm3370, %v3310, %v3418
        %v3467 = vsel %vm3371, %v3208, %v3419
        %v3468 = vsel %vm3372, %v3210, %v3420
        %v3469 = vsel %vm3373, %v3315, %v3421
        %v3470 = vsel %vm3374, %v3212, %v3422
        %v3471 = vsel %vm3375, %v3214, %v3423
        %v3472 = vsel %vm3376, %v3318, %v3424
        %v3473 = vsel %vm3377, %v3218, %v3425
        %v3474 = vsel %vm3378, %v3220, %v3426
        %v3475 = vsel %vm3379, %v3323, %v3427
        %v3476 = vsel %vm3380, %v3222, %v3428
        %v3477 = vsel %vm3381, %v3224, %v3429
        %v3478 = vsel %vm3382, %v3326, %v3430
        %v3479 = vsel %vm3383, %v3228, %v3431
        %v3480 = vsel %vm3384, %v3230, %v3432
        %v3481 = vsel %vm3385, %v3331, %v3433
        %v3482 = vsel %vm3386, %v3232, %v3434
        %v3483 = vsel %vm3387, %v3234, %v3435
        %v3484 = vsel %vm3388, %v3334, %v3436
        %v3485 = vsel %vm3389, %v3238, %v3437
        %v3486 = vsel %vm3390, %v3240, %v3438
        %v3487 = vsel %vm3391, %v3339, %v3439
        %v3488 = vsel %vm3392, %v3242, %v3440
        %v3489 = vsel %vm3393, %v3244, %v3441
        %v3490 = vsel %vm3394, %v3342, %v3442
        %v3491 = vsel %vm3395, %v3248, %v3443
        %v3492 = vsel %vm3396, %v3250, %v3444
        %v3493 = vsel %vm3397, %v3347, %v3445
        %v3494 = vsel %vm3398, %v3252, %v3446
        %v3495 = vsel %vm3399, %v3254, %v3447
        %v3496 = vsel %vm3400, %v3350, %v3448
        %v3497 = vld [vmem:[%s7] sm:$0xf]
        %v3498 = vld [vmem:[%s7 + $0x4] sm:$0xf]
        %v3499 = vld [vmem:[%s7 + $0x8] sm:$0xf]
        %v3500 = vld [vmem:[%s7 + $0xc] sm:$0xf]
        %v3501 = vld [vmem:[%s7 + $0x10] sm:$0xf]
        %v3502 = vld [vmem:[%s7 + $0x14] sm:$0xf]
        %v3503 = vpack.c.bf16 %v3452, %v3449
        %v3504 = vpack.c.bf16 %v3453, %v3450
        %v3505 = vpack.c.bf16 %v3454, %v3451
        %v3506 = vpack.c.bf16 %v3458, %v3455
        %v3507 = vpack.c.bf16 %v3459, %v3456
        %v3508 = vpack.c.bf16 %v3460, %v3457
        %v3509 = vpack.c.bf16 %v3464, %v3461
        %v3510 = vpack.c.bf16 %v3465, %v3462
        %v3511 = vpack.c.bf16 %v3466, %v3463
        %v3512 = vpack.c.bf16 %v3470, %v3467
        %v3513 = vpack.c.bf16 %v3471, %v3468
        %v3514 = vpack.c.bf16 %v3472, %v3469
        %v3515 = vpack.c.bf16 %v3476, %v3473
        %v3516 = vpack.c.bf16 %v3477, %v3474
        %v3517 = vpack.c.bf16 %v3478, %v3475
        %v3518 = vpack.c.bf16 %v3482, %v3479
        %v3519 = vpack.c.bf16 %v3483, %v3480
        %v3520 = vpack.c.bf16 %v3484, %v3481
        %v3521 = vpack.c.bf16 %v3488, %v3485
        %v3522 = vpack.c.bf16 %v3489, %v3486
        %v3523 = vpack.c.bf16 %v3490, %v3487
        %v3524 = vpack.c.bf16 %v3494, %v3491
        %v3525 = vpack.c.bf16 %v3495, %v3492
        %v3526 = vpack.c.bf16 %v3496, %v3493
        %v3527 = vld [vmem:[%s8] sm:$0xff]
        %v3528 = vld [vmem:[%s8 + $0x8] sm:$0xff]
        %v3529 = vld [vmem:[%s8 + $0x10] sm:$0xff]
        %v3530 = vld [vmem:[%s8 + $0x18] sm:$0xff]
        %v3531 = vld [vmem:[%s8 + $0x20] sm:$0xff]
        %v3532 = vld [vmem:[%s8 + $0x28] sm:$0xff]
        %3534 = vset.pattern.permute.xlu0 0
        %3535 = vperm.xlu0 %3534, %v3527
        %v3536 = vpop.permute.xlu0 %3535
        %3539 = vset.pattern.permute.xlu0 0
        %3540 = vperm.xlu0 %3539, %v3528
        %v3541 = vpop.permute.xlu0 %3540
        %3544 = vset.pattern.permute.xlu0 0
        %3545 = vperm.xlu0 %3544, %v3529
        %v3546 = vpop.permute.xlu0 %3545
        %3549 = vset.pattern.permute.xlu0 0
        %3550 = vperm.xlu0 %3549, %v3530
        %v3551 = vpop.permute.xlu0 %3550
        %3554 = vset.pattern.permute.xlu0 0
        %3555 = vperm.xlu0 %3554, %v3531
        %v3556 = vpop.permute.xlu0 %3555
        %3559 = vset.pattern.permute.xlu0 0
        %3560 = vperm.xlu0 %3559, %v3532
        %v3561 = vpop.permute.xlu0 %3560
        %v3569 = vunpack.c.l.b16 %v3497
        %v3570 = vunpack.c.l.b16 %v3498
        %v3571 = vunpack.c.l.b16 %v3499
        %v3572 = vunpack.c.l.b16 %v3500
        %v3573 = vunpack.c.l.b16 %v3501
        %v3574 = vunpack.c.l.b16 %v3502
        %v3575 = vpack.c.b16 %v3570, %v3569
        %v3576 = vpack.c.b16 %v3572, %v3571
        %v3577 = vpack.c.b16 %v3574, %v3573
        %3581 = vmatprep.subr.bf16.mxu0 %v3504
        %3582 = vmatpush1.bf16.msra.mxu0 %v3503
        %3583 = vmatprep.subr.bf16.mxu0 %v3507
        %3584 = vmatpush1.bf16.msra.mxu0 %v3506
        %3585 = vmatprep.subr.bf16.mxu0 %v3510
        %3586 = vmatpush1.bf16.msra.mxu0 %v3509
        %3587 = vmatprep.subr.bf16.mxu0 %v3513
        %3588 = vmatpush1.bf16.msra.mxu0 %v3512
        %3589 = vmatprep.subr.bf16.mxu0 %v3516
        %3590 = vmatpush1.bf16.msra.mxu0 %v3515
        %3591 = vmatprep.subr.bf16.mxu0 %v3519
        %3592 = vmatpush1.bf16.msra.mxu0 %v3518
        %3593 = vmatprep.subr.bf16.mxu0 %v3522
        %3594 = vmatpush1.bf16.msra.mxu0 %v3521
        %3595 = vmatprep.subr.bf16.mxu0 %v3525
        %3596 = vmatpush1.bf16.msra.mxu0 %v3524
        %3597 = vmatprep.subr.bf16.mxu0 0
        %3598 = vmatpush1.bf16.msra.mxu0 0
        %3599 = vmatprep.subr.bf16.mxu0 0
        %3600 = vmatpush1.bf16.msra.mxu0 0
        %3601 = vmatprep.subr.bf16.mxu0 0
        %3602 = vmatpush1.bf16.msra.mxu0 0
        %3603 = vmatprep.subr.bf16.mxu0 0
        %3604 = vmatpush1.bf16.msra.mxu0 0
        %3605 = vmatprep.subr.bf16.mxu0 0
        %3606 = vmatpush1.bf16.msra.mxu0 0
        %3607 = vmatprep.subr.bf16.mxu0 0
        %3608 = vmatpush1.bf16.msra.mxu0 0
        %3609 = vmatprep.subr.bf16.mxu0 0
        %3610 = vmatpush1.bf16.msra.mxu0 0
        %3611 = vmatprep.subr.bf16.mxu0 0
        %3612 = vmatpush1.bf16.msra.mxu0 0
        %3613 = vmatprep.mubr.bf16.mxu0 0
        %3614 = vmatmul.mubr.bf16.gmra.mrb[0].mxu0 %v3575
        %v3615 = vpop.f32.mrb[0].mxu0
        %v3616 = vadd.f32 %v3536, %v3615
        %v3617 = vpop.f32.mrb[0].mxu0
        %v3618 = vadd.f32 %v3536, %v3617
        %v3619 = vpop.f32.mrb[0].mxu0
        %v3620 = vadd.f32 %v3541, %v3619
        %v3621 = vpop.f32.mrb[0].mxu0
        %v3622 = vadd.f32 %v3541, %v3621
        %3623 = vmatprep.mubr.bf16.mxu0 0
        %3624 = vmatmul.mubr.bf16.gmra.mrb[0].mxu0 %v3576
        %v3625 = vpop.f32.mrb[0].mxu0
        %v3626 = vadd.f32 %v3546, %v3625
        %v3627 = vpop.f32.mrb[0].mxu0
        %v3628 = vadd.f32 %v3546, %v3627
        %v3629 = vpop.f32.mrb[0].mxu0
        %v3630 = vadd.f32 %v3551, %v3629
        %v3631 = vpop.f32.mrb[0].mxu0
        %v3632 = vadd.f32 %v3551, %v3631
        %3633 = vmatprep.mubr.bf16.mxu0 0
        %3634 = vmatmul.mubr.bf16.gmra.mrb[0].mxu0 %v3577
        %v3635 = vpop.f32.mrb[0].mxu0
        %v3636 = vadd.f32 %v3556, %v3635
        %v3637 = vpop.f32.mrb[0].mxu0
        %v3638 = vadd.f32 %v3556, %v3637
        %v3639 = vpop.f32.mrb[0].mxu0
        %v3640 = vadd.f32 %v3561, %v3639
        %v3641 = vpop.f32.mrb[0].mxu0
        %v3642 = vadd.f32 %v3561, %v3641
        %3643 = vdwg.mxu0
        %3644 = vmatprep.subr.bf16.mxu0 0
        %3645 = vmatpush1.bf16.msra.mxu0 %v3505
        %3646 = vmatprep.subr.bf16.mxu0 0
        %3647 = vmatpush1.bf16.msra.mxu0 %v3508
        %3648 = vmatprep.subr.bf16.mxu0 0
        %3649 = vmatpush1.bf16.msra.mxu0 %v3511
        %3650 = vmatprep.subr.bf16.mxu0 0
        %3651 = vmatpush1.bf16.msra.mxu0 %v3514
        %3652 = vmatprep.subr.bf16.mxu0 0
        %3653 = vmatpush1.bf16.msra.mxu0 %v3517
        %3654 = vmatprep.subr.bf16.mxu0 0
        %3655 = vmatpush1.bf16.msra.mxu0 %v3520
        %3656 = vmatprep.subr.bf16.mxu0 0
        %3657 = vmatpush1.bf16.msra.mxu0 %v3523
        %3658 = vmatprep.subr.bf16.mxu0 0
        %3659 = vmatpush1.bf16.msra.mxu0 %v3526
        %3660 = vmatprep.subr.bf16.mxu0 0
        %3661 = vmatpush1.bf16.msra.mxu0 0
        %3662 = vmatprep.subr.bf16.mxu0 0
        %3663 = vmatpush1.bf16.msra.mxu0 0
        %3664 = vmatprep.subr.bf16.mxu0 0
        %3665 = vmatpush1.bf16.msra.mxu0 0
        %3666 = vmatprep.subr.bf16.mxu0 0
        %3667 = vmatpush1.bf16.msra.mxu0 0
        %3668 = vmatprep.subr.bf16.mxu0 0
        %3669 = vmatpush1.bf16.msra.mxu0 0
        %3670 = vmatprep.subr.bf16.mxu0 0
        %3671 = vmatpush1.bf16.msra.mxu0 0
        %3672 = vmatprep.subr.bf16.mxu0 0
        %3673 = vmatpush1.bf16.msra.mxu0 0
        %3674 = vmatprep.subr.bf16.mxu0 0
        %3675 = vmatpush1.bf16.msra.mxu0 0
        %3676 = vmatprep.mubr.bf16.mxu0 0
        %3677 = vmatmul.mubr.bf16.gmra.mrb[0].mxu0 %v3575
        %v3678 = vpop.f32.mrb[0].mxu0
        %v3679 = vadd.f32 %v3536, %v3678
        %v3680 = vpop.f32.mrb[0].mxu0
        %v3681 = vpop.f32.mrb[0].mxu0
        %v3682 = vadd.f32 %v3541, %v3681
        %v3683 = vpop.f32.mrb[0].mxu0
        %3684 = vmatprep.mubr.bf16.mxu0 0
        %3685 = vmatmul.mubr.bf16.gmra.mrb[0].mxu0 %v3576
        %v3686 = vpop.f32.mrb[0].mxu0
        %v3687 = vadd.f32 %v3546, %v3686
        %v3688 = vpop.f32.mrb[0].mxu0
        %v3689 = vpop.f32.mrb[0].mxu0
        %v3690 = vadd.f32 %v3551, %v3689
        %v3691 = vpop.f32.mrb[0].mxu0
        %3692 = vmatprep.mubr.bf16.mxu0 0
        %3693 = vmatmul.mubr.bf16.gmra.mrb[0].mxu0 %v3577
        %v3694 = vpop.f32.mrb[0].mxu0
        %v3695 = vadd.f32 %v3556, %v3694
        %v3696 = vpop.f32.mrb[0].mxu0
        %v3697 = vpop.f32.mrb[0].mxu0
        %v3698 = vadd.f32 %v3561, %v3697
        %v3699 = vpop.f32.mrb[0].mxu0
        %3700 = vdwg.mxu0
        %v3701 = vtanh.pop %v3616
        %v3702 = vtanh.pop %v3618
        %v3703 = vtanh.pop %v3679
        %v3704 = vtanh.pop %v3620
        %v3705 = vtanh.pop %v3622
        %v3706 = vtanh.pop %v3682
        %v3707 = vtanh.pop %v3626
        %v3708 = vtanh.pop %v3628
        %v3709 = vtanh.pop %v3687
        %3711 = vset.pattern.permute.xlu0 0
        %3712 = vperm.xlu0 %3711, %v2483
        %v3713 = vpop.permute.xlu0 %3712
        %3716 = vset.pattern.permute.xlu0 0
        %3717 = vperm.xlu0 %3716, %v2484
        %v3718 = vpop.permute.xlu0 %3717
        %3721 = vset.pattern.permute.xlu0 0
        %3722 = vperm.xlu0 %3721, %v2485
        %v3723 = vpop.permute.xlu0 %3722
        %v3725 = vmul.f32 %v3701, %v3713
        %v3726 = vmul.f32 %v3702, %v3713
        %v3727 = vmul.f32 %v3703, %v3713
        %v3728 = vmul.f32 %v3704, %v3718
        %v3729 = vmul.f32 %v3705, %v3718
        %v3730 = vmul.f32 %v3706, %v3718
        %v3731 = vmul.f32 %v3707, %v3723
        %v3732 = vmul.f32 %v3708, %v3723
        %v3733 = vmul.f32 %v3709, %v3723
        %v3734 = vsub.f32 %v2444, %v3630
        %v3735 = vsub.f32 %v2445, %v3632
        %v3736 = vsub.f32 %v2446, %v3690
        %v3737 = vsub.f32 %v2447, %v3636
        %v3738 = vsub.f32 %v2448, %v3638
        %v3739 = vsub.f32 %v2449, %v3695
        %v3740 = vsub.f32 %v2450, %v3640
        %v3741 = vsub.f32 %v2451, %v3642
        %v3742 = vsub.f32 %v2452, %v3698
        %v3743 = vmul.f32 %v3713, %v3734
        %v3744 = vmul.f32 %v3713, %v3735
        %v3745 = vmul.f32 %v3713, %v3736
        %v3746 = vmul.f32 %v3718, %v3737
        %v3747 = vmul.f32 %v3718, %v3738
        %v3748 = vmul.f32 %v3718, %v3739
        %v3749 = vmul.f32 %v3723, %v3740
        %v3750 = vmul.f32 %v3723, %v3741
        %v3751 = vmul.f32 %v3723, %v3742
        %v3752 = vsub.f32 0.0, %v3725
        %v3753 = vsub.f32 0.0, %v3726
        %v3754 = vsub.f32 0.0, %v3727
        %v3755 = vsub.f32 0.0, %v3728
        %v3756 = vsub.f32 0.0, %v3729
        %v3757 = vsub.f32 0.0, %v3730
        %v3758 = vsub.f32 0.0, %v3731
        %v3759 = vsub.f32 0.0, %v3732
        %v3760 = vsub.f32 0.0, %v3733
        %v3761 = vmul.f32 %v3752, 1.442695
        %v3762 = vpow.pop %v3761
        %v3763 = vmul.f32 %v3753, 1.442695
        %v3764 = vpow.pop %v3763
        %v3765 = vmul.f32 %v3754, 1.442695
        %v3766 = vpow.pop %v3765
        %v3767 = vmul.f32 %v3755, 1.442695
        %v3768 = vpow.pop %v3767
        %v3769 = vmul.f32 %v3756, 1.442695
        %v3770 = vpow.pop %v3769
        %v3771 = vmul.f32 %v3757, 1.442695
        %v3772 = vpow.pop %v3771
        %v3773 = vmul.f32 %v3758, 1.442695
        %v3774 = vpow.pop %v3773
        %v3775 = vmul.f32 %v3759, 1.442695
        %v3776 = vpow.pop %v3775
        %v3777 = vmul.f32 %v3760, 1.442695
        %v3778 = vpow.pop %v3777
        %v3779 = vmul.f32 %v3743, %v3762
        %v3780 = vmul.f32 %v3744, %v3764
        %v3781 = vmul.f32 %v3745, %v3766
        %v3782 = vmul.f32 %v3746, %v3768
        %v3783 = vmul.f32 %v3747, %v3770
        %v3784 = vmul.f32 %v3748, %v3772
        %v3785 = vmul.f32 %v3749, %v3774
        %v3786 = vmul.f32 %v3750, %v3776
        %v3787 = vmul.f32 %v3751, %v3778
        %v3788 = vadd.f32 %v3779, %v2501
        %v3789 = vadd.f32 %v3780, %v2502
        %v3790 = vadd.f32 %v3781, %v2503
        %v3791 = vadd.f32 %v3782, %v2504
        %v3792 = vadd.f32 %v3783, %v2505
        %v3793 = vadd.f32 %v3784, %v2506
        %v3794 = vadd.f32 %v3785, %v2507
        %v3795 = vadd.f32 %v3786, %v2508
        %v3796 = vadd.f32 %v3787, %v2509
        %v3797 = vadd.f32 %v3725, %v3728
        %v3798 = vadd.f32 %v3797, %v3731
        %v3799 = vrot.slane %v3798, 4
        %v3800 = vadd.f32 %v3798, %v3799
        %v3801 = vrot.slane %v3800, 2
        %v3802 = vadd.f32 %v3800, %v3801
        %v3803 = vrot.slane %v3802, 1
        %v3804 = vadd.f32 %v3802, %v3803
        %v3805 = vadd.f32 %v3726, %v3729
        %v3806 = vadd.f32 %v3805, %v3732
        %v3807 = vrot.slane %v3806, 4
        %v3808 = vadd.f32 %v3806, %v3807
        %v3809 = vrot.slane %v3808, 2
        %v3810 = vadd.f32 %v3808, %v3809
        %v3811 = vrot.slane %v3810, 1
        %v3812 = vadd.f32 %v3810, %v3811
        %v3813 = vadd.f32 %v3727, %v3730
        %v3814 = vadd.f32 %v3813, %v3733
        %v3815 = vrot.slane %v3814, 4
        %v3816 = vadd.f32 %v3814, %v3815
        %v3817 = vrot.slane %v3816, 2
        %v3818 = vadd.f32 %v3816, %v3817
        %v3819 = vrot.slane %v3818, 1
        %v3820 = vadd.f32 %v3818, %v3819
        %v3821 = vsub.f32 %v2477, %v3804
        %v3822 = vsub.f32 %v2478, %v3812
        %v3823 = vsub.f32 %v2479, %v3820
        %v3824 = vmul.f32 %v3788, %v3788
        %v3825 = vmul.f32 %v3789, %v3789
        %v3826 = vmul.f32 %v3790, %v3790
        %v3827 = vmul.f32 %v3791, %v3791
        %v3828 = vmul.f32 %v3792, %v3792
        %v3829 = vmul.f32 %v3793, %v3793
        %v3830 = vmul.f32 %v3794, %v3794
        %v3831 = vmul.f32 %v3795, %v3795
        %v3832 = vmul.f32 %v3796, %v3796
        %v3833 = vadd.f32 %v3824, %v3827
        %v3834 = vadd.f32 %v3833, %v3830
        %v3835 = vrot.slane %v3834, 4
        %v3836 = vadd.f32 %v3834, %v3835
        %v3837 = vrot.slane %v3836, 2
        %v3838 = vadd.f32 %v3836, %v3837
        %v3839 = vrot.slane %v3838, 1
        %v3840 = vadd.f32 %v3838, %v3839
        %v3841 = vadd.f32 %v3825, %v3828
        %v3842 = vadd.f32 %v3841, %v3831
        %v3843 = vrot.slane %v3842, 4
        %v3844 = vadd.f32 %v3842, %v3843
        %v3845 = vrot.slane %v3844, 2
        %v3846 = vadd.f32 %v3844, %v3845
        %v3847 = vrot.slane %v3846, 1
        %v3848 = vadd.f32 %v3846, %v3847
        %v3849 = vadd.f32 %v3826, %v3829
        %v3850 = vadd.f32 %v3849, %v3832
        %v3851 = vrot.slane %v3850, 4
        %v3852 = vadd.f32 %v3850, %v3851
        %v3853 = vrot.slane %v3852, 2
        %v3854 = vadd.f32 %v3852, %v3853
        %v3855 = vrot.slane %v3854, 1
        %v3856 = vadd.f32 %v3854, %v3855
        %v3857 = vmul.f32 %v3840, -0.5
        %v3858 = vmul.f32 %v3848, -0.5
        %v3859 = vmul.f32 %v3856, -0.5
        %v3860 = vsub.f32 %v3857, 22.054525
        %v3861 = vsub.f32 %v3858, 22.054525
        %v3862 = vsub.f32 %v3859, 22.054525
        %v3863 = vadd.f32 %v3860, %v3821
        %v3864 = vadd.f32 %v3861, %v3822
        %v3865 = vadd.f32 %v3862, %v3823
        %v3869 = vcombine.low %v3863, %v3864
        %v3871 = vunpack.c.l.s4 1966171168
        %v3872 = vunpack.c.0.s8 %v3871
        %v3873 = vlaneseq
        %v3874 = vshrl.u32 %v3873, 7
        %v3875 = vsub.s32 %v3872, %v3874
        %v3876 = vrot.slane %v3869, %v3875
        %v3878 = vunpack.c.l.s4 1966171168
        %v3879 = vunpack.c.0.s8 %v3878
        %v3880 = vlaneseq
        %v3881 = vshrl.u32 %v3880, 7
        %v3882 = vsub.s32 %v3879, %v3881
        %v3883 = vrot.slane %v3865, %v3882
        %v3884 = vcombine.low %v3876, %v3883
        %v3886 = vunpack.c.l.s4 1966171168
        %v3887 = vunpack.c.0.s8 %v3886
        %v3888 = vlaneseq
        %v3889 = vshrl.u32 %v3888, 7
        %v3890 = vsub.s32 %v3887, %v3889
        %v3891 = vrot.slane %v3884, %v3890
        %v3893 = vlaneseq
        %vm3894 = vcmp.ge.s32.totalorder %v3893, 0
        %vm3895 = vcmp.lt.s32.totalorder %v3893, 384
        %vm3896 = vmand %vm3894, %vm3895
        %3897 = vst.msk [vmem:[%s390] sm:$0x7] %vm3896, %v3891
        %s3898 = sand.u32 %s225, 1
        %s3899 = scalar_lea.sflag [#allocation4], %s3898
        %s3900 = sand.u32 %s225, 1
        %s3901 = smul.addr %s3900, 3
        %s3902 = scalar_lea.vmem [#allocation3], %s3901
        // Predicated region
        $region80: #{tpu_custom_call.1} parent=74 // pred_check
          %p3903 = pneg %p235
        $region81: #{tpu_custom_call.1} parent=74 // pred_check_branch
          %3905 = sbr.rel (%p3903) target = $region83
        $region82: #{tpu_custom_call.1} parent=74 // pred_region
          %s3906 = smul.u32 3, %s23
          %s3908 = ssub.s32 48, 48
          %3909 = vsyncadd %s3899, %s3908
          %s3910 = smul.addr %s3906, 16
          %s3911 = scalar_lea.hbm %s9, %s3910
          %s3913 = sshll.u32 %s3902, 4
          %s3914 = int_to_ptr.vmem [resolvable:$true] %s3913
          %3916 = dma.vmem_to_hbm [thread:$0]  %s3914, 48, %s3911, %s3899
        $region83: #{tpu_custom_call.1} parent=74 // pred_fallthru
          _
      $region75: #{tpu_custom_call.1} parent=5 // pred_fallthru
        _
      %p3917 = scmp.le.s32.totalorder 2, %s18
      // Predicated region
      $region84: #{tpu_custom_call.1} parent=5 // pred_check
        %p3918 = pneg %p3917
      $region85: #{tpu_custom_call.1} parent=5 // pred_check_branch
        %3920 = sbr.rel (%p3918) target = $region87
      $region86: #{tpu_custom_call.1} parent=5 // pred_region
        %s3921 = ssub.s32 %s18, 2
        // Predicated region
        $region88: #{tpu_custom_call.1} parent=86 // pred_check
          %p3922 = pneg %p241
        $region89: #{tpu_custom_call.1} parent=86 // pred_check_branch
          %3924 = sbr.rel (%p3922) target = $region91
        $region90: #{tpu_custom_call.1} parent=86 // pred_region
          %s3925 = sand.u32 %s226, 1
          %s3926 = scalar_lea.sflag [#allocation4], %s3925
          %s3927 = sand.u32 %s226, 1
          %s3928 = smul.addr %s3927, 3
          %s3929 = scalar_lea.vmem [#allocation3], %s3928
          %3930 = dma.done %s3926, 48
        $region91: #{tpu_custom_call.1} parent=86 // pred_fallthru
          _
      $region87: #{tpu_custom_call.1} parent=5 // pred_fallthru
        _
    $region6: #{tpu_custom_call.1} parent=1 // loop_footer
      %s22 = sadd.s32 1, %s18
    $region7: #{tpu_custom_call.1} parent=1 // loop_footer_branch
      %17 = sbr.rel target = $region3
    $region8: #{tpu_custom_call.1} parent=1 // loop_exit
      _
    %3931 = vsyncpa [#allocation4], 1
    %s3932 = scalar_lea.sflag [#allocation4], 1
    %3933 = vsyncpa %s3932, 1

</llo_original>
